<compile_context>
chip_gen: v5e
topology: v5e:2x2
jax: 0.10.0
libtpu: 0.0.40
codegen_flags: <defaults>
</compile_context>

<pallas_src>
import functools

import jax
import jax.numpy as jnp
import numpy as np
from jax.experimental import pallas as pl
from jax.experimental.pallas import tpu as pltpu


# --------------------------- fused Generator kernel ---------------------------
def _generator_kernel(n_layers, T, B, H, scale_minmax, *refs):
    """Fused multi-layer LSTM + FC forward. No grid; everything in VMEM.

    refs layout:
      inputs : x (T*B, D_in), then per layer (wih (D,4H), whh (H,4H), b (1,4H)),
               then fc_w (H, O), fc_b (1, O)
      outputs: out (T*B, O), h_n (n_layers, B, H), c_n (n_layers, B, H)
      scratch: seq_sc (T*B, H)   -- current layer's output sequence
    """
    x_ref = refs[0]
    layer_refs = []
    idx = 1
    for _ in range(n_layers):
        layer_refs.append((refs[idx], refs[idx + 1], refs[idx + 2]))
        idx += 3
    fcw_ref, fcb_ref = refs[idx], refs[idx + 1]
    out_ref, hn_ref, cn_ref = refs[idx + 2], refs[idx + 3], refs[idx + 4]
    seq_sc = refs[idx + 5]

    for l, (wih_ref, whh_ref, b_ref) in enumerate(layer_refs):
        # Layer input: original x for layer 0, previous layer's VMEM sequence after.
        inp = x_ref[...] if l == 0 else seq_sc[...]          # (T*B, D_in_l)
        whh = whh_ref[...]                                   # (H, 4H)

        # Hoisted input projection over the whole sequence (one big MXU op),
        # with the combined bias folded in.
        gx = jnp.dot(inp, wih_ref[...],
                     preferred_element_type=jnp.float32) + b_ref[...]  # (T*B, 4H)

        h = jnp.zeros((B, H), jnp.float32)
        c = jnp.zeros((B, H), jnp.float32)
        for t in range(T):  # static unrolled time loop (T known at trace time)
            gates = gx[t * B:(t + 1) * B, :] + jnp.dot(
                h, whh, preferred_element_type=jnp.float32)            # (B, 4H)
            # PyTorch gate order i, f, g, o in lane blocks of H=32 each.
            # Two full-vreg transcendentals + per-lane select, instead of four
            # partial-vreg activations.
            lane = jax.lax.broadcasted_iota(jnp.int32, gates.shape, 1)
            is_g = jnp.logical_and(lane >= 2 * H, lane < 3 * H)
            act = jnp.where(is_g, jnp.tanh(gates), jax.nn.sigmoid(gates))
            i_g = act[:, 0 * H:1 * H]
            f_g = act[:, 1 * H:2 * H]
            g_g = act[:, 2 * H:3 * H]
            o_g = act[:, 3 * H:4 * H]
            c = f_g * c + i_g * g_g
            h = o_g * jnp.tanh(c)
            seq_sc[t * B:(t + 1) * B, :] = h                 # stash for next layer / FC

        hn_ref[l] = h                                        # write once per layer
        cn_ref[l] = c

    # FC epilogue on the whole flattened sequence (rows still time-major).
    out = jnp.dot(seq_sc[...], fcw_ref[...],
                  preferred_element_type=jnp.float32) + fcb_ref[...]   # (T*B, O)
    if scale_minmax:
        out = jnp.clip(out, 0.0, 6.0) * (1.0 / 6.0)
    out_ref[...] = out


def generator_forward(x_flat_tm, layer_params, fc_w_t, fc_b2, *,
                      T, B, H, O, n_layers, scale_minmax):
    """x_flat_tm: (T*B, D_in) time-major flattened input. Returns (out_tm, h_n, c_n)."""
    kernel = functools.partial(_generator_kernel, n_layers, T, B, H, scale_minmax)

    in_arrays = [x_flat_tm]
    in_specs = [pl.BlockSpec(x_flat_tm.shape, lambda: (0, 0))]
    for (wih_t, whh_t, bias) in layer_params:
        in_arrays += [wih_t, whh_t, bias]
        in_specs += [pl.BlockSpec(wih_t.shape, lambda: (0, 0)),
                     pl.BlockSpec(whh_t.shape, lambda: (0, 0)),
                     pl.BlockSpec(bias.shape, lambda: (0, 0))]
    in_arrays += [fc_w_t, fc_b2]
    in_specs += [pl.BlockSpec(fc_w_t.shape, lambda: (0, 0)),
                 pl.BlockSpec(fc_b2.shape, lambda: (0, 0))]

    out_shape = (jax.ShapeDtypeStruct((T * B, O), jnp.float32),
                 jax.ShapeDtypeStruct((n_layers, B, H), jnp.float32),
                 jax.ShapeDtypeStruct((n_layers, B, H), jnp.float32))
    out_specs = (pl.BlockSpec((T * B, O), lambda: (0, 0)),
                 pl.BlockSpec((n_layers, B, H), lambda: (0, 0, 0)),
                 pl.BlockSpec((n_layers, B, H), lambda: (0, 0, 0)))

    return pl.pallas_call(
        kernel,
        out_shape=out_shape,
        in_specs=in_specs,
        out_specs=out_specs,
        scratch_shapes=[pltpu.VMEM((T * B, H), jnp.float32)],
    )(*in_arrays)


# ------------------------------- Generator module -----------------------------
class Generator:
    """JAX/Pallas port of the PyTorch Generator (LSTM + Linear)."""

    def __init__(self, in_channels, out_channels=4, hidden_dim=32, n_layers=3,
                 scale=False, key=jax.random.PRNGKey(0)):
        self.scale = scale
        self.n_layers = n_layers
        self.hidden_dim = hidden_dim
        self.in_channels = in_channels
        self.out_channels = out_channels

        H = hidden_dim
        bound = 1.0 / np.sqrt(H)
        keys = jax.random.split(key, 4 * n_layers + 2)
        k_idx = 0
        self.layers = []        # (wih_t, whh_t, folded_bias) for the kernel
        self.layers_raw = []    # raw PyTorch-layout weights for the reference
        for layer in range(n_layers):
            d_in = in_channels if layer == 0 else H
            w_ih = jax.random.uniform(keys[k_idx], (4 * H, d_in),
                                      minval=-bound, maxval=bound); k_idx += 1
            w_hh = jax.random.uniform(keys[k_idx], (4 * H, H),
                                      minval=-bound, maxval=bound); k_idx += 1
            b_ih = jax.random.uniform(keys[k_idx], (4 * H,),
                                      minval=-bound, maxval=bound); k_idx += 1
            b_hh = jax.random.uniform(keys[k_idx], (4 * H,),
                                      minval=-bound, maxval=bound); k_idx += 1
            self.layers.append((w_ih.T.astype(jnp.float32),
                                w_hh.T.astype(jnp.float32),
                                (b_ih + b_hh).reshape(1, 4 * H).astype(jnp.float32)))
            self.layers_raw.append((w_ih, w_hh, b_ih, b_hh))
        fc_bound = 1.0 / np.sqrt(H)
        self.fc_w = jax.random.uniform(keys[k_idx], (out_channels, H),
                                       minval=-fc_bound, maxval=fc_bound); k_idx += 1
        self.fc_b = jax.random.uniform(keys[k_idx], (out_channels,),
                                       minval=-fc_bound, maxval=fc_bound)
        self.fc_w_t = self.fc_w.T.astype(jnp.float32)
        self.fc_b2 = self.fc_b.reshape(1, out_channels).astype(jnp.float32)

    def __call__(self, x, h=None):
        # x: (B, T, in_channels), batch_first like the PyTorch module.
        # TODO(synk): optional initial hidden state `h` is always None in this
        # synthetic setting; a non-None (h0, c0) would just seed the in-kernel
        # h/c values instead of zeros.
        B, T, _ = x.shape
        x_tm = jnp.transpose(x, (1, 0, 2)).reshape(
            T * B, self.in_channels).astype(jnp.float32)      # time-major flat
        out_tm, h_n, c_n = generator_forward(
            x_tm, self.layers, self.fc_w_t, self.fc_b2,
            T=T, B=B, H=self.hidden_dim, O=self.out_channels,
            n_layers=self.n_layers, scale_minmax=(self.scale == 'minmax'))
        # Reorder rows time-major (t,b) -> batch-major (b,t) so the result
        # matches PyTorch's lstm_output.reshape(-1, H) @ fc ordering.
        out = out_tm.reshape(T, B, self.out_channels).transpose(1, 0, 2).reshape(
            B * T, self.out_channels)
        return out, (h_n, c_n)

    # Pure-JAX reference (no Pallas) for correctness checking.
    def reference(self, x):
        B, T, _ = x.shape
        H = self.hidden_dim
        seq = jnp.transpose(x, (1, 0, 2)).astype(jnp.float32)
        h_ns, c_ns = [], []
        for (w_ih, w_hh, b_ih, b_hh) in self.layers_raw:
            hcur = jnp.zeros((B, H), jnp.float32)
            ccur = jnp.zeros((B, H), jnp.float32)
            outs = []
            for t in range(T):
                g = seq[t] @ w_ih.T + b_ih + hcur @ w_hh.T + b_hh
                i = jax.nn.sigmoid(g[:, 0 * H:1 * H])
                f = jax.nn.sigmoid(g[:, 1 * H:2 * H])
                gg = jnp.tanh(g[:, 2 * H:3 * H])
                o = jax.nn.sigmoid(g[:, 3 * H:4 * H])
                ccur = f * ccur + i * gg
                hcur = o * jnp.tanh(ccur)
                outs.append(hcur)
            seq = jnp.stack(outs, axis=0)
            h_ns.append(hcur)
            c_ns.append(ccur)
        flat = jnp.transpose(seq, (1, 0, 2)).reshape(-1, H)
        out = flat @ self.fc_w.T + self.fc_b
        if self.scale == 'minmax':
            out = jnp.clip(out, 0.0, 6.0) * (1.0 / 6.0)
        return out, (jnp.stack(h_ns, 0), jnp.stack(c_ns, 0))


if __name__ == "__main__":
    B, T, C_IN, HID, C_OUT, NL = 2, 8, 4, 32, 4, 3
    key = jax.random.PRNGKey(0)
    k_x, k_p = jax.random.split(key)
    x = jax.random.normal(k_x, (B, T, C_IN), dtype=jnp.float32)

    gen = Generator(in_channels=C_IN, out_channels=C_OUT, hidden_dim=HID,
                    n_layers=NL, scale=False, key=k_p)

    out, (h_n, c_n) = gen(x)
    jax.block_until_ready(out)
    jax.block_until_ready(h_n)
    jax.block_until_ready(c_n)

    # sanity check against pure-JAX reference
    ref_out, (ref_h, ref_c) = gen.reference(x)
    assert out.shape == (B * T, C_OUT)
    assert h_n.shape == (NL, B, HID) and c_n.shape == (NL, B, HID)
    np.testing.assert_allclose(np.asarray(out), np.asarray(ref_out),
                               rtol=1e-4, atol=1e-4)
    np.testing.assert_allclose(np.asarray(h_n), np.asarray(ref_h),
                               rtol=1e-4, atol=1e-4)
    np.testing.assert_allclose(np.asarray(c_n), np.asarray(ref_c),
                               rtol=1e-4, atol=1e-4)

    print("KERNEL_OK")
</pallas_src>

<mosaic_0001>
module attributes {stable_mosaic.version = 11 : i64} {
  func.func @_generator_kernel(%arg0: memref<16x4xf32, #tpu.memory_space<vmem>>, %arg1: memref<4x128xf32, #tpu.memory_space<vmem>>, %arg2: memref<32x128xf32, #tpu.memory_space<vmem>>, %arg3: memref<1x128xf32, #tpu.memory_space<vmem>>, %arg4: memref<32x128xf32, #tpu.memory_space<vmem>>, %arg5: memref<32x128xf32, #tpu.memory_space<vmem>>, %arg6: memref<1x128xf32, #tpu.memory_space<vmem>>, %arg7: memref<32x128xf32, #tpu.memory_space<vmem>>, %arg8: memref<32x128xf32, #tpu.memory_space<vmem>>, %arg9: memref<1x128xf32, #tpu.memory_space<vmem>>, %arg10: memref<32x4xf32, #tpu.memory_space<vmem>>, %arg11: memref<1x4xf32, #tpu.memory_space<vmem>>, %arg12: memref<16x4xf32, #tpu.memory_space<vmem>>, %arg13: memref<3x2x32xf32, #tpu.memory_space<vmem>>, %arg14: memref<3x2x32xf32, #tpu.memory_space<vmem>>, %arg15: memref<16x32xf32, #tpu.memory_space<vmem>>) attributes {dimension_semantics = [], scalar_prefetch = 0 : i64, scratch_operands = 1 : i64, tpu.core_type = #tpu.core_type<tc>} {
    %c0 = arith.constant 0 : index
    %c0_0 = arith.constant 0 : index
    %0 = vector.load %arg0[%c0, %c0_0] : memref<16x4xf32, #tpu.memory_space<vmem>>, vector<16x4xf32>
    %c0_1 = arith.constant 0 : index
    %c0_2 = arith.constant 0 : index
    %1 = vector.load %arg2[%c0_1, %c0_2] : memref<32x128xf32, #tpu.memory_space<vmem>>, vector<32x128xf32>
    %c0_3 = arith.constant 0 : index
    %c0_4 = arith.constant 0 : index
    %2 = vector.load %arg1[%c0_3, %c0_4] : memref<4x128xf32, #tpu.memory_space<vmem>>, vector<4x128xf32>
    %cst = arith.constant dense<0.000000e+00> : vector<16x128xf32>
    %3 = tpu.matmul %0, %2, %cst {dimension_numbers = #tpu.dot_dimension_numbers<[1], [0], [0], [1], [0, 0, 1, 1], [], []>} : vector<16x4xf32>, vector<4x128xf32>, vector<16x128xf32> -> vector<16x128xf32>
    %c0_5 = arith.constant 0 : index
    %c0_6 = arith.constant 0 : index
    %4 = vector.load %arg3[%c0_5, %c0_6] : memref<1x128xf32, #tpu.memory_space<vmem>>, vector<1x128xf32>
    %5 = vector.broadcast %4 : vector<1x128xf32> to vector<16x128xf32>
    %6 = arith.addf %3, %5 : vector<16x128xf32>
    %cst_7 = arith.constant 0.000000e+00 : f32
    %7 = vector.broadcast %cst_7 : f32 to vector<2x32xf32>
    %cst_8 = arith.constant 0.000000e+00 : f32
    %8 = vector.broadcast %cst_8 : f32 to vector<2x32xf32>
    %9 = vector.extract_strided_slice %6 {offsets = [0, 0], sizes = [2, 128], strides = [1, 1]} : vector<16x128xf32> to vector<2x128xf32>
    %cst_9 = arith.constant dense<0.000000e+00> : vector<2x128xf32>
    %10 = tpu.matmul %7, %1, %cst_9 {dimension_numbers = #tpu.dot_dimension_numbers<[1], [0], [0], [1], [0, 0, 1, 1], [], []>} : vector<2x32xf32>, vector<32x128xf32>, vector<2x128xf32> -> vector<2x128xf32>
    %11 = arith.addf %9, %10 : vector<2x128xf32>
    %12 = tpu.iota {dimensions = array<i32: 1>} : vector<2x128xi32>
    %c64_i32 = arith.constant 64 : i32
    %13 = vector.broadcast %c64_i32 : i32 to vector<2x128xi32>
    %14 = arith.cmpi sge, %12, %13 : vector<2x128xi32>
    %c96_i32 = arith.constant 96 : i32
    %15 = vector.broadcast %c96_i32 : i32 to vector<2x128xi32>
    %16 = arith.cmpi slt, %12, %15 : vector<2x128xi32>
    %17 = arith.andi %14, %16 : vector<2x128xi1>
    %18 = math.tanh %11 : vector<2x128xf32>
    %19 = arith.negf %11 : vector<2x128xf32>
    %20 = math.exp %19 : vector<2x128xf32>
    %cst_10 = arith.constant 1.000000e+00 : f32
    %21 = vector.broadcast %cst_10 : f32 to vector<2x128xf32>
    %22 = arith.addf %21, %20 : vector<2x128xf32>
    %23 = arith.divf %21, %22 : vector<2x128xf32>
    %24 = arith.select %17, %18, %23 : vector<2x128xi1>, vector<2x128xf32>
    %25 = vector.extract_strided_slice %24 {offsets = [0, 0], sizes = [2, 32], strides = [1, 1]} : vector<2x128xf32> to vector<2x32xf32>
    %26 = vector.extract_strided_slice %24 {offsets = [0, 32], sizes = [2, 32], strides = [1, 1]} : vector<2x128xf32> to vector<2x32xf32>
    %27 = vector.extract_strided_slice %24 {offsets = [0, 64], sizes = [2, 32], strides = [1, 1]} : vector<2x128xf32> to vector<2x32xf32>
    %28 = vector.extract_strided_slice %24 {offsets = [0, 96], sizes = [2, 32], strides = [1, 1]} : vector<2x128xf32> to vector<2x32xf32>
    %29 = arith.mulf %26, %8 : vector<2x32xf32>
    %30 = arith.mulf %25, %27 : vector<2x32xf32>
    %31 = arith.addf %29, %30 : vector<2x32xf32>
    %32 = math.tanh %31 : vector<2x32xf32>
    %33 = arith.mulf %28, %32 : vector<2x32xf32>
    %c0_11 = arith.constant 0 : index
    %c0_12 = arith.constant 0 : index
    %34 = vector.load %arg15[%c0_11, %c0_12] : memref<16x32xf32, #tpu.memory_space<vmem>>, vector<2x32xf32>
    tpu.vector_store %arg15[%c0_11, %c0_12], %33 {strides = array<i32>} : memref<16x32xf32, #tpu.memory_space<vmem>>, vector<2x32xf32>,
    %35 = vector.extract_strided_slice %6 {offsets = [2, 0], sizes = [2, 128], strides = [1, 1]} : vector<16x128xf32> to vector<2x128xf32>
    %cst_13 = arith.constant dense<0.000000e+00> : vector<2x128xf32>
    %36 = tpu.matmul %33, %1, %cst_13 {dimension_numbers = #tpu.dot_dimension_numbers<[1], [0], [0], [1], [0, 0, 1, 1], [], []>} : vector<2x32xf32>, vector<32x128xf32>, vector<2x128xf32> -> vector<2x128xf32>
    %37 = arith.addf %35, %36 : vector<2x128xf32>
    %38 = tpu.iota {dimensions = array<i32: 1>} : vector<2x128xi32>
    %c64_i32_14 = arith.constant 64 : i32
    %39 = vector.broadcast %c64_i32_14 : i32 to vector<2x128xi32>
    %40 = arith.cmpi sge, %38, %39 : vector<2x128xi32>
    %c96_i32_15 = arith.constant 96 : i32
    %41 = vector.broadcast %c96_i32_15 : i32 to vector<2x128xi32>
    %42 = arith.cmpi slt, %38, %41 : vector<2x128xi32>
    %43 = arith.andi %40, %42 : vector<2x128xi1>
    %44 = math.tanh %37 : vector<2x128xf32>
    %45 = arith.negf %37 : vector<2x128xf32>
    %46 = math.exp %45 : vector<2x128xf32>
    %cst_16 = arith.constant 1.000000e+00 : f32
    %47 = vector.broadcast %cst_16 : f32 to vector<2x128xf32>
    %48 = arith.addf %47, %46 : vector<2x128xf32>
    %49 = arith.divf %47, %48 : vector<2x128xf32>
    %50 = arith.select %43, %44, %49 : vector<2x128xi1>, vector<2x128xf32>
    %51 = vector.extract_strided_slice %50 {offsets = [0, 0], sizes = [2, 32], strides = [1, 1]} : vector<2x128xf32> to vector<2x32xf32>
    %52 = vector.extract_strided_slice %50 {offsets = [0, 32], sizes = [2, 32], strides = [1, 1]} : vector<2x128xf32> to vector<2x32xf32>
    %53 = vector.extract_strided_slice %50 {offsets = [0, 64], sizes = [2, 32], strides = [1, 1]} : vector<2x128xf32> to vector<2x32xf32>
    %54 = vector.extract_strided_slice %50 {offsets = [0, 96], sizes = [2, 32], strides = [1, 1]} : vector<2x128xf32> to vector<2x32xf32>
    %55 = arith.mulf %52, %31 : vector<2x32xf32>
    %56 = arith.mulf %51, %53 : vector<2x32xf32>
    %57 = arith.addf %55, %56 : vector<2x32xf32>
    %58 = math.tanh %57 : vector<2x32xf32>
    %59 = arith.mulf %54, %58 : vector<2x32xf32>
    %c2 = arith.constant 2 : index
    %c0_17 = arith.constant 0 : index
    %60 = vector.load %arg15[%c2, %c0_17] : memref<16x32xf32, #tpu.memory_space<vmem>>, vector<2x32xf32>
    tpu.vector_store %arg15[%c2, %c0_17], %59 {strides = array<i32>} : memref<16x32xf32, #tpu.memory_space<vmem>>, vector<2x32xf32>,
    %61 = vector.extract_strided_slice %6 {offsets = [4, 0], sizes = [2, 128], strides = [1, 1]} : vector<16x128xf32> to vector<2x128xf32>
    %cst_18 = arith.constant dense<0.000000e+00> : vector<2x128xf32>
    %62 = tpu.matmul %59, %1, %cst_18 {dimension_numbers = #tpu.dot_dimension_numbers<[1], [0], [0], [1], [0, 0, 1, 1], [], []>} : vector<2x32xf32>, vector<32x128xf32>, vector<2x128xf32> -> vector<2x128xf32>
    %63 = arith.addf %61, %62 : vector<2x128xf32>
    %64 = tpu.iota {dimensions = array<i32: 1>} : vector<2x128xi32>
    %c64_i32_19 = arith.constant 64 : i32
    %65 = vector.broadcast %c64_i32_19 : i32 to vector<2x128xi32>
    %66 = arith.cmpi sge, %64, %65 : vector<2x128xi32>
    %c96_i32_20 = arith.constant 96 : i32
    %67 = vector.broadcast %c96_i32_20 : i32 to vector<2x128xi32>
    %68 = arith.cmpi slt, %64, %67 : vector<2x128xi32>
    %69 = arith.andi %66, %68 : vector<2x128xi1>
    %70 = math.tanh %63 : vector<2x128xf32>
    %71 = arith.negf %63 : vector<2x128xf32>
    %72 = math.exp %71 : vector<2x128xf32>
    %cst_21 = arith.constant 1.000000e+00 : f32
    %73 = vector.broadcast %cst_21 : f32 to vector<2x128xf32>
    %74 = arith.addf %73, %72 : vector<2x128xf32>
    %75 = arith.divf %73, %74 : vector<2x128xf32>
    %76 = arith.select %69, %70, %75 : vector<2x128xi1>, vector<2x128xf32>
    %77 = vector.extract_strided_slice %76 {offsets = [0, 0], sizes = [2, 32], strides = [1, 1]} : vector<2x128xf32> to vector<2x32xf32>
    %78 = vector.extract_strided_slice %76 {offsets = [0, 32], sizes = [2, 32], strides = [1, 1]} : vector<2x128xf32> to vector<2x32xf32>
    %79 = vector.extract_strided_slice %76 {offsets = [0, 64], sizes = [2, 32], strides = [1, 1]} : vector<2x128xf32> to vector<2x32xf32>
    %80 = vector.extract_strided_slice %76 {offsets = [0, 96], sizes = [2, 32], strides = [1, 1]} : vector<2x128xf32> to vector<2x32xf32>
    %81 = arith.mulf %78, %57 : vector<2x32xf32>
    %82 = arith.mulf %77, %79 : vector<2x32xf32>
    %83 = arith.addf %81, %82 : vector<2x32xf32>
    %84 = math.tanh %83 : vector<2x32xf32>
    %85 = arith.mulf %80, %84 : vector<2x32xf32>
    %c4 = arith.constant 4 : index
    %c0_22 = arith.constant 0 : index
    %86 = vector.load %arg15[%c4, %c0_22] : memref<16x32xf32, #tpu.memory_space<vmem>>, vector<2x32xf32>
    tpu.vector_store %arg15[%c4, %c0_22], %85 {strides = array<i32>} : memref<16x32xf32, #tpu.memory_space<vmem>>, vector<2x32xf32>,
    %87 = vector.extract_strided_slice %6 {offsets = [6, 0], sizes = [2, 128], strides = [1, 1]} : vector<16x128xf32> to vector<2x128xf32>
    %cst_23 = arith.constant dense<0.000000e+00> : vector<2x128xf32>
    %88 = tpu.matmul %85, %1, %cst_23 {dimension_numbers = #tpu.dot_dimension_numbers<[1], [0], [0], [1], [0, 0, 1, 1], [], []>} : vector<2x32xf32>, vector<32x128xf32>, vector<2x128xf32> -> vector<2x128xf32>
    %89 = arith.addf %87, %88 : vector<2x128xf32>
    %90 = tpu.iota {dimensions = array<i32: 1>} : vector<2x128xi32>
    %c64_i32_24 = arith.constant 64 : i32
    %91 = vector.broadcast %c64_i32_24 : i32 to vector<2x128xi32>
    %92 = arith.cmpi sge, %90, %91 : vector<2x128xi32>
    %c96_i32_25 = arith.constant 96 : i32
    %93 = vector.broadcast %c96_i32_25 : i32 to vector<2x128xi32>
    %94 = arith.cmpi slt, %90, %93 : vector<2x128xi32>
    %95 = arith.andi %92, %94 : vector<2x128xi1>
    %96 = math.tanh %89 : vector<2x128xf32>
    %97 = arith.negf %89 : vector<2x128xf32>
    %98 = math.exp %97 : vector<2x128xf32>
    %cst_26 = arith.constant 1.000000e+00 : f32
    %99 = vector.broadcast %cst_26 : f32 to vector<2x128xf32>
    %100 = arith.addf %99, %98 : vector<2x128xf32>
    %101 = arith.divf %99, %100 : vector<2x128xf32>
    %102 = arith.select %95, %96, %101 : vector<2x128xi1>, vector<2x128xf32>
    %103 = vector.extract_strided_slice %102 {offsets = [0, 0], sizes = [2, 32], strides = [1, 1]} : vector<2x128xf32> to vector<2x32xf32>
    %104 = vector.extract_strided_slice %102 {offsets = [0, 32], sizes = [2, 32], strides = [1, 1]} : vector<2x128xf32> to vector<2x32xf32>
    %105 = vector.extract_strided_slice %102 {offsets = [0, 64], sizes = [2, 32], strides = [1, 1]} : vector<2x128xf32> to vector<2x32xf32>
    %106 = vector.extract_strided_slice %102 {offsets = [0, 96], sizes = [2, 32], strides = [1, 1]} : vector<2x128xf32> to vector<2x32xf32>
    %107 = arith.mulf %104, %83 : vector<2x32xf32>
    %108 = arith.mulf %103, %105 : vector<2x32xf32>
    %109 = arith.addf %107, %108 : vector<2x32xf32>
    %110 = math.tanh %109 : vector<2x32xf32>
    %111 = arith.mulf %106, %110 : vector<2x32xf32>
    %c6 = arith.constant 6 : index
    %c0_27 = arith.constant 0 : index
    %112 = vector.load %arg15[%c6, %c0_27] : memref<16x32xf32, #tpu.memory_space<vmem>>, vector<2x32xf32>
    tpu.vector_store %arg15[%c6, %c0_27], %111 {strides = array<i32>} : memref<16x32xf32, #tpu.memory_space<vmem>>, vector<2x32xf32>,
    %113 = vector.extract_strided_slice %6 {offsets = [8, 0], sizes = [2, 128], strides = [1, 1]} : vector<16x128xf32> to vector<2x128xf32>
    %cst_28 = arith.constant dense<0.000000e+00> : vector<2x128xf32>
    %114 = tpu.matmul %111, %1, %cst_28 {dimension_numbers = #tpu.dot_dimension_numbers<[1], [0], [0], [1], [0, 0, 1, 1], [], []>} : vector<2x32xf32>, vector<32x128xf32>, vector<2x128xf32> -> vector<2x128xf32>
    %115 = arith.addf %113, %114 : vector<2x128xf32>
    %116 = tpu.iota {dimensions = array<i32: 1>} : vector<2x128xi32>
    %c64_i32_29 = arith.constant 64 : i32
    %117 = vector.broadcast %c64_i32_29 : i32 to vector<2x128xi32>
    %118 = arith.cmpi sge, %116, %117 : vector<2x128xi32>
    %c96_i32_30 = arith.constant 96 : i32
    %119 = vector.broadcast %c96_i32_30 : i32 to vector<2x128xi32>
    %120 = arith.cmpi slt, %116, %119 : vector<2x128xi32>
    %121 = arith.andi %118, %120 : vector<2x128xi1>
    %122 = math.tanh %115 : vector<2x128xf32>
    %123 = arith.negf %115 : vector<2x128xf32>
    %124 = math.exp %123 : vector<2x128xf32>
    %cst_31 = arith.constant 1.000000e+00 : f32
    %125 = vector.broadcast %cst_31 : f32 to vector<2x128xf32>
    %126 = arith.addf %125, %124 : vector<2x128xf32>
    %127 = arith.divf %125, %126 : vector<2x128xf32>
    %128 = arith.select %121, %122, %127 : vector<2x128xi1>, vector<2x128xf32>
    %129 = vector.extract_strided_slice %128 {offsets = [0, 0], sizes = [2, 32], strides = [1, 1]} : vector<2x128xf32> to vector<2x32xf32>
    %130 = vector.extract_strided_slice %128 {offsets = [0, 32], sizes = [2, 32], strides = [1, 1]} : vector<2x128xf32> to vector<2x32xf32>
    %131 = vector.extract_strided_slice %128 {offsets = [0, 64], sizes = [2, 32], strides = [1, 1]} : vector<2x128xf32> to vector<2x32xf32>
    %132 = vector.extract_strided_slice %128 {offsets = [0, 96], sizes = [2, 32], strides = [1, 1]} : vector<2x128xf32> to vector<2x32xf32>
    %133 = arith.mulf %130, %109 : vector<2x32xf32>
    %134 = arith.mulf %129, %131 : vector<2x32xf32>
    %135 = arith.addf %133, %134 : vector<2x32xf32>
    %136 = math.tanh %135 : vector<2x32xf32>
    %137 = arith.mulf %132, %136 : vector<2x32xf32>
    %c8 = arith.constant 8 : index
    %c0_32 = arith.constant 0 : index
    %138 = vector.load %arg15[%c8, %c0_32] : memref<16x32xf32, #tpu.memory_space<vmem>>, vector<2x32xf32>
    tpu.vector_store %arg15[%c8, %c0_32], %137 {strides = array<i32>} : memref<16x32xf32, #tpu.memory_space<vmem>>, vector<2x32xf32>,
    %139 = vector.extract_strided_slice %6 {offsets = [10, 0], sizes = [2, 128], strides = [1, 1]} : vector<16x128xf32> to vector<2x128xf32>
    %cst_33 = arith.constant dense<0.000000e+00> : vector<2x128xf32>
    %140 = tpu.matmul %137, %1, %cst_33 {dimension_numbers = #tpu.dot_dimension_numbers<[1], [0], [0], [1], [0, 0, 1, 1], [], []>} : vector<2x32xf32>, vector<32x128xf32>, vector<2x128xf32> -> vector<2x128xf32>
    %141 = arith.addf %139, %140 : vector<2x128xf32>
    %142 = tpu.iota {dimensions = array<i32: 1>} : vector<2x128xi32>
    %c64_i32_34 = arith.constant 64 : i32
    %143 = vector.broadcast %c64_i32_34 : i32 to vector<2x128xi32>
    %144 = arith.cmpi sge, %142, %143 : vector<2x128xi32>
    %c96_i32_35 = arith.constant 96 : i32
    %145 = vector.broadcast %c96_i32_35 : i32 to vector<2x128xi32>
    %146 = arith.cmpi slt, %142, %145 : vector<2x128xi32>
    %147 = arith.andi %144, %146 : vector<2x128xi1>
    %148 = math.tanh %141 : vector<2x128xf32>
    %149 = arith.negf %141 : vector<2x128xf32>
    %150 = math.exp %149 : vector<2x128xf32>
    %cst_36 = arith.constant 1.000000e+00 : f32
    %151 = vector.broadcast %cst_36 : f32 to vector<2x128xf32>
    %152 = arith.addf %151, %150 : vector<2x128xf32>
    %153 = arith.divf %151, %152 : vector<2x128xf32>
    %154 = arith.select %147, %148, %153 : vector<2x128xi1>, vector<2x128xf32>
    %155 = vector.extract_strided_slice %154 {offsets = [0, 0], sizes = [2, 32], strides = [1, 1]} : vector<2x128xf32> to vector<2x32xf32>
    %156 = vector.extract_strided_slice %154 {offsets = [0, 32], sizes = [2, 32], strides = [1, 1]} : vector<2x128xf32> to vector<2x32xf32>
    %157 = vector.extract_strided_slice %154 {offsets = [0, 64], sizes = [2, 32], strides = [1, 1]} : vector<2x128xf32> to vector<2x32xf32>
    %158 = vector.extract_strided_slice %154 {offsets = [0, 96], sizes = [2, 32], strides = [1, 1]} : vector<2x128xf32> to vector<2x32xf32>
    %159 = arith.mulf %156, %135 : vector<2x32xf32>
    %160 = arith.mulf %155, %157 : vector<2x32xf32>
    %161 = arith.addf %159, %160 : vector<2x32xf32>
    %162 = math.tanh %161 : vector<2x32xf32>
    %163 = arith.mulf %158, %162 : vector<2x32xf32>
    %c10 = arith.constant 10 : index
    %c0_37 = arith.constant 0 : index
    %164 = vector.load %arg15[%c10, %c0_37] : memref<16x32xf32, #tpu.memory_space<vmem>>, vector<2x32xf32>
    tpu.vector_store %arg15[%c10, %c0_37], %163 {strides = array<i32>} : memref<16x32xf32, #tpu.memory_space<vmem>>, vector<2x32xf32>,
    %165 = vector.extract_strided_slice %6 {offsets = [12, 0], sizes = [2, 128], strides = [1, 1]} : vector<16x128xf32> to vector<2x128xf32>
    %cst_38 = arith.constant dense<0.000000e+00> : vector<2x128xf32>
    %166 = tpu.matmul %163, %1, %cst_38 {dimension_numbers = #tpu.dot_dimension_numbers<[1], [0], [0], [1], [0, 0, 1, 1], [], []>} : vector<2x32xf32>, vector<32x128xf32>, vector<2x128xf32> -> vector<2x128xf32>
    %167 = arith.addf %165, %166 : vector<2x128xf32>
    %168 = tpu.iota {dimensions = array<i32: 1>} : vector<2x128xi32>
    %c64_i32_39 = arith.constant 64 : i32
    %169 = vector.broadcast %c64_i32_39 : i32 to vector<2x128xi32>
    %170 = arith.cmpi sge, %168, %169 : vector<2x128xi32>
    %c96_i32_40 = arith.constant 96 : i32
    %171 = vector.broadcast %c96_i32_40 : i32 to vector<2x128xi32>
    %172 = arith.cmpi slt, %168, %171 : vector<2x128xi32>
    %173 = arith.andi %170, %172 : vector<2x128xi1>
    %174 = math.tanh %167 : vector<2x128xf32>
    %175 = arith.negf %167 : vector<2x128xf32>
    %176 = math.exp %175 : vector<2x128xf32>
    %cst_41 = arith.constant 1.000000e+00 : f32
    %177 = vector.broadcast %cst_41 : f32 to vector<2x128xf32>
    %178 = arith.addf %177, %176 : vector<2x128xf32>
    %179 = arith.divf %177, %178 : vector<2x128xf32>
    %180 = arith.select %173, %174, %179 : vector<2x128xi1>, vector<2x128xf32>
    %181 = vector.extract_strided_slice %180 {offsets = [0, 0], sizes = [2, 32], strides = [1, 1]} : vector<2x128xf32> to vector<2x32xf32>
    %182 = vector.extract_strided_slice %180 {offsets = [0, 32], sizes = [2, 32], strides = [1, 1]} : vector<2x128xf32> to vector<2x32xf32>
    %183 = vector.extract_strided_slice %180 {offsets = [0, 64], sizes = [2, 32], strides = [1, 1]} : vector<2x128xf32> to vector<2x32xf32>
    %184 = vector.extract_strided_slice %180 {offsets = [0, 96], sizes = [2, 32], strides = [1, 1]} : vector<2x128xf32> to vector<2x32xf32>
    %185 = arith.mulf %182, %161 : vector<2x32xf32>
    %186 = arith.mulf %181, %183 : vector<2x32xf32>
    %187 = arith.addf %185, %186 : vector<2x32xf32>
    %188 = math.tanh %187 : vector<2x32xf32>
    %189 = arith.mulf %184, %188 : vector<2x32xf32>
    %c12 = arith.constant 12 : index
    %c0_42 = arith.constant 0 : index
    %190 = vector.load %arg15[%c12, %c0_42] : memref<16x32xf32, #tpu.memory_space<vmem>>, vector<2x32xf32>
    tpu.vector_store %arg15[%c12, %c0_42], %189 {strides = array<i32>} : memref<16x32xf32, #tpu.memory_space<vmem>>, vector<2x32xf32>,
    %191 = vector.extract_strided_slice %6 {offsets = [14, 0], sizes = [2, 128], strides = [1, 1]} : vector<16x128xf32> to vector<2x128xf32>
    %cst_43 = arith.constant dense<0.000000e+00> : vector<2x128xf32>
    %192 = tpu.matmul %189, %1, %cst_43 {dimension_numbers = #tpu.dot_dimension_numbers<[1], [0], [0], [1], [0, 0, 1, 1], [], []>} : vector<2x32xf32>, vector<32x128xf32>, vector<2x128xf32> -> vector<2x128xf32>
    %193 = arith.addf %191, %192 : vector<2x128xf32>
    %194 = tpu.iota {dimensions = array<i32: 1>} : vector<2x128xi32>
    %c64_i32_44 = arith.constant 64 : i32
    %195 = vector.broadcast %c64_i32_44 : i32 to vector<2x128xi32>
    %196 = arith.cmpi sge, %194, %195 : vector<2x128xi32>
    %c96_i32_45 = arith.constant 96 : i32
    %197 = vector.broadcast %c96_i32_45 : i32 to vector<2x128xi32>
    %198 = arith.cmpi slt, %194, %197 : vector<2x128xi32>
    %199 = arith.andi %196, %198 : vector<2x128xi1>
    %200 = math.tanh %193 : vector<2x128xf32>
    %201 = arith.negf %193 : vector<2x128xf32>
    %202 = math.exp %201 : vector<2x128xf32>
    %cst_46 = arith.constant 1.000000e+00 : f32
    %203 = vector.broadcast %cst_46 : f32 to vector<2x128xf32>
    %204 = arith.addf %203, %202 : vector<2x128xf32>
    %205 = arith.divf %203, %204 : vector<2x128xf32>
    %206 = arith.select %199, %200, %205 : vector<2x128xi1>, vector<2x128xf32>
    %207 = vector.extract_strided_slice %206 {offsets = [0, 0], sizes = [2, 32], strides = [1, 1]} : vector<2x128xf32> to vector<2x32xf32>
    %208 = vector.extract_strided_slice %206 {offsets = [0, 32], sizes = [2, 32], strides = [1, 1]} : vector<2x128xf32> to vector<2x32xf32>
    %209 = vector.extract_strided_slice %206 {offsets = [0, 64], sizes = [2, 32], strides = [1, 1]} : vector<2x128xf32> to vector<2x32xf32>
    %210 = vector.extract_strided_slice %206 {offsets = [0, 96], sizes = [2, 32], strides = [1, 1]} : vector<2x128xf32> to vector<2x32xf32>
    %211 = arith.mulf %208, %187 : vector<2x32xf32>
    %212 = arith.mulf %207, %209 : vector<2x32xf32>
    %213 = arith.addf %211, %212 : vector<2x32xf32>
    %214 = math.tanh %213 : vector<2x32xf32>
    %215 = arith.mulf %210, %214 : vector<2x32xf32>
    %c14 = arith.constant 14 : index
    %c0_47 = arith.constant 0 : index
    %216 = vector.load %arg15[%c14, %c0_47] : memref<16x32xf32, #tpu.memory_space<vmem>>, vector<2x32xf32>
    tpu.vector_store %arg15[%c14, %c0_47], %215 {strides = array<i32>} : memref<16x32xf32, #tpu.memory_space<vmem>>, vector<2x32xf32>,
    %c0_48 = arith.constant 0 : index
    %c0_49 = arith.constant 0 : index
    %c0_50 = arith.constant 0 : index
    %217 = vector.load %arg13[%c0_48, %c0_49, %c0_50] : memref<3x2x32xf32, #tpu.memory_space<vmem>>, vector<1x2x32xf32>
    %218 = vector.shape_cast %217 : vector<1x2x32xf32> to vector<2x32xf32>
    %219 = vector.shape_cast %215 : vector<2x32xf32> to vector<1x2x32xf32>
    tpu.vector_store %arg13[%c0_48, %c0_49, %c0_50], %219 {strides = array<i32>} : memref<3x2x32xf32, #tpu.memory_space<vmem>>, vector<1x2x32xf32>,
    %c0_51 = arith.constant 0 : index
    %c0_52 = arith.constant 0 : index
    %c0_53 = arith.constant 0 : index
    %220 = vector.load %arg14[%c0_51, %c0_52, %c0_53] : memref<3x2x32xf32, #tpu.memory_space<vmem>>, vector<1x2x32xf32>
    %221 = vector.shape_cast %220 : vector<1x2x32xf32> to vector<2x32xf32>
    %222 = vector.shape_cast %213 : vector<2x32xf32> to vector<1x2x32xf32>
    tpu.vector_store %arg14[%c0_51, %c0_52, %c0_53], %222 {strides = array<i32>} : memref<3x2x32xf32, #tpu.memory_space<vmem>>, vector<1x2x32xf32>,
    %c0_54 = arith.constant 0 : index
    %c0_55 = arith.constant 0 : index
    %223 = vector.load %arg15[%c0_54, %c0_55] : memref<16x32xf32, #tpu.memory_space<vmem>>, vector<16x32xf32>
    %c0_56 = arith.constant 0 : index
    %c0_57 = arith.constant 0 : index
    %224 = vector.load %arg5[%c0_56, %c0_57] : memref<32x128xf32, #tpu.memory_space<vmem>>, vector<32x128xf32>
    %c0_58 = arith.constant 0 : index
    %c0_59 = arith.constant 0 : index
    %225 = vector.load %arg4[%c0_58, %c0_59] : memref<32x128xf32, #tpu.memory_space<vmem>>, vector<32x128xf32>
    %cst_60 = arith.constant dense<0.000000e+00> : vector<16x128xf32>
    %226 = tpu.matmul %223, %225, %cst_60 {dimension_numbers = #tpu.dot_dimension_numbers<[1], [0], [0], [1], [0, 0, 1, 1], [], []>} : vector<16x32xf32>, vector<32x128xf32>, vector<16x128xf32> -> vector<16x128xf32>
    %c0_61 = arith.constant 0 : index
    %c0_62 = arith.constant 0 : index
    %227 = vector.load %arg6[%c0_61, %c0_62] : memref<1x128xf32, #tpu.memory_space<vmem>>, vector<1x128xf32>
    %228 = vector.broadcast %227 : vector<1x128xf32> to vector<16x128xf32>
    %229 = arith.addf %226, %228 : vector<16x128xf32>
    %cst_63 = arith.constant 0.000000e+00 : f32
    %230 = vector.broadcast %cst_63 : f32 to vector<2x32xf32>
    %cst_64 = arith.constant 0.000000e+00 : f32
    %231 = vector.broadcast %cst_64 : f32 to vector<2x32xf32>
    %232 = vector.extract_strided_slice %229 {offsets = [0, 0], sizes = [2, 128], strides = [1, 1]} : vector<16x128xf32> to vector<2x128xf32>
    %cst_65 = arith.constant dense<0.000000e+00> : vector<2x128xf32>
    %233 = tpu.matmul %230, %224, %cst_65 {dimension_numbers = #tpu.dot_dimension_numbers<[1], [0], [0], [1], [0, 0, 1, 1], [], []>} : vector<2x32xf32>, vector<32x128xf32>, vector<2x128xf32> -> vector<2x128xf32>
    %234 = arith.addf %232, %233 : vector<2x128xf32>
    %235 = tpu.iota {dimensions = array<i32: 1>} : vector<2x128xi32>
    %c64_i32_66 = arith.constant 64 : i32
    %236 = vector.broadcast %c64_i32_66 : i32 to vector<2x128xi32>
    %237 = arith.cmpi sge, %235, %236 : vector<2x128xi32>
    %c96_i32_67 = arith.constant 96 : i32
    %238 = vector.broadcast %c96_i32_67 : i32 to vector<2x128xi32>
    %239 = arith.cmpi slt, %235, %238 : vector<2x128xi32>
    %240 = arith.andi %237, %239 : vector<2x128xi1>
    %241 = math.tanh %234 : vector<2x128xf32>
    %242 = arith.negf %234 : vector<2x128xf32>
    %243 = math.exp %242 : vector<2x128xf32>
    %cst_68 = arith.constant 1.000000e+00 : f32
    %244 = vector.broadcast %cst_68 : f32 to vector<2x128xf32>
    %245 = arith.addf %244, %243 : vector<2x128xf32>
    %246 = arith.divf %244, %245 : vector<2x128xf32>
    %247 = arith.select %240, %241, %246 : vector<2x128xi1>, vector<2x128xf32>
    %248 = vector.extract_strided_slice %247 {offsets = [0, 0], sizes = [2, 32], strides = [1, 1]} : vector<2x128xf32> to vector<2x32xf32>
    %249 = vector.extract_strided_slice %247 {offsets = [0, 32], sizes = [2, 32], strides = [1, 1]} : vector<2x128xf32> to vector<2x32xf32>
    %250 = vector.extract_strided_slice %247 {offsets = [0, 64], sizes = [2, 32], strides = [1, 1]} : vector<2x128xf32> to vector<2x32xf32>
    %251 = vector.extract_strided_slice %247 {offsets = [0, 96], sizes = [2, 32], strides = [1, 1]} : vector<2x128xf32> to vector<2x32xf32>
    %252 = arith.mulf %249, %231 : vector<2x32xf32>
    %253 = arith.mulf %248, %250 : vector<2x32xf32>
    %254 = arith.addf %252, %253 : vector<2x32xf32>
    %255 = math.tanh %254 : vector<2x32xf32>
    %256 = arith.mulf %251, %255 : vector<2x32xf32>
    %c0_69 = arith.constant 0 : index
    %c0_70 = arith.constant 0 : index
    %257 = vector.load %arg15[%c0_69, %c0_70] : memref<16x32xf32, #tpu.memory_space<vmem>>, vector<2x32xf32>
    tpu.vector_store %arg15[%c0_69, %c0_70], %256 {strides = array<i32>} : memref<16x32xf32, #tpu.memory_space<vmem>>, vector<2x32xf32>,
    %258 = vector.extract_strided_slice %229 {offsets = [2, 0], sizes = [2, 128], strides = [1, 1]} : vector<16x128xf32> to vector<2x128xf32>
    %cst_71 = arith.constant dense<0.000000e+00> : vector<2x128xf32>
    %259 = tpu.matmul %256, %224, %cst_71 {dimension_numbers = #tpu.dot_dimension_numbers<[1], [0], [0], [1], [0, 0, 1, 1], [], []>} : vector<2x32xf32>, vector<32x128xf32>, vector<2x128xf32> -> vector<2x128xf32>
    %260 = arith.addf %258, %259 : vector<2x128xf32>
    %261 = tpu.iota {dimensions = array<i32: 1>} : vector<2x128xi32>
    %c64_i32_72 = arith.constant 64 : i32
    %262 = vector.broadcast %c64_i32_72 : i32 to vector<2x128xi32>
    %263 = arith.cmpi sge, %261, %262 : vector<2x128xi32>
    %c96_i32_73 = arith.constant 96 : i32
    %264 = vector.broadcast %c96_i32_73 : i32 to vector<2x128xi32>
    %265 = arith.cmpi slt, %261, %264 : vector<2x128xi32>
    %266 = arith.andi %263, %265 : vector<2x128xi1>
    %267 = math.tanh %260 : vector<2x128xf32>
    %268 = arith.negf %260 : vector<2x128xf32>
    %269 = math.exp %268 : vector<2x128xf32>
    %cst_74 = arith.constant 1.000000e+00 : f32
    %270 = vector.broadcast %cst_74 : f32 to vector<2x128xf32>
    %271 = arith.addf %270, %269 : vector<2x128xf32>
    %272 = arith.divf %270, %271 : vector<2x128xf32>
    %273 = arith.select %266, %267, %272 : vector<2x128xi1>, vector<2x128xf32>
    %274 = vector.extract_strided_slice %273 {offsets = [0, 0], sizes = [2, 32], strides = [1, 1]} : vector<2x128xf32> to vector<2x32xf32>
    %275 = vector.extract_strided_slice %273 {offsets = [0, 32], sizes = [2, 32], strides = [1, 1]} : vector<2x128xf32> to vector<2x32xf32>
    %276 = vector.extract_strided_slice %273 {offsets = [0, 64], sizes = [2, 32], strides = [1, 1]} : vector<2x128xf32> to vector<2x32xf32>
    %277 = vector.extract_strided_slice %273 {offsets = [0, 96], sizes = [2, 32], strides = [1, 1]} : vector<2x128xf32> to vector<2x32xf32>
    %278 = arith.mulf %275, %254 : vector<2x32xf32>
    %279 = arith.mulf %274, %276 : vector<2x32xf32>
    %280 = arith.addf %278, %279 : vector<2x32xf32>
    %281 = math.tanh %280 : vector<2x32xf32>
    %282 = arith.mulf %277, %281 : vector<2x32xf32>
    %c2_75 = arith.constant 2 : index
    %c0_76 = arith.constant 0 : index
    %283 = vector.load %arg15[%c2_75, %c0_76] : memref<16x32xf32, #tpu.memory_space<vmem>>, vector<2x32xf32>
    tpu.vector_store %arg15[%c2_75, %c0_76], %282 {strides = array<i32>} : memref<16x32xf32, #tpu.memory_space<vmem>>, vector<2x32xf32>,
    %284 = vector.extract_strided_slice %229 {offsets = [4, 0], sizes = [2, 128], strides = [1, 1]} : vector<16x128xf32> to vector<2x128xf32>
    %cst_77 = arith.constant dense<0.000000e+00> : vector<2x128xf32>
    %285 = tpu.matmul %282, %224, %cst_77 {dimension_numbers = #tpu.dot_dimension_numbers<[1], [0], [0], [1], [0, 0, 1, 1], [], []>} : vector<2x32xf32>, vector<32x128xf32>, vector<2x128xf32> -> vector<2x128xf32>
    %286 = arith.addf %284, %285 : vector<2x128xf32>
    %287 = tpu.iota {dimensions = array<i32: 1>} : vector<2x128xi32>
    %c64_i32_78 = arith.constant 64 : i32
    %288 = vector.broadcast %c64_i32_78 : i32 to vector<2x128xi32>
    %289 = arith.cmpi sge, %287, %288 : vector<2x128xi32>
    %c96_i32_79 = arith.constant 96 : i32
    %290 = vector.broadcast %c96_i32_79 : i32 to vector<2x128xi32>
    %291 = arith.cmpi slt, %287, %290 : vector<2x128xi32>
    %292 = arith.andi %289, %291 : vector<2x128xi1>
    %293 = math.tanh %286 : vector<2x128xf32>
    %294 = arith.negf %286 : vector<2x128xf32>
    %295 = math.exp %294 : vector<2x128xf32>
    %cst_80 = arith.constant 1.000000e+00 : f32
    %296 = vector.broadcast %cst_80 : f32 to vector<2x128xf32>
    %297 = arith.addf %296, %295 : vector<2x128xf32>
    %298 = arith.divf %296, %297 : vector<2x128xf32>
    %299 = arith.select %292, %293, %298 : vector<2x128xi1>, vector<2x128xf32>
    %300 = vector.extract_strided_slice %299 {offsets = [0, 0], sizes = [2, 32], strides = [1, 1]} : vector<2x128xf32> to vector<2x32xf32>
    %301 = vector.extract_strided_slice %299 {offsets = [0, 32], sizes = [2, 32], strides = [1, 1]} : vector<2x128xf32> to vector<2x32xf32>
    %302 = vector.extract_strided_slice %299 {offsets = [0, 64], sizes = [2, 32], strides = [1, 1]} : vector<2x128xf32> to vector<2x32xf32>
    %303 = vector.extract_strided_slice %299 {offsets = [0, 96], sizes = [2, 32], strides = [1, 1]} : vector<2x128xf32> to vector<2x32xf32>
    %304 = arith.mulf %301, %280 : vector<2x32xf32>
    %305 = arith.mulf %300, %302 : vector<2x32xf32>
    %306 = arith.addf %304, %305 : vector<2x32xf32>
    %307 = math.tanh %306 : vector<2x32xf32>
    %308 = arith.mulf %303, %307 : vector<2x32xf32>
    %c4_81 = arith.constant 4 : index
    %c0_82 = arith.constant 0 : index
    %309 = vector.load %arg15[%c4_81, %c0_82] : memref<16x32xf32, #tpu.memory_space<vmem>>, vector<2x32xf32>
    tpu.vector_store %arg15[%c4_81, %c0_82], %308 {strides = array<i32>} : memref<16x32xf32, #tpu.memory_space<vmem>>, vector<2x32xf32>,
    %310 = vector.extract_strided_slice %229 {offsets = [6, 0], sizes = [2, 128], strides = [1, 1]} : vector<16x128xf32> to vector<2x128xf32>
    %cst_83 = arith.constant dense<0.000000e+00> : vector<2x128xf32>
    %311 = tpu.matmul %308, %224, %cst_83 {dimension_numbers = #tpu.dot_dimension_numbers<[1], [0], [0], [1], [0, 0, 1, 1], [], []>} : vector<2x32xf32>, vector<32x128xf32>, vector<2x128xf32> -> vector<2x128xf32>
    %312 = arith.addf %310, %311 : vector<2x128xf32>
    %313 = tpu.iota {dimensions = array<i32: 1>} : vector<2x128xi32>
    %c64_i32_84 = arith.constant 64 : i32
    %314 = vector.broadcast %c64_i32_84 : i32 to vector<2x128xi32>
    %315 = arith.cmpi sge, %313, %314 : vector<2x128xi32>
    %c96_i32_85 = arith.constant 96 : i32
    %316 = vector.broadcast %c96_i32_85 : i32 to vector<2x128xi32>
    %317 = arith.cmpi slt, %313, %316 : vector<2x128xi32>
    %318 = arith.andi %315, %317 : vector<2x128xi1>
    %319 = math.tanh %312 : vector<2x128xf32>
    %320 = arith.negf %312 : vector<2x128xf32>
    %321 = math.exp %320 : vector<2x128xf32>
    %cst_86 = arith.constant 1.000000e+00 : f32
    %322 = vector.broadcast %cst_86 : f32 to vector<2x128xf32>
    %323 = arith.addf %322, %321 : vector<2x128xf32>
    %324 = arith.divf %322, %323 : vector<2x128xf32>
    %325 = arith.select %318, %319, %324 : vector<2x128xi1>, vector<2x128xf32>
    %326 = vector.extract_strided_slice %325 {offsets = [0, 0], sizes = [2, 32], strides = [1, 1]} : vector<2x128xf32> to vector<2x32xf32>
    %327 = vector.extract_strided_slice %325 {offsets = [0, 32], sizes = [2, 32], strides = [1, 1]} : vector<2x128xf32> to vector<2x32xf32>
    %328 = vector.extract_strided_slice %325 {offsets = [0, 64], sizes = [2, 32], strides = [1, 1]} : vector<2x128xf32> to vector<2x32xf32>
    %329 = vector.extract_strided_slice %325 {offsets = [0, 96], sizes = [2, 32], strides = [1, 1]} : vector<2x128xf32> to vector<2x32xf32>
    %330 = arith.mulf %327, %306 : vector<2x32xf32>
    %331 = arith.mulf %326, %328 : vector<2x32xf32>
    %332 = arith.addf %330, %331 : vector<2x32xf32>
    %333 = math.tanh %332 : vector<2x32xf32>
    %334 = arith.mulf %329, %333 : vector<2x32xf32>
    %c6_87 = arith.constant 6 : index
    %c0_88 = arith.constant 0 : index
    %335 = vector.load %arg15[%c6_87, %c0_88] : memref<16x32xf32, #tpu.memory_space<vmem>>, vector<2x32xf32>
    tpu.vector_store %arg15[%c6_87, %c0_88], %334 {strides = array<i32>} : memref<16x32xf32, #tpu.memory_space<vmem>>, vector<2x32xf32>,
    %336 = vector.extract_strided_slice %229 {offsets = [8, 0], sizes = [2, 128], strides = [1, 1]} : vector<16x128xf32> to vector<2x128xf32>
    %cst_89 = arith.constant dense<0.000000e+00> : vector<2x128xf32>
    %337 = tpu.matmul %334, %224, %cst_89 {dimension_numbers = #tpu.dot_dimension_numbers<[1], [0], [0], [1], [0, 0, 1, 1], [], []>} : vector<2x32xf32>, vector<32x128xf32>, vector<2x128xf32> -> vector<2x128xf32>
    %338 = arith.addf %336, %337 : vector<2x128xf32>
    %339 = tpu.iota {dimensions = array<i32: 1>} : vector<2x128xi32>
    %c64_i32_90 = arith.constant 64 : i32
    %340 = vector.broadcast %c64_i32_90 : i32 to vector<2x128xi32>
    %341 = arith.cmpi sge, %339, %340 : vector<2x128xi32>
    %c96_i32_91 = arith.constant 96 : i32
    %342 = vector.broadcast %c96_i32_91 : i32 to vector<2x128xi32>
    %343 = arith.cmpi slt, %339, %342 : vector<2x128xi32>
    %344 = arith.andi %341, %343 : vector<2x128xi1>
    %345 = math.tanh %338 : vector<2x128xf32>
    %346 = arith.negf %338 : vector<2x128xf32>
    %347 = math.exp %346 : vector<2x128xf32>
    %cst_92 = arith.constant 1.000000e+00 : f32
    %348 = vector.broadcast %cst_92 : f32 to vector<2x128xf32>
    %349 = arith.addf %348, %347 : vector<2x128xf32>
    %350 = arith.divf %348, %349 : vector<2x128xf32>
    %351 = arith.select %344, %345, %350 : vector<2x128xi1>, vector<2x128xf32>
    %352 = vector.extract_strided_slice %351 {offsets = [0, 0], sizes = [2, 32], strides = [1, 1]} : vector<2x128xf32> to vector<2x32xf32>
    %353 = vector.extract_strided_slice %351 {offsets = [0, 32], sizes = [2, 32], strides = [1, 1]} : vector<2x128xf32> to vector<2x32xf32>
    %354 = vector.extract_strided_slice %351 {offsets = [0, 64], sizes = [2, 32], strides = [1, 1]} : vector<2x128xf32> to vector<2x32xf32>
    %355 = vector.extract_strided_slice %351 {offsets = [0, 96], sizes = [2, 32], strides = [1, 1]} : vector<2x128xf32> to vector<2x32xf32>
    %356 = arith.mulf %353, %332 : vector<2x32xf32>
    %357 = arith.mulf %352, %354 : vector<2x32xf32>
    %358 = arith.addf %356, %357 : vector<2x32xf32>
    %359 = math.tanh %358 : vector<2x32xf32>
    %360 = arith.mulf %355, %359 : vector<2x32xf32>
    %c8_93 = arith.constant 8 : index
    %c0_94 = arith.constant 0 : index
    %361 = vector.load %arg15[%c8_93, %c0_94] : memref<16x32xf32, #tpu.memory_space<vmem>>, vector<2x32xf32>
    tpu.vector_store %arg15[%c8_93, %c0_94], %360 {strides = array<i32>} : memref<16x32xf32, #tpu.memory_space<vmem>>, vector<2x32xf32>,
    %362 = vector.extract_strided_slice %229 {offsets = [10, 0], sizes = [2, 128], strides = [1, 1]} : vector<16x128xf32> to vector<2x128xf32>
    %cst_95 = arith.constant dense<0.000000e+00> : vector<2x128xf32>
    %363 = tpu.matmul %360, %224, %cst_95 {dimension_numbers = #tpu.dot_dimension_numbers<[1], [0], [0], [1], [0, 0, 1, 1], [], []>} : vector<2x32xf32>, vector<32x128xf32>, vector<2x128xf32> -> vector<2x128xf32>
    %364 = arith.addf %362, %363 : vector<2x128xf32>
    %365 = tpu.iota {dimensions = array<i32: 1>} : vector<2x128xi32>
    %c64_i32_96 = arith.constant 64 : i32
    %366 = vector.broadcast %c64_i32_96 : i32 to vector<2x128xi32>
    %367 = arith.cmpi sge, %365, %366 : vector<2x128xi32>
    %c96_i32_97 = arith.constant 96 : i32
    %368 = vector.broadcast %c96_i32_97 : i32 to vector<2x128xi32>
    %369 = arith.cmpi slt, %365, %368 : vector<2x128xi32>
    %370 = arith.andi %367, %369 : vector<2x128xi1>
    %371 = math.tanh %364 : vector<2x128xf32>
    %372 = arith.negf %364 : vector<2x128xf32>
    %373 = math.exp %372 : vector<2x128xf32>
    %cst_98 = arith.constant 1.000000e+00 : f32
    %374 = vector.broadcast %cst_98 : f32 to vector<2x128xf32>
    %375 = arith.addf %374, %373 : vector<2x128xf32>
    %376 = arith.divf %374, %375 : vector<2x128xf32>
    %377 = arith.select %370, %371, %376 : vector<2x128xi1>, vector<2x128xf32>
    %378 = vector.extract_strided_slice %377 {offsets = [0, 0], sizes = [2, 32], strides = [1, 1]} : vector<2x128xf32> to vector<2x32xf32>
    %379 = vector.extract_strided_slice %377 {offsets = [0, 32], sizes = [2, 32], strides = [1, 1]} : vector<2x128xf32> to vector<2x32xf32>
    %380 = vector.extract_strided_slice %377 {offsets = [0, 64], sizes = [2, 32], strides = [1, 1]} : vector<2x128xf32> to vector<2x32xf32>
    %381 = vector.extract_strided_slice %377 {offsets = [0, 96], sizes = [2, 32], strides = [1, 1]} : vector<2x128xf32> to vector<2x32xf32>
    %382 = arith.mulf %379, %358 : vector<2x32xf32>
    %383 = arith.mulf %378, %380 : vector<2x32xf32>
    %384 = arith.addf %382, %383 : vector<2x32xf32>
    %385 = math.tanh %384 : vector<2x32xf32>
    %386 = arith.mulf %381, %385 : vector<2x32xf32>
    %c10_99 = arith.constant 10 : index
    %c0_100 = arith.constant 0 : index
    %387 = vector.load %arg15[%c10_99, %c0_100] : memref<16x32xf32, #tpu.memory_space<vmem>>, vector<2x32xf32>
    tpu.vector_store %arg15[%c10_99, %c0_100], %386 {strides = array<i32>} : memref<16x32xf32, #tpu.memory_space<vmem>>, vector<2x32xf32>,
    %388 = vector.extract_strided_slice %229 {offsets = [12, 0], sizes = [2, 128], strides = [1, 1]} : vector<16x128xf32> to vector<2x128xf32>
    %cst_101 = arith.constant dense<0.000000e+00> : vector<2x128xf32>
    %389 = tpu.matmul %386, %224, %cst_101 {dimension_numbers = #tpu.dot_dimension_numbers<[1], [0], [0], [1], [0, 0, 1, 1], [], []>} : vector<2x32xf32>, vector<32x128xf32>, vector<2x128xf32> -> vector<2x128xf32>
    %390 = arith.addf %388, %389 : vector<2x128xf32>
    %391 = tpu.iota {dimensions = array<i32: 1>} : vector<2x128xi32>
    %c64_i32_102 = arith.constant 64 : i32
    %392 = vector.broadcast %c64_i32_102 : i32 to vector<2x128xi32>
    %393 = arith.cmpi sge, %391, %392 : vector<2x128xi32>
    %c96_i32_103 = arith.constant 96 : i32
    %394 = vector.broadcast %c96_i32_103 : i32 to vector<2x128xi32>
    %395 = arith.cmpi slt, %391, %394 : vector<2x128xi32>
    %396 = arith.andi %393, %395 : vector<2x128xi1>
    %397 = math.tanh %390 : vector<2x128xf32>
    %398 = arith.negf %390 : vector<2x128xf32>
    %399 = math.exp %398 : vector<2x128xf32>
    %cst_104 = arith.constant 1.000000e+00 : f32
    %400 = vector.broadcast %cst_104 : f32 to vector<2x128xf32>
    %401 = arith.addf %400, %399 : vector<2x128xf32>
    %402 = arith.divf %400, %401 : vector<2x128xf32>
    %403 = arith.select %396, %397, %402 : vector<2x128xi1>, vector<2x128xf32>
    %404 = vector.extract_strided_slice %403 {offsets = [0, 0], sizes = [2, 32], strides = [1, 1]} : vector<2x128xf32> to vector<2x32xf32>
    %405 = vector.extract_strided_slice %403 {offsets = [0, 32], sizes = [2, 32], strides = [1, 1]} : vector<2x128xf32> to vector<2x32xf32>
    %406 = vector.extract_strided_slice %403 {offsets = [0, 64], sizes = [2, 32], strides = [1, 1]} : vector<2x128xf32> to vector<2x32xf32>
    %407 = vector.extract_strided_slice %403 {offsets = [0, 96], sizes = [2, 32], strides = [1, 1]} : vector<2x128xf32> to vector<2x32xf32>
    %408 = arith.mulf %405, %384 : vector<2x32xf32>
    %409 = arith.mulf %404, %406 : vector<2x32xf32>
    %410 = arith.addf %408, %409 : vector<2x32xf32>
    %411 = math.tanh %410 : vector<2x32xf32>
    %412 = arith.mulf %407, %411 : vector<2x32xf32>
    %c12_105 = arith.constant 12 : index
    %c0_106 = arith.constant 0 : index
    %413 = vector.load %arg15[%c12_105, %c0_106] : memref<16x32xf32, #tpu.memory_space<vmem>>, vector<2x32xf32>
    tpu.vector_store %arg15[%c12_105, %c0_106], %412 {strides = array<i32>} : memref<16x32xf32, #tpu.memory_space<vmem>>, vector<2x32xf32>,
    %414 = vector.extract_strided_slice %229 {offsets = [14, 0], sizes = [2, 128], strides = [1, 1]} : vector<16x128xf32> to vector<2x128xf32>
    %cst_107 = arith.constant dense<0.000000e+00> : vector<2x128xf32>
    %415 = tpu.matmul %412, %224, %cst_107 {dimension_numbers = #tpu.dot_dimension_numbers<[1], [0], [0], [1], [0, 0, 1, 1], [], []>} : vector<2x32xf32>, vector<32x128xf32>, vector<2x128xf32> -> vector<2x128xf32>
    %416 = arith.addf %414, %415 : vector<2x128xf32>
    %417 = tpu.iota {dimensions = array<i32: 1>} : vector<2x128xi32>
    %c64_i32_108 = arith.constant 64 : i32
    %418 = vector.broadcast %c64_i32_108 : i32 to vector<2x128xi32>
    %419 = arith.cmpi sge, %417, %418 : vector<2x128xi32>
    %c96_i32_109 = arith.constant 96 : i32
    %420 = vector.broadcast %c96_i32_109 : i32 to vector<2x128xi32>
    %421 = arith.cmpi slt, %417, %420 : vector<2x128xi32>
    %422 = arith.andi %419, %421 : vector<2x128xi1>
    %423 = math.tanh %416 : vector<2x128xf32>
    %424 = arith.negf %416 : vector<2x128xf32>
    %425 = math.exp %424 : vector<2x128xf32>
    %cst_110 = arith.constant 1.000000e+00 : f32
    %426 = vector.broadcast %cst_110 : f32 to vector<2x128xf32>
    %427 = arith.addf %426, %425 : vector<2x128xf32>
    %428 = arith.divf %426, %427 : vector<2x128xf32>
    %429 = arith.select %422, %423, %428 : vector<2x128xi1>, vector<2x128xf32>
    %430 = vector.extract_strided_slice %429 {offsets = [0, 0], sizes = [2, 32], strides = [1, 1]} : vector<2x128xf32> to vector<2x32xf32>
    %431 = vector.extract_strided_slice %429 {offsets = [0, 32], sizes = [2, 32], strides = [1, 1]} : vector<2x128xf32> to vector<2x32xf32>
    %432 = vector.extract_strided_slice %429 {offsets = [0, 64], sizes = [2, 32], strides = [1, 1]} : vector<2x128xf32> to vector<2x32xf32>
    %433 = vector.extract_strided_slice %429 {offsets = [0, 96], sizes = [2, 32], strides = [1, 1]} : vector<2x128xf32> to vector<2x32xf32>
    %434 = arith.mulf %431, %410 : vector<2x32xf32>
    %435 = arith.mulf %430, %432 : vector<2x32xf32>
    %436 = arith.addf %434, %435 : vector<2x32xf32>
    %437 = math.tanh %436 : vector<2x32xf32>
    %438 = arith.mulf %433, %437 : vector<2x32xf32>
    %c14_111 = arith.constant 14 : index
    %c0_112 = arith.constant 0 : index
    %439 = vector.load %arg15[%c14_111, %c0_112] : memref<16x32xf32, #tpu.memory_space<vmem>>, vector<2x32xf32>
    tpu.vector_store %arg15[%c14_111, %c0_112], %438 {strides = array<i32>} : memref<16x32xf32, #tpu.memory_space<vmem>>, vector<2x32xf32>,
    %c1 = arith.constant 1 : index
    %c0_113 = arith.constant 0 : index
    %c0_114 = arith.constant 0 : index
    %440 = vector.load %arg13[%c1, %c0_113, %c0_114] : memref<3x2x32xf32, #tpu.memory_space<vmem>>, vector<1x2x32xf32>
    %441 = vector.shape_cast %440 : vector<1x2x32xf32> to vector<2x32xf32>
    %442 = vector.shape_cast %438 : vector<2x32xf32> to vector<1x2x32xf32>
    tpu.vector_store %arg13[%c1, %c0_113, %c0_114], %442 {strides = array<i32>} : memref<3x2x32xf32, #tpu.memory_space<vmem>>, vector<1x2x32xf32>,
    %c1_115 = arith.constant 1 : index
    %c0_116 = arith.constant 0 : index
    %c0_117 = arith.constant 0 : index
    %443 = vector.load %arg14[%c1_115, %c0_116, %c0_117] : memref<3x2x32xf32, #tpu.memory_space<vmem>>, vector<1x2x32xf32>
    %444 = vector.shape_cast %443 : vector<1x2x32xf32> to vector<2x32xf32>
    %445 = vector.shape_cast %436 : vector<2x32xf32> to vector<1x2x32xf32>
    tpu.vector_store %arg14[%c1_115, %c0_116, %c0_117], %445 {strides = array<i32>} : memref<3x2x32xf32, #tpu.memory_space<vmem>>, vector<1x2x32xf32>,
    %c0_118 = arith.constant 0 : index
    %c0_119 = arith.constant 0 : index
    %446 = vector.load %arg15[%c0_118, %c0_119] : memref<16x32xf32, #tpu.memory_space<vmem>>, vector<16x32xf32>
    %c0_120 = arith.constant 0 : index
    %c0_121 = arith.constant 0 : index
    %447 = vector.load %arg8[%c0_120, %c0_121] : memref<32x128xf32, #tpu.memory_space<vmem>>, vector<32x128xf32>
    %c0_122 = arith.constant 0 : index
    %c0_123 = arith.constant 0 : index
    %448 = vector.load %arg7[%c0_122, %c0_123] : memref<32x128xf32, #tpu.memory_space<vmem>>, vector<32x128xf32>
    %cst_124 = arith.constant dense<0.000000e+00> : vector<16x128xf32>
    %449 = tpu.matmul %446, %448, %cst_124 {dimension_numbers = #tpu.dot_dimension_numbers<[1], [0], [0], [1], [0, 0, 1, 1], [], []>} : vector<16x32xf32>, vector<32x128xf32>, vector<16x128xf32> -> vector<16x128xf32>
    %c0_125 = arith.constant 0 : index
    %c0_126 = arith.constant 0 : index
    %450 = vector.load %arg9[%c0_125, %c0_126] : memref<1x128xf32, #tpu.memory_space<vmem>>, vector<1x128xf32>
    %451 = vector.broadcast %450 : vector<1x128xf32> to vector<16x128xf32>
    %452 = arith.addf %449, %451 : vector<16x128xf32>
    %cst_127 = arith.constant 0.000000e+00 : f32
    %453 = vector.broadcast %cst_127 : f32 to vector<2x32xf32>
    %cst_128 = arith.constant 0.000000e+00 : f32
    %454 = vector.broadcast %cst_128 : f32 to vector<2x32xf32>
    %455 = vector.extract_strided_slice %452 {offsets = [0, 0], sizes = [2, 128], strides = [1, 1]} : vector<16x128xf32> to vector<2x128xf32>
    %cst_129 = arith.constant dense<0.000000e+00> : vector<2x128xf32>
    %456 = tpu.matmul %453, %447, %cst_129 {dimension_numbers = #tpu.dot_dimension_numbers<[1], [0], [0], [1], [0, 0, 1, 1], [], []>} : vector<2x32xf32>, vector<32x128xf32>, vector<2x128xf32> -> vector<2x128xf32>
    %457 = arith.addf %455, %456 : vector<2x128xf32>
    %458 = tpu.iota {dimensions = array<i32: 1>} : vector<2x128xi32>
    %c64_i32_130 = arith.constant 64 : i32
    %459 = vector.broadcast %c64_i32_130 : i32 to vector<2x128xi32>
    %460 = arith.cmpi sge, %458, %459 : vector<2x128xi32>
    %c96_i32_131 = arith.constant 96 : i32
    %461 = vector.broadcast %c96_i32_131 : i32 to vector<2x128xi32>
    %462 = arith.cmpi slt, %458, %461 : vector<2x128xi32>
    %463 = arith.andi %460, %462 : vector<2x128xi1>
    %464 = math.tanh %457 : vector<2x128xf32>
    %465 = arith.negf %457 : vector<2x128xf32>
    %466 = math.exp %465 : vector<2x128xf32>
    %cst_132 = arith.constant 1.000000e+00 : f32
    %467 = vector.broadcast %cst_132 : f32 to vector<2x128xf32>
    %468 = arith.addf %467, %466 : vector<2x128xf32>
    %469 = arith.divf %467, %468 : vector<2x128xf32>
    %470 = arith.select %463, %464, %469 : vector<2x128xi1>, vector<2x128xf32>
    %471 = vector.extract_strided_slice %470 {offsets = [0, 0], sizes = [2, 32], strides = [1, 1]} : vector<2x128xf32> to vector<2x32xf32>
    %472 = vector.extract_strided_slice %470 {offsets = [0, 32], sizes = [2, 32], strides = [1, 1]} : vector<2x128xf32> to vector<2x32xf32>
    %473 = vector.extract_strided_slice %470 {offsets = [0, 64], sizes = [2, 32], strides = [1, 1]} : vector<2x128xf32> to vector<2x32xf32>
    %474 = vector.extract_strided_slice %470 {offsets = [0, 96], sizes = [2, 32], strides = [1, 1]} : vector<2x128xf32> to vector<2x32xf32>
    %475 = arith.mulf %472, %454 : vector<2x32xf32>
    %476 = arith.mulf %471, %473 : vector<2x32xf32>
    %477 = arith.addf %475, %476 : vector<2x32xf32>
    %478 = math.tanh %477 : vector<2x32xf32>
    %479 = arith.mulf %474, %478 : vector<2x32xf32>
    %c0_133 = arith.constant 0 : index
    %c0_134 = arith.constant 0 : index
    %480 = vector.load %arg15[%c0_133, %c0_134] : memref<16x32xf32, #tpu.memory_space<vmem>>, vector<2x32xf32>
    tpu.vector_store %arg15[%c0_133, %c0_134], %479 {strides = array<i32>} : memref<16x32xf32, #tpu.memory_space<vmem>>, vector<2x32xf32>,
    %481 = vector.extract_strided_slice %452 {offsets = [2, 0], sizes = [2, 128], strides = [1, 1]} : vector<16x128xf32> to vector<2x128xf32>
    %cst_135 = arith.constant dense<0.000000e+00> : vector<2x128xf32>
    %482 = tpu.matmul %479, %447, %cst_135 {dimension_numbers = #tpu.dot_dimension_numbers<[1], [0], [0], [1], [0, 0, 1, 1], [], []>} : vector<2x32xf32>, vector<32x128xf32>, vector<2x128xf32> -> vector<2x128xf32>
    %483 = arith.addf %481, %482 : vector<2x128xf32>
    %484 = tpu.iota {dimensions = array<i32: 1>} : vector<2x128xi32>
    %c64_i32_136 = arith.constant 64 : i32
    %485 = vector.broadcast %c64_i32_136 : i32 to vector<2x128xi32>
    %486 = arith.cmpi sge, %484, %485 : vector<2x128xi32>
    %c96_i32_137 = arith.constant 96 : i32
    %487 = vector.broadcast %c96_i32_137 : i32 to vector<2x128xi32>
    %488 = arith.cmpi slt, %484, %487 : vector<2x128xi32>
    %489 = arith.andi %486, %488 : vector<2x128xi1>
    %490 = math.tanh %483 : vector<2x128xf32>
    %491 = arith.negf %483 : vector<2x128xf32>
    %492 = math.exp %491 : vector<2x128xf32>
    %cst_138 = arith.constant 1.000000e+00 : f32
    %493 = vector.broadcast %cst_138 : f32 to vector<2x128xf32>
    %494 = arith.addf %493, %492 : vector<2x128xf32>
    %495 = arith.divf %493, %494 : vector<2x128xf32>
    %496 = arith.select %489, %490, %495 : vector<2x128xi1>, vector<2x128xf32>
    %497 = vector.extract_strided_slice %496 {offsets = [0, 0], sizes = [2, 32], strides = [1, 1]} : vector<2x128xf32> to vector<2x32xf32>
    %498 = vector.extract_strided_slice %496 {offsets = [0, 32], sizes = [2, 32], strides = [1, 1]} : vector<2x128xf32> to vector<2x32xf32>
    %499 = vector.extract_strided_slice %496 {offsets = [0, 64], sizes = [2, 32], strides = [1, 1]} : vector<2x128xf32> to vector<2x32xf32>
    %500 = vector.extract_strided_slice %496 {offsets = [0, 96], sizes = [2, 32], strides = [1, 1]} : vector<2x128xf32> to vector<2x32xf32>
    %501 = arith.mulf %498, %477 : vector<2x32xf32>
    %502 = arith.mulf %497, %499 : vector<2x32xf32>
    %503 = arith.addf %501, %502 : vector<2x32xf32>
    %504 = math.tanh %503 : vector<2x32xf32>
    %505 = arith.mulf %500, %504 : vector<2x32xf32>
    %c2_139 = arith.constant 2 : index
    %c0_140 = arith.constant 0 : index
    %506 = vector.load %arg15[%c2_139, %c0_140] : memref<16x32xf32, #tpu.memory_space<vmem>>, vector<2x32xf32>
    tpu.vector_store %arg15[%c2_139, %c0_140], %505 {strides = array<i32>} : memref<16x32xf32, #tpu.memory_space<vmem>>, vector<2x32xf32>,
    %507 = vector.extract_strided_slice %452 {offsets = [4, 0], sizes = [2, 128], strides = [1, 1]} : vector<16x128xf32> to vector<2x128xf32>
    %cst_141 = arith.constant dense<0.000000e+00> : vector<2x128xf32>
    %508 = tpu.matmul %505, %447, %cst_141 {dimension_numbers = #tpu.dot_dimension_numbers<[1], [0], [0], [1], [0, 0, 1, 1], [], []>} : vector<2x32xf32>, vector<32x128xf32>, vector<2x128xf32> -> vector<2x128xf32>
    %509 = arith.addf %507, %508 : vector<2x128xf32>
    %510 = tpu.iota {dimensions = array<i32: 1>} : vector<2x128xi32>
    %c64_i32_142 = arith.constant 64 : i32
    %511 = vector.broadcast %c64_i32_142 : i32 to vector<2x128xi32>
    %512 = arith.cmpi sge, %510, %511 : vector<2x128xi32>
    %c96_i32_143 = arith.constant 96 : i32
    %513 = vector.broadcast %c96_i32_143 : i32 to vector<2x128xi32>
    %514 = arith.cmpi slt, %510, %513 : vector<2x128xi32>
    %515 = arith.andi %512, %514 : vector<2x128xi1>
    %516 = math.tanh %509 : vector<2x128xf32>
    %517 = arith.negf %509 : vector<2x128xf32>
    %518 = math.exp %517 : vector<2x128xf32>
    %cst_144 = arith.constant 1.000000e+00 : f32
    %519 = vector.broadcast %cst_144 : f32 to vector<2x128xf32>
    %520 = arith.addf %519, %518 : vector<2x128xf32>
    %521 = arith.divf %519, %520 : vector<2x128xf32>
    %522 = arith.select %515, %516, %521 : vector<2x128xi1>, vector<2x128xf32>
    %523 = vector.extract_strided_slice %522 {offsets = [0, 0], sizes = [2, 32], strides = [1, 1]} : vector<2x128xf32> to vector<2x32xf32>
    %524 = vector.extract_strided_slice %522 {offsets = [0, 32], sizes = [2, 32], strides = [1, 1]} : vector<2x128xf32> to vector<2x32xf32>
    %525 = vector.extract_strided_slice %522 {offsets = [0, 64], sizes = [2, 32], strides = [1, 1]} : vector<2x128xf32> to vector<2x32xf32>
    %526 = vector.extract_strided_slice %522 {offsets = [0, 96], sizes = [2, 32], strides = [1, 1]} : vector<2x128xf32> to vector<2x32xf32>
    %527 = arith.mulf %524, %503 : vector<2x32xf32>
    %528 = arith.mulf %523, %525 : vector<2x32xf32>
    %529 = arith.addf %527, %528 : vector<2x32xf32>
    %530 = math.tanh %529 : vector<2x32xf32>
    %531 = arith.mulf %526, %530 : vector<2x32xf32>
    %c4_145 = arith.constant 4 : index
    %c0_146 = arith.constant 0 : index
    %532 = vector.load %arg15[%c4_145, %c0_146] : memref<16x32xf32, #tpu.memory_space<vmem>>, vector<2x32xf32>
    tpu.vector_store %arg15[%c4_145, %c0_146], %531 {strides = array<i32>} : memref<16x32xf32, #tpu.memory_space<vmem>>, vector<2x32xf32>,
    %533 = vector.extract_strided_slice %452 {offsets = [6, 0], sizes = [2, 128], strides = [1, 1]} : vector<16x128xf32> to vector<2x128xf32>
    %cst_147 = arith.constant dense<0.000000e+00> : vector<2x128xf32>
    %534 = tpu.matmul %531, %447, %cst_147 {dimension_numbers = #tpu.dot_dimension_numbers<[1], [0], [0], [1], [0, 0, 1, 1], [], []>} : vector<2x32xf32>, vector<32x128xf32>, vector<2x128xf32> -> vector<2x128xf32>
    %535 = arith.addf %533, %534 : vector<2x128xf32>
    %536 = tpu.iota {dimensions = array<i32: 1>} : vector<2x128xi32>
    %c64_i32_148 = arith.constant 64 : i32
    %537 = vector.broadcast %c64_i32_148 : i32 to vector<2x128xi32>
    %538 = arith.cmpi sge, %536, %537 : vector<2x128xi32>
    %c96_i32_149 = arith.constant 96 : i32
    %539 = vector.broadcast %c96_i32_149 : i32 to vector<2x128xi32>
    %540 = arith.cmpi slt, %536, %539 : vector<2x128xi32>
    %541 = arith.andi %538, %540 : vector<2x128xi1>
    %542 = math.tanh %535 : vector<2x128xf32>
    %543 = arith.negf %535 : vector<2x128xf32>
    %544 = math.exp %543 : vector<2x128xf32>
    %cst_150 = arith.constant 1.000000e+00 : f32
    %545 = vector.broadcast %cst_150 : f32 to vector<2x128xf32>
    %546 = arith.addf %545, %544 : vector<2x128xf32>
    %547 = arith.divf %545, %546 : vector<2x128xf32>
    %548 = arith.select %541, %542, %547 : vector<2x128xi1>, vector<2x128xf32>
    %549 = vector.extract_strided_slice %548 {offsets = [0, 0], sizes = [2, 32], strides = [1, 1]} : vector<2x128xf32> to vector<2x32xf32>
    %550 = vector.extract_strided_slice %548 {offsets = [0, 32], sizes = [2, 32], strides = [1, 1]} : vector<2x128xf32> to vector<2x32xf32>
    %551 = vector.extract_strided_slice %548 {offsets = [0, 64], sizes = [2, 32], strides = [1, 1]} : vector<2x128xf32> to vector<2x32xf32>
    %552 = vector.extract_strided_slice %548 {offsets = [0, 96], sizes = [2, 32], strides = [1, 1]} : vector<2x128xf32> to vector<2x32xf32>
    %553 = arith.mulf %550, %529 : vector<2x32xf32>
    %554 = arith.mulf %549, %551 : vector<2x32xf32>
    %555 = arith.addf %553, %554 : vector<2x32xf32>
    %556 = math.tanh %555 : vector<2x32xf32>
    %557 = arith.mulf %552, %556 : vector<2x32xf32>
    %c6_151 = arith.constant 6 : index
    %c0_152 = arith.constant 0 : index
    %558 = vector.load %arg15[%c6_151, %c0_152] : memref<16x32xf32, #tpu.memory_space<vmem>>, vector<2x32xf32>
    tpu.vector_store %arg15[%c6_151, %c0_152], %557 {strides = array<i32>} : memref<16x32xf32, #tpu.memory_space<vmem>>, vector<2x32xf32>,
    %559 = vector.extract_strided_slice %452 {offsets = [8, 0], sizes = [2, 128], strides = [1, 1]} : vector<16x128xf32> to vector<2x128xf32>
    %cst_153 = arith.constant dense<0.000000e+00> : vector<2x128xf32>
    %560 = tpu.matmul %557, %447, %cst_153 {dimension_numbers = #tpu.dot_dimension_numbers<[1], [0], [0], [1], [0, 0, 1, 1], [], []>} : vector<2x32xf32>, vector<32x128xf32>, vector<2x128xf32> -> vector<2x128xf32>
    %561 = arith.addf %559, %560 : vector<2x128xf32>
    %562 = tpu.iota {dimensions = array<i32: 1>} : vector<2x128xi32>
    %c64_i32_154 = arith.constant 64 : i32
    %563 = vector.broadcast %c64_i32_154 : i32 to vector<2x128xi32>
    %564 = arith.cmpi sge, %562, %563 : vector<2x128xi32>
    %c96_i32_155 = arith.constant 96 : i32
    %565 = vector.broadcast %c96_i32_155 : i32 to vector<2x128xi32>
    %566 = arith.cmpi slt, %562, %565 : vector<2x128xi32>
    %567 = arith.andi %564, %566 : vector<2x128xi1>
    %568 = math.tanh %561 : vector<2x128xf32>
    %569 = arith.negf %561 : vector<2x128xf32>
    %570 = math.exp %569 : vector<2x128xf32>
    %cst_156 = arith.constant 1.000000e+00 : f32
    %571 = vector.broadcast %cst_156 : f32 to vector<2x128xf32>
    %572 = arith.addf %571, %570 : vector<2x128xf32>
    %573 = arith.divf %571, %572 : vector<2x128xf32>
    %574 = arith.select %567, %568, %573 : vector<2x128xi1>, vector<2x128xf32>
    %575 = vector.extract_strided_slice %574 {offsets = [0, 0], sizes = [2, 32], strides = [1, 1]} : vector<2x128xf32> to vector<2x32xf32>
    %576 = vector.extract_strided_slice %574 {offsets = [0, 32], sizes = [2, 32], strides = [1, 1]} : vector<2x128xf32> to vector<2x32xf32>
    %577 = vector.extract_strided_slice %574 {offsets = [0, 64], sizes = [2, 32], strides = [1, 1]} : vector<2x128xf32> to vector<2x32xf32>
    %578 = vector.extract_strided_slice %574 {offsets = [0, 96], sizes = [2, 32], strides = [1, 1]} : vector<2x128xf32> to vector<2x32xf32>
    %579 = arith.mulf %576, %555 : vector<2x32xf32>
    %580 = arith.mulf %575, %577 : vector<2x32xf32>
    %581 = arith.addf %579, %580 : vector<2x32xf32>
    %582 = math.tanh %581 : vector<2x32xf32>
    %583 = arith.mulf %578, %582 : vector<2x32xf32>
    %c8_157 = arith.constant 8 : index
    %c0_158 = arith.constant 0 : index
    %584 = vector.load %arg15[%c8_157, %c0_158] : memref<16x32xf32, #tpu.memory_space<vmem>>, vector<2x32xf32>
    tpu.vector_store %arg15[%c8_157, %c0_158], %583 {strides = array<i32>} : memref<16x32xf32, #tpu.memory_space<vmem>>, vector<2x32xf32>,
    %585 = vector.extract_strided_slice %452 {offsets = [10, 0], sizes = [2, 128], strides = [1, 1]} : vector<16x128xf32> to vector<2x128xf32>
    %cst_159 = arith.constant dense<0.000000e+00> : vector<2x128xf32>
    %586 = tpu.matmul %583, %447, %cst_159 {dimension_numbers = #tpu.dot_dimension_numbers<[1], [0], [0], [1], [0, 0, 1, 1], [], []>} : vector<2x32xf32>, vector<32x128xf32>, vector<2x128xf32> -> vector<2x128xf32>
    %587 = arith.addf %585, %586 : vector<2x128xf32>
    %588 = tpu.iota {dimensions = array<i32: 1>} : vector<2x128xi32>
    %c64_i32_160 = arith.constant 64 : i32
    %589 = vector.broadcast %c64_i32_160 : i32 to vector<2x128xi32>
    %590 = arith.cmpi sge, %588, %589 : vector<2x128xi32>
    %c96_i32_161 = arith.constant 96 : i32
    %591 = vector.broadcast %c96_i32_161 : i32 to vector<2x128xi32>
    %592 = arith.cmpi slt, %588, %591 : vector<2x128xi32>
    %593 = arith.andi %590, %592 : vector<2x128xi1>
    %594 = math.tanh %587 : vector<2x128xf32>
    %595 = arith.negf %587 : vector<2x128xf32>
    %596 = math.exp %595 : vector<2x128xf32>
    %cst_162 = arith.constant 1.000000e+00 : f32
    %597 = vector.broadcast %cst_162 : f32 to vector<2x128xf32>
    %598 = arith.addf %597, %596 : vector<2x128xf32>
    %599 = arith.divf %597, %598 : vector<2x128xf32>
    %600 = arith.select %593, %594, %599 : vector<2x128xi1>, vector<2x128xf32>
    %601 = vector.extract_strided_slice %600 {offsets = [0, 0], sizes = [2, 32], strides = [1, 1]} : vector<2x128xf32> to vector<2x32xf32>
    %602 = vector.extract_strided_slice %600 {offsets = [0, 32], sizes = [2, 32], strides = [1, 1]} : vector<2x128xf32> to vector<2x32xf32>
    %603 = vector.extract_strided_slice %600 {offsets = [0, 64], sizes = [2, 32], strides = [1, 1]} : vector<2x128xf32> to vector<2x32xf32>
    %604 = vector.extract_strided_slice %600 {offsets = [0, 96], sizes = [2, 32], strides = [1, 1]} : vector<2x128xf32> to vector<2x32xf32>
    %605 = arith.mulf %602, %581 : vector<2x32xf32>
    %606 = arith.mulf %601, %603 : vector<2x32xf32>
    %607 = arith.addf %605, %606 : vector<2x32xf32>
    %608 = math.tanh %607 : vector<2x32xf32>
    %609 = arith.mulf %604, %608 : vector<2x32xf32>
    %c10_163 = arith.constant 10 : index
    %c0_164 = arith.constant 0 : index
    %610 = vector.load %arg15[%c10_163, %c0_164] : memref<16x32xf32, #tpu.memory_space<vmem>>, vector<2x32xf32>
    tpu.vector_store %arg15[%c10_163, %c0_164], %609 {strides = array<i32>} : memref<16x32xf32, #tpu.memory_space<vmem>>, vector<2x32xf32>,
    %611 = vector.extract_strided_slice %452 {offsets = [12, 0], sizes = [2, 128], strides = [1, 1]} : vector<16x128xf32> to vector<2x128xf32>
    %cst_165 = arith.constant dense<0.000000e+00> : vector<2x128xf32>
    %612 = tpu.matmul %609, %447, %cst_165 {dimension_numbers = #tpu.dot_dimension_numbers<[1], [0], [0], [1], [0, 0, 1, 1], [], []>} : vector<2x32xf32>, vector<32x128xf32>, vector<2x128xf32> -> vector<2x128xf32>
    %613 = arith.addf %611, %612 : vector<2x128xf32>
    %614 = tpu.iota {dimensions = array<i32: 1>} : vector<2x128xi32>
    %c64_i32_166 = arith.constant 64 : i32
    %615 = vector.broadcast %c64_i32_166 : i32 to vector<2x128xi32>
    %616 = arith.cmpi sge, %614, %615 : vector<2x128xi32>
    %c96_i32_167 = arith.constant 96 : i32
    %617 = vector.broadcast %c96_i32_167 : i32 to vector<2x128xi32>
    %618 = arith.cmpi slt, %614, %617 : vector<2x128xi32>
    %619 = arith.andi %616, %618 : vector<2x128xi1>
    %620 = math.tanh %613 : vector<2x128xf32>
    %621 = arith.negf %613 : vector<2x128xf32>
    %622 = math.exp %621 : vector<2x128xf32>
    %cst_168 = arith.constant 1.000000e+00 : f32
    %623 = vector.broadcast %cst_168 : f32 to vector<2x128xf32>
    %624 = arith.addf %623, %622 : vector<2x128xf32>
    %625 = arith.divf %623, %624 : vector<2x128xf32>
    %626 = arith.select %619, %620, %625 : vector<2x128xi1>, vector<2x128xf32>
    %627 = vector.extract_strided_slice %626 {offsets = [0, 0], sizes = [2, 32], strides = [1, 1]} : vector<2x128xf32> to vector<2x32xf32>
    %628 = vector.extract_strided_slice %626 {offsets = [0, 32], sizes = [2, 32], strides = [1, 1]} : vector<2x128xf32> to vector<2x32xf32>
    %629 = vector.extract_strided_slice %626 {offsets = [0, 64], sizes = [2, 32], strides = [1, 1]} : vector<2x128xf32> to vector<2x32xf32>
    %630 = vector.extract_strided_slice %626 {offsets = [0, 96], sizes = [2, 32], strides = [1, 1]} : vector<2x128xf32> to vector<2x32xf32>
    %631 = arith.mulf %628, %607 : vector<2x32xf32>
    %632 = arith.mulf %627, %629 : vector<2x32xf32>
    %633 = arith.addf %631, %632 : vector<2x32xf32>
    %634 = math.tanh %633 : vector<2x32xf32>
    %635 = arith.mulf %630, %634 : vector<2x32xf32>
    %c12_169 = arith.constant 12 : index
    %c0_170 = arith.constant 0 : index
    %636 = vector.load %arg15[%c12_169, %c0_170] : memref<16x32xf32, #tpu.memory_space<vmem>>, vector<2x32xf32>
    tpu.vector_store %arg15[%c12_169, %c0_170], %635 {strides = array<i32>} : memref<16x32xf32, #tpu.memory_space<vmem>>, vector<2x32xf32>,
    %637 = vector.extract_strided_slice %452 {offsets = [14, 0], sizes = [2, 128], strides = [1, 1]} : vector<16x128xf32> to vector<2x128xf32>
    %cst_171 = arith.constant dense<0.000000e+00> : vector<2x128xf32>
    %638 = tpu.matmul %635, %447, %cst_171 {dimension_numbers = #tpu.dot_dimension_numbers<[1], [0], [0], [1], [0, 0, 1, 1], [], []>} : vector<2x32xf32>, vector<32x128xf32>, vector<2x128xf32> -> vector<2x128xf32>
    %639 = arith.addf %637, %638 : vector<2x128xf32>
    %640 = tpu.iota {dimensions = array<i32: 1>} : vector<2x128xi32>
    %c64_i32_172 = arith.constant 64 : i32
    %641 = vector.broadcast %c64_i32_172 : i32 to vector<2x128xi32>
    %642 = arith.cmpi sge, %640, %641 : vector<2x128xi32>
    %c96_i32_173 = arith.constant 96 : i32
    %643 = vector.broadcast %c96_i32_173 : i32 to vector<2x128xi32>
    %644 = arith.cmpi slt, %640, %643 : vector<2x128xi32>
    %645 = arith.andi %642, %644 : vector<2x128xi1>
    %646 = math.tanh %639 : vector<2x128xf32>
    %647 = arith.negf %639 : vector<2x128xf32>
    %648 = math.exp %647 : vector<2x128xf32>
    %cst_174 = arith.constant 1.000000e+00 : f32
    %649 = vector.broadcast %cst_174 : f32 to vector<2x128xf32>
    %650 = arith.addf %649, %648 : vector<2x128xf32>
    %651 = arith.divf %649, %650 : vector<2x128xf32>
    %652 = arith.select %645, %646, %651 : vector<2x128xi1>, vector<2x128xf32>
    %653 = vector.extract_strided_slice %652 {offsets = [0, 0], sizes = [2, 32], strides = [1, 1]} : vector<2x128xf32> to vector<2x32xf32>
    %654 = vector.extract_strided_slice %652 {offsets = [0, 32], sizes = [2, 32], strides = [1, 1]} : vector<2x128xf32> to vector<2x32xf32>
    %655 = vector.extract_strided_slice %652 {offsets = [0, 64], sizes = [2, 32], strides = [1, 1]} : vector<2x128xf32> to vector<2x32xf32>
    %656 = vector.extract_strided_slice %652 {offsets = [0, 96], sizes = [2, 32], strides = [1, 1]} : vector<2x128xf32> to vector<2x32xf32>
    %657 = arith.mulf %654, %633 : vector<2x32xf32>
    %658 = arith.mulf %653, %655 : vector<2x32xf32>
    %659 = arith.addf %657, %658 : vector<2x32xf32>
    %660 = math.tanh %659 : vector<2x32xf32>
    %661 = arith.mulf %656, %660 : vector<2x32xf32>
    %c14_175 = arith.constant 14 : index
    %c0_176 = arith.constant 0 : index
    %662 = vector.load %arg15[%c14_175, %c0_176] : memref<16x32xf32, #tpu.memory_space<vmem>>, vector<2x32xf32>
    tpu.vector_store %arg15[%c14_175, %c0_176], %661 {strides = array<i32>} : memref<16x32xf32, #tpu.memory_space<vmem>>, vector<2x32xf32>,
    %c2_177 = arith.constant 2 : index
    %c0_178 = arith.constant 0 : index
    %c0_179 = arith.constant 0 : index
    %663 = vector.load %arg13[%c2_177, %c0_178, %c0_179] : memref<3x2x32xf32, #tpu.memory_space<vmem>>, vector<1x2x32xf32>
    %664 = vector.shape_cast %663 : vector<1x2x32xf32> to vector<2x32xf32>
    %665 = vector.shape_cast %661 : vector<2x32xf32> to vector<1x2x32xf32>
    tpu.vector_store %arg13[%c2_177, %c0_178, %c0_179], %665 {strides = array<i32>} : memref<3x2x32xf32, #tpu.memory_space<vmem>>, vector<1x2x32xf32>,
    %c2_180 = arith.constant 2 : index
    %c0_181 = arith.constant 0 : index
    %c0_182 = arith.constant 0 : index
    %666 = vector.load %arg14[%c2_180, %c0_181, %c0_182] : memref<3x2x32xf32, #tpu.memory_space<vmem>>, vector<1x2x32xf32>
    %667 = vector.shape_cast %666 : vector<1x2x32xf32> to vector<2x32xf32>
    %668 = vector.shape_cast %659 : vector<2x32xf32> to vector<1x2x32xf32>
    tpu.vector_store %arg14[%c2_180, %c0_181, %c0_182], %668 {strides = array<i32>} : memref<3x2x32xf32, #tpu.memory_space<vmem>>, vector<1x2x32xf32>,
    %c0_183 = arith.constant 0 : index
    %c0_184 = arith.constant 0 : index
    %669 = vector.load %arg15[%c0_183, %c0_184] : memref<16x32xf32, #tpu.memory_space<vmem>>, vector<16x32xf32>
    %c0_185 = arith.constant 0 : index
    %c0_186 = arith.constant 0 : index
    %670 = vector.load %arg10[%c0_185, %c0_186] : memref<32x4xf32, #tpu.memory_space<vmem>>, vector<32x4xf32>
    %cst_187 = arith.constant dense<0.000000e+00> : vector<16x4xf32>
    %671 = tpu.matmul %669, %670, %cst_187 {dimension_numbers = #tpu.dot_dimension_numbers<[1], [0], [0], [1], [0, 0, 1, 1], [], []>} : vector<16x32xf32>, vector<32x4xf32>, vector<16x4xf32> -> vector<16x4xf32>
    %c0_188 = arith.constant 0 : index
    %c0_189 = arith.constant 0 : index
    %672 = vector.load %arg11[%c0_188, %c0_189] : memref<1x4xf32, #tpu.memory_space<vmem>>, vector<1x4xf32>
    %673 = vector.broadcast %672 : vector<1x4xf32> to vector<16x4xf32>
    %674 = arith.addf %671, %673 : vector<16x4xf32>
    %c0_190 = arith.constant 0 : index
    %c0_191 = arith.constant 0 : index
    %675 = vector.load %arg12[%c0_190, %c0_191] : memref<16x4xf32, #tpu.memory_space<vmem>>, vector<16x4xf32>
    tpu.vector_store %arg12[%c0_190, %c0_191], %674 {strides = array<i32>} : memref<16x4xf32, #tpu.memory_space<vmem>>, vector<16x4xf32>,
    return
  }
}

</mosaic_0001>

<llo_original>
// kernel: tpu_custom_call.1
$region0: #{tpu_custom_call.1}
  #allocation0 [shape = 'u32[]', space=smem, size = 0x4, offset = 0x4, fixed_abs, tag = 'smem constant byte address 0x4 - core index']
  #allocation1 [shape = 'u32[72,128]{1,0:T(1,128)}', space=vmem, size = 0x9000, scoped, tag = 'internal scratch']
  #allocation2 [shape = 'f32[16,32]{1,0:T(8,128)}', space=vmem, size = 0x2000, scoped, tag = 'scratch operand']
  %s0 = inlined_call_operand.vmem [shape: f32[16,4], index: 0, kind: input, shape index: {}]
  %s1 = inlined_call_operand.vmem [shape: f32[4,128], index: 1, kind: input, shape index: {}]
  %s2 = inlined_call_operand.vmem [shape: f32[32,128], index: 2, kind: input, shape index: {}]
  %s3 = inlined_call_operand.vmem [shape: f32[1,128], index: 3, kind: input, shape index: {}]
  %s4 = inlined_call_operand.hbm [shape: f32[32,128], index: 4, kind: input, shape index: {}]
  %s5 = inlined_call_operand.hbm [shape: f32[32,128], index: 5, kind: input, shape index: {}]
  %s6 = inlined_call_operand.vmem [shape: f32[1,128], index: 6, kind: input, shape index: {}]
  %s7 = inlined_call_operand.hbm [shape: f32[32,128], index: 7, kind: input, shape index: {}]
  %s8 = inlined_call_operand.hbm [shape: f32[32,128], index: 8, kind: input, shape index: {}]
  %s9 = inlined_call_operand.vmem [shape: f32[1,128], index: 9, kind: input, shape index: {}]
  %s10 = inlined_call_operand.vmem [shape: f32[32,4], index: 10, kind: input, shape index: {}]
  %s11 = inlined_call_operand.vmem [shape: f32[1,4], index: 11, kind: input, shape index: {}]
  %s12 = inlined_call_operand.vmem [shape: f32[16,4], index: 12, kind: output, shape index: {0}]
  %s13 = inlined_call_operand.hbm [shape: f32[3,2,32], index: 13, kind: output, shape index: {1}]
  %s14 = inlined_call_operand.hbm [shape: f32[3,2,32], index: 14, kind: output, shape index: {2}]
  %15 = xla_tuple %s12, %s13, %s14
  %s16 = sld [smem:[#allocation0]]
  $region90: #{tpu_custom_call.1} parent=0
    _
  %s18 = ssub.s32 1, %s16
  %s19 = scalar_select 0, %s18, %s16
  $region1: #{tpu_custom_call.1} parent=0
    #allocation3 [shape = 'u8[16384]{0}', space=vmem, size = 0x4000, scoped, tag = 'input window, operand 4, single buffered']
    #allocation4 [shape = 's32[1]{0}', space=sflag, size = 0x4, scoped, tag = 'scoped memory for tpu_custom_call.1']
    #allocation5 [shape = 's32[1]{0}', space=sflag, size = 0x4, scoped, tag = 'scoped memory for tpu_custom_call.1']
    #allocation6 [shape = 'u8[16384]{0}', space=vmem, size = 0x4000, scoped, tag = 'input window, operand 5, single buffered']
    #allocation7 [shape = 's32[1]{0}', space=sflag, size = 0x4, scoped, tag = 'scoped memory for tpu_custom_call.1']
    #allocation8 [shape = 'u8[16384]{0}', space=vmem, size = 0x4000, scoped, tag = 'input window, operand 7, single buffered']
    #allocation9 [shape = 'u8[16384]{0}', space=vmem, size = 0x4000, scoped, tag = 'input window, operand 8, single buffered']
    #allocation10 [shape = 's32[1]{0}', space=sflag, size = 0x4, scoped, tag = 'scoped memory for tpu_custom_call.1']
    #allocation11 [shape = 'u8[3072]{0}', space=vmem, size = 0xc00, scoped, tag = 'output window, operand 1, single buffered']
    #allocation12 [shape = 'u8[3072]{0}', space=vmem, size = 0xc00, scoped, tag = 'output window, operand 2, single buffered']
    #allocation13 [shape = 's32[1]{0}', space=sflag, size = 0x4, scoped, tag = 'scoped memory for tpu_custom_call.1']
    %20 = vsyncpa [#allocation4], 0
    %21 = vsyncpa [#allocation7], 0
    %22 = vsyncpa [#allocation10], 0
    %23 = vsyncpa [#allocation5], 0
    %24 = vsyncpa [#allocation13], 0
    // Predicated region
    $region2: #{tpu_custom_call.1} parent=1 // pred_check
      _
    $region3: #{tpu_custom_call.1} parent=1 // pred_check_branch
      %26 = sbr.rel (0) target = $region5
    $region4: #{tpu_custom_call.1} parent=1 // pred_region
      _
    $region5: #{tpu_custom_call.1} parent=1 // pred_fallthru
      _
    // Predicated region
    $region6: #{tpu_custom_call.1} parent=1 // pred_check
      _
    $region7: #{tpu_custom_call.1} parent=1 // pred_check_branch
      %28 = sbr.rel (0) target = $region9
    $region8: #{tpu_custom_call.1} parent=1 // pred_region
      _
    $region9: #{tpu_custom_call.1} parent=1 // pred_fallthru
      _
    // Predicated region
    $region10: #{tpu_custom_call.1} parent=1 // pred_check
      _
    $region11: #{tpu_custom_call.1} parent=1 // pred_check_branch
      %30 = sbr.rel (0) target = $region13
    $region12: #{tpu_custom_call.1} parent=1 // pred_region
      _
    $region13: #{tpu_custom_call.1} parent=1 // pred_fallthru
      _
    // Predicated region
    $region14: #{tpu_custom_call.1} parent=1 // pred_check
      _
    $region15: #{tpu_custom_call.1} parent=1 // pred_check_branch
      %32 = sbr.rel (0) target = $region17
    $region16: #{tpu_custom_call.1} parent=1 // pred_region
      _
    $region17: #{tpu_custom_call.1} parent=1 // pred_fallthru
      _
    // Predicated region
    $region18: #{tpu_custom_call.1} parent=1 // pred_check
      _
    $region19: #{tpu_custom_call.1} parent=1 // pred_check_branch
      %34 = sbr.rel (0) target = $region21
    $region20: #{tpu_custom_call.1} parent=1 // pred_region
      %36 = vsyncadd [#allocation4], 0
      %s37 = sshll.u32 %s4, 4
      %s38 = int_to_ptr.hbm [resolvable:$true] %s37
      %s39 = sshll.u32 [#allocation3], 4
      %s40 = int_to_ptr.vmem [resolvable:$true] %s39
      %45 = dma.hbm_to_vmem [thread:$0]  %s38, 512, %s40, [#allocation4], 128, 128, 8
    $region21: #{tpu_custom_call.1} parent=1 // pred_fallthru
      _
    // Predicated region
    $region22: #{tpu_custom_call.1} parent=1 // pred_check
      _
    $region23: #{tpu_custom_call.1} parent=1 // pred_check_branch
      %47 = sbr.rel (0) target = $region25
    $region24: #{tpu_custom_call.1} parent=1 // pred_region
      %49 = vsyncadd [#allocation7], 0
      %s50 = sshll.u32 %s5, 4
      %s51 = int_to_ptr.hbm [resolvable:$true] %s50
      %s52 = sshll.u32 [#allocation6], 4
      %s53 = int_to_ptr.vmem [resolvable:$true] %s52
      %58 = dma.hbm_to_vmem [thread:$0]  %s51, 512, %s53, [#allocation7], 128, 128, 8
    $region25: #{tpu_custom_call.1} parent=1 // pred_fallthru
      _
    // Predicated region
    $region26: #{tpu_custom_call.1} parent=1 // pred_check
      _
    $region27: #{tpu_custom_call.1} parent=1 // pred_check_branch
      %60 = sbr.rel (0) target = $region29
    $region28: #{tpu_custom_call.1} parent=1 // pred_region
      _
    $region29: #{tpu_custom_call.1} parent=1 // pred_fallthru
      _
    // Predicated region
    $region30: #{tpu_custom_call.1} parent=1 // pred_check
      _
    $region31: #{tpu_custom_call.1} parent=1 // pred_check_branch
      %62 = sbr.rel (0) target = $region33
    $region32: #{tpu_custom_call.1} parent=1 // pred_region
      %64 = vsyncadd [#allocation7], 0
      %s65 = sshll.u32 %s7, 4
      %s66 = int_to_ptr.hbm [resolvable:$true] %s65
      %s67 = sshll.u32 [#allocation8], 4
      %s68 = int_to_ptr.vmem [resolvable:$true] %s67
      %73 = dma.hbm_to_vmem [thread:$0]  %s66, 512, %s68, [#allocation7], 128, 128, 8
    $region33: #{tpu_custom_call.1} parent=1 // pred_fallthru
      _
    // Predicated region
    $region34: #{tpu_custom_call.1} parent=1 // pred_check
      _
    $region35: #{tpu_custom_call.1} parent=1 // pred_check_branch
      %75 = sbr.rel (0) target = $region37
    $region36: #{tpu_custom_call.1} parent=1 // pred_region
      %77 = vsyncadd [#allocation10], 0
      %s78 = sshll.u32 %s8, 4
      %s79 = int_to_ptr.hbm [resolvable:$true] %s78
      %s80 = sshll.u32 [#allocation9], 4
      %s81 = int_to_ptr.vmem [resolvable:$true] %s80
      %86 = dma.hbm_to_vmem [thread:$0]  %s79, 512, %s81, [#allocation10], 128, 128, 8
    $region37: #{tpu_custom_call.1} parent=1 // pred_fallthru
      _
    // Predicated region
    $region38: #{tpu_custom_call.1} parent=1 // pred_check
      _
    $region39: #{tpu_custom_call.1} parent=1 // pred_check_branch
      %88 = sbr.rel (0) target = $region41
    $region40: #{tpu_custom_call.1} parent=1 // pred_region
      _
    $region41: #{tpu_custom_call.1} parent=1 // pred_fallthru
      _
    // Predicated region
    $region42: #{tpu_custom_call.1} parent=1 // pred_check
      _
    $region43: #{tpu_custom_call.1} parent=1 // pred_check_branch
      %90 = sbr.rel (0) target = $region45
    $region44: #{tpu_custom_call.1} parent=1 // pred_region
      _
    $region45: #{tpu_custom_call.1} parent=1 // pred_fallthru
      _
    // Predicated region
    $region46: #{tpu_custom_call.1} parent=1 // pred_check
      _
    $region47: #{tpu_custom_call.1} parent=1 // pred_check_branch
      %92 = sbr.rel (0) target = $region49
    $region48: #{tpu_custom_call.1} parent=1 // pred_region
      _
    $region49: #{tpu_custom_call.1} parent=1 // pred_fallthru
      _
    // Predicated region
    $region50: #{tpu_custom_call.1} parent=1 // pred_check
      _
    $region51: #{tpu_custom_call.1} parent=1 // pred_check_branch
      %94 = sbr.rel (0) target = $region53
    $region52: #{tpu_custom_call.1} parent=1 // pred_region
      %96 = dma.done [#allocation4], 512
    $region53: #{tpu_custom_call.1} parent=1 // pred_fallthru
      _
    // Predicated region
    $region54: #{tpu_custom_call.1} parent=1 // pred_check
      _
    $region55: #{tpu_custom_call.1} parent=1 // pred_check_branch
      %98 = sbr.rel (0) target = $region57
    $region56: #{tpu_custom_call.1} parent=1 // pred_region
      %100 = dma.done [#allocation7], 512
    $region57: #{tpu_custom_call.1} parent=1 // pred_fallthru
      _
    // Predicated region
    $region58: #{tpu_custom_call.1} parent=1 // pred_check
      _
    $region59: #{tpu_custom_call.1} parent=1 // pred_check_branch
      %102 = sbr.rel (0) target = $region61
    $region60: #{tpu_custom_call.1} parent=1 // pred_region
      %104 = dma.done [#allocation7], 512
    $region61: #{tpu_custom_call.1} parent=1 // pred_fallthru
      _
    // Predicated region
    $region62: #{tpu_custom_call.1} parent=1 // pred_check
      _
    $region63: #{tpu_custom_call.1} parent=1 // pred_check_branch
      %106 = sbr.rel (0) target = $region65
    $region64: #{tpu_custom_call.1} parent=1 // pred_region
      %108 = dma.done [#allocation10], 512
    $region65: #{tpu_custom_call.1} parent=1 // pred_fallthru
      _
    %v109 = vld [vmem:[%s0] sm:$0xff]
    %v110 = vld [vmem:[%s0 + $0x8] sm:$0xff]
    %v111 = vld [vmem:[%s2] sm:$0xff]
    %v112 = vld [vmem:[%s2 + $0x8] sm:$0xff]
    %v113 = vld [vmem:[%s2 + $0x10] sm:$0xff]
    %v114 = vld [vmem:[%s2 + $0x18] sm:$0xff]
    %v115 = vld [vmem:[%s1] sm:$0xf]
    %v116 = vld [vmem:[%s3] sm:$0x1]
    %v118 = vperm.slane %v116, 0
    %vm120 = vcmask 31744
    %v122 = vsel %vm120, %v109, 0
    %v125 = vsel %vm120, %v110, 0
    %vm127 = vcmask 1043456
    %v129 = vsel %vm127, %v115, 0
    %131 = vmatpush.msra.mxu0 0.0
    %132 = vmatpush.msra.mxu0 0.0
    %133 = vmatpush.msra.mxu0 0.0
    %134 = vmatpush.msra.mxu0 0.0
    %135 = vmatpush.msra.mxu0 0.0
    %136 = vmatpush.msra.mxu0 0.0
    %137 = vmatpush.msra.mxu0 0.0
    %138 = vmatpush.msra.mxu0 0.0
    %139 = vmatpush.msra.mxu0 0.0
    %140 = vmatpush.msra.mxu0 0.0
    %141 = vmatpush.msra.mxu0 0.0
    %142 = vmatpush.msra.mxu0 0.0
    %143 = vmatpush.msra.mxu0 0.0
    %144 = vmatpush.msra.mxu0 0.0
    %145 = vmatpush.msra.mxu0 0.0
    %146 = vmatpush.msra.mxu0 %v129
    %147 = vmatmul.f32.gmra.mxu0 %v122
    %v148 = vpop.f32.mrf.mxu0
    %v149 = vadd.f32 %v118, %v148
    %150 = vmatmul.f32.gmra.mxu0 %v125
    %v151 = vpop.f32.mrf.mxu0
    %v152 = vadd.f32 %v118, %v151
    %153 = vdwg.mxu0
    %vm154 = vcmask 261120
    %v156 = vsel %vm154, 0.0, 0
    %158 = vmatpush.msra.mxu0 0.0
    %159 = vmatpush.msra.mxu0 0.0
    %160 = vmatpush.msra.mxu0 0.0
    %161 = vmatpush.msra.mxu0 0.0
    %162 = vmatpush.msra.mxu0 0.0
    %163 = vmatpush.msra.mxu0 0.0
    %164 = vmatpush.msra.mxu0 0.0
    %165 = vmatpush.msra.mxu0 0.0
    %166 = vmatpush.msra.mxu0 0.0
    %167 = vmatpush.msra.mxu0 0.0
    %168 = vmatpush.msra.mxu0 0.0
    %169 = vmatpush.msra.mxu0 0.0
    %170 = vmatpush.msra.mxu0 %v114
    %171 = vmatpush.msra.mxu0 %v113
    %172 = vmatpush.msra.mxu0 %v112
    %173 = vmatpush.msra.mxu0 %v111
    %174 = vmatmul.f32.gmra.mxu0 %v156
    %v175 = vpop.f32.mrf.mxu0
    %v176 = vadd.f32 0.0, %v175
    %177 = vdwg.mxu0
    %v178 = vadd.f32 %v149, %v176
    %v179 = vlaneseq
    %v180 = vand.u32 %v179, 127
    %vm181 = vcmp.ge.s32.totalorder %v180, 64
    %vm182 = vcmp.lt.s32.totalorder %v180, 96
    %vm183 = vmand %vm181, %vm182
    %v184 = vtanh.pop %v178
    %v185 = vxor.u32 %v178, 2147483648
    %v186 = vmul.f32 %v185, 1.442695
    %v187 = vpow.pop %v186
    %v188 = vadd.f32 %v187, 1.0
    %v189 = vrcp.pop %v188
    %v190 = vmul.f32 %v188, %v189
    %v191 = vsub.f32 1.0, %v190
    %v192 = vmul.f32 %v189, %v191
    %v193 = vadd.f32 %v189, %v192
    %vm194 = vweird.f32 %v188
    %vm195 = vweird.f32 %v189
    %vm196 = vmor %vm194, %vm195
    %v197 = vsel %vm196, %v189, %v193
    %v198 = vand.u32 2147483647, %v188
    %vm199 = vcmp.eq.f32.partialorder %v198, 8.507059e+37
    %v200 = vand.u32 %v188, 2147483648
    %v201 = vor.u32 1.1754944e-38, %v200
    %v202 = vsel %vm199, %v201, %v197
    %v203 = vmul.f32 1.0, %v202
    %v204 = vsel %vm183, %v184, %v203
    %v205 = vmul.f32 %v204, 0.0
    %207 = vrot.lane.b32.xlu0 %v204, 64
    %v208 = vpop.permute.xlu0 %207
    %v210 = vmul.f32 %v204, %v208
    %212 = vrot.lane.b32.xlu0 %v210, 32
    %v213 = vpop.permute.xlu0 %212
    %v215 = vadd.f32 %v205, %v213
    %v216 = vtanh.pop %v215
    %218 = vrot.lane.b32.xlu0 %v216, 64
    %v219 = vpop.permute.xlu0 %218
    %v221 = vmul.f32 %v204, %v219
    %223 = vrot.lane.b32.xlu0 %v221, 32
    %v224 = vpop.permute.xlu0 %223
    %vm226 = vcmask 254976
    %227 = vst.msk [vmem:[#allocation2] sm:$0x3] %vm226, %v224
    %v228 = vsel %vm154, %v224, 0
    %230 = vmatpush.msra.mxu0 0.0
    %231 = vmatpush.msra.mxu0 0.0
    %232 = vmatpush.msra.mxu0 0.0
    %233 = vmatpush.msra.mxu0 0.0
    %234 = vmatpush.msra.mxu0 0.0
    %235 = vmatpush.msra.mxu0 0.0
    %236 = vmatpush.msra.mxu0 0.0
    %237 = vmatpush.msra.mxu0 0.0
    %238 = vmatpush.msra.mxu0 0.0
    %239 = vmatpush.msra.mxu0 0.0
    %240 = vmatpush.msra.mxu0 0.0
    %241 = vmatpush.msra.mxu0 0.0
    %242 = vmatpush.msra.mxu0 %v114
    %243 = vmatpush.msra.mxu0 %v113
    %244 = vmatpush.msra.mxu0 %v112
    %245 = vmatpush.msra.mxu0 %v111
    %246 = vmatmul.f32.gmra.mxu0 %v228
    %v247 = vpop.f32.mrf.mxu0
    %v248 = vadd.f32 0.0, %v247
    %249 = vdwg.mxu0
    %v251 = vrot.slane %v248, 6
    %v253 = vadd.f32 %v149, %v251
    %v254 = vtanh.pop %v253
    %v255 = vxor.u32 %v253, 2147483648
    %v256 = vmul.f32 %v255, 1.442695
    %v257 = vpow.pop %v256
    %v258 = vadd.f32 %v257, 1.0
    %v259 = vrcp.pop %v258
    %v260 = vmul.f32 %v258, %v259
    %v261 = vsub.f32 1.0, %v260
    %v262 = vmul.f32 %v259, %v261
    %v263 = vadd.f32 %v259, %v262
    %vm264 = vweird.f32 %v258
    %vm265 = vweird.f32 %v259
    %vm266 = vmor %vm264, %vm265
    %v267 = vsel %vm266, %v259, %v263
    %v268 = vand.u32 2147483647, %v258
    %vm269 = vcmp.eq.f32.partialorder %v268, 8.507059e+37
    %v270 = vand.u32 %v258, 2147483648
    %v271 = vor.u32 1.1754944e-38, %v270
    %v272 = vsel %vm269, %v271, %v267
    %v273 = vmul.f32 1.0, %v272
    %v274 = vsel %vm183, %v254, %v273
    %v276 = vrot.slane %v215, 6
    %v278 = vmul.f32 %v274, %v276
    %280 = vrot.lane.b32.xlu0 %v274, 64
    %v281 = vpop.permute.xlu0 %280
    %v283 = vmul.f32 %v274, %v281
    %285 = vrot.lane.b32.xlu0 %v283, 32
    %v286 = vpop.permute.xlu0 %285
    %v288 = vadd.f32 %v278, %v286
    %v289 = vtanh.pop %v288
    %291 = vrot.lane.b32.xlu0 %v289, 64
    %v292 = vpop.permute.xlu0 %291
    %v294 = vmul.f32 %v274, %v292
    %296 = vrot.lane.b32.xlu0 %v294, 32
    %v297 = vpop.permute.xlu0 %296
    %vm299 = vcmask 257026
    %300 = vst.msk [vmem:[#allocation2] sm:$0xc] %vm299, %v297
    %v301 = vrot.slane %v294, 2
    %302 = vrot.lane.b32.xlu0 %v301, 32
    %v303 = vpop.permute.xlu0 %302
    %v304 = vsel %vm154, %v303, 0
    %306 = vmatpush.msra.mxu0 0.0
    %307 = vmatpush.msra.mxu0 0.0
    %308 = vmatpush.msra.mxu0 0.0
    %309 = vmatpush.msra.mxu0 0.0
    %310 = vmatpush.msra.mxu0 0.0
    %311 = vmatpush.msra.mxu0 0.0
    %312 = vmatpush.msra.mxu0 0.0
    %313 = vmatpush.msra.mxu0 0.0
    %314 = vmatpush.msra.mxu0 0.0
    %315 = vmatpush.msra.mxu0 0.0
    %316 = vmatpush.msra.mxu0 0.0
    %317 = vmatpush.msra.mxu0 0.0
    %318 = vmatpush.msra.mxu0 %v114
    %319 = vmatpush.msra.mxu0 %v113
    %320 = vmatpush.msra.mxu0 %v112
    %321 = vmatpush.msra.mxu0 %v111
    %322 = vmatmul.f32.gmra.mxu0 %v304
    %v323 = vpop.f32.mrf.mxu0
    %v324 = vadd.f32 0.0, %v323
    %325 = vdwg.mxu0
    %v327 = vrot.slane %v324, 4
    %v329 = vadd.f32 %v149, %v327
    %v330 = vtanh.pop %v329
    %v331 = vxor.u32 %v329, 2147483648
    %v332 = vmul.f32 %v331, 1.442695
    %v333 = vpow.pop %v332
    %v334 = vadd.f32 %v333, 1.0
    %v335 = vrcp.pop %v334
    %v336 = vmul.f32 %v334, %v335
    %v337 = vsub.f32 1.0, %v336
    %v338 = vmul.f32 %v335, %v337
    %v339 = vadd.f32 %v335, %v338
    %vm340 = vweird.f32 %v334
    %vm341 = vweird.f32 %v335
    %vm342 = vmor %vm340, %vm341
    %v343 = vsel %vm342, %v335, %v339
    %v344 = vand.u32 2147483647, %v334
    %vm345 = vcmp.eq.f32.partialorder %v344, 8.507059e+37
    %v346 = vand.u32 %v334, 2147483648
    %v347 = vor.u32 1.1754944e-38, %v346
    %v348 = vsel %vm345, %v347, %v343
    %v349 = vmul.f32 1.0, %v348
    %v350 = vsel %vm183, %v330, %v349
    %v352 = vrot.slane %v288, 6
    %v354 = vmul.f32 %v350, %v352
    %356 = vrot.lane.b32.xlu0 %v350, 64
    %v357 = vpop.permute.xlu0 %356
    %v359 = vmul.f32 %v350, %v357
    %361 = vrot.lane.b32.xlu0 %v359, 32
    %v362 = vpop.permute.xlu0 %361
    %v364 = vadd.f32 %v354, %v362
    %v365 = vtanh.pop %v364
    %367 = vrot.lane.b32.xlu0 %v365, 64
    %v368 = vpop.permute.xlu0 %367
    %v370 = vmul.f32 %v350, %v368
    %372 = vrot.lane.b32.xlu0 %v370, 32
    %v373 = vpop.permute.xlu0 %372
    %vm375 = vcmask 259076
    %376 = vst.msk [vmem:[#allocation2] sm:$0x30] %vm375, %v373
    %v377 = vrot.slane %v370, 4
    %378 = vrot.lane.b32.xlu0 %v377, 32
    %v379 = vpop.permute.xlu0 %378
    %v380 = vsel %vm154, %v379, 0
    %382 = vmatpush.msra.mxu0 0.0
    %383 = vmatpush.msra.mxu0 0.0
    %384 = vmatpush.msra.mxu0 0.0
    %385 = vmatpush.msra.mxu0 0.0
    %386 = vmatpush.msra.mxu0 0.0
    %387 = vmatpush.msra.mxu0 0.0
    %388 = vmatpush.msra.mxu0 0.0
    %389 = vmatpush.msra.mxu0 0.0
    %390 = vmatpush.msra.mxu0 0.0
    %391 = vmatpush.msra.mxu0 0.0
    %392 = vmatpush.msra.mxu0 0.0
    %393 = vmatpush.msra.mxu0 0.0
    %394 = vmatpush.msra.mxu0 %v114
    %395 = vmatpush.msra.mxu0 %v113
    %396 = vmatpush.msra.mxu0 %v112
    %397 = vmatpush.msra.mxu0 %v111
    %398 = vmatmul.f32.gmra.mxu0 %v380
    %v399 = vpop.f32.mrf.mxu0
    %v400 = vadd.f32 0.0, %v399
    %401 = vdwg.mxu0
    %v403 = vrot.slane %v400, 2
    %v405 = vadd.f32 %v149, %v403
    %v406 = vtanh.pop %v405
    %v407 = vxor.u32 %v405, 2147483648
    %v408 = vmul.f32 %v407, 1.442695
    %v409 = vpow.pop %v408
    %v410 = vadd.f32 %v409, 1.0
    %v411 = vrcp.pop %v410
    %v412 = vmul.f32 %v410, %v411
    %v413 = vsub.f32 1.0, %v412
    %v414 = vmul.f32 %v411, %v413
    %v415 = vadd.f32 %v411, %v414
    %vm416 = vweird.f32 %v410
    %vm417 = vweird.f32 %v411
    %vm418 = vmor %vm416, %vm417
    %v419 = vsel %vm418, %v411, %v415
    %v420 = vand.u32 2147483647, %v410
    %vm421 = vcmp.eq.f32.partialorder %v420, 8.507059e+37
    %v422 = vand.u32 %v410, 2147483648
    %v423 = vor.u32 1.1754944e-38, %v422
    %v424 = vsel %vm421, %v423, %v419
    %v425 = vmul.f32 1.0, %v424
    %v426 = vsel %vm183, %v406, %v425
    %v428 = vrot.slane %v364, 6
    %v430 = vmul.f32 %v426, %v428
    %432 = vrot.lane.b32.xlu0 %v426, 64
    %v433 = vpop.permute.xlu0 %432
    %v435 = vmul.f32 %v426, %v433
    %437 = vrot.lane.b32.xlu0 %v435, 32
    %v438 = vpop.permute.xlu0 %437
    %v440 = vadd.f32 %v430, %v438
    %v441 = vtanh.pop %v440
    %443 = vrot.lane.b32.xlu0 %v441, 64
    %v444 = vpop.permute.xlu0 %443
    %v446 = vmul.f32 %v426, %v444
    %448 = vrot.lane.b32.xlu0 %v446, 32
    %v449 = vpop.permute.xlu0 %448
    %vm451 = vcmask 261126
    %452 = vst.msk [vmem:[#allocation2] sm:$0xc0] %vm451, %v449
    %v453 = vrot.slane %v446, 6
    %454 = vrot.lane.b32.xlu0 %v453, 32
    %v455 = vpop.permute.xlu0 %454
    %v456 = vsel %vm154, %v455, 0
    %458 = vmatpush.msra.mxu0 0.0
    %459 = vmatpush.msra.mxu0 0.0
    %460 = vmatpush.msra.mxu0 0.0
    %461 = vmatpush.msra.mxu0 0.0
    %462 = vmatpush.msra.mxu0 0.0
    %463 = vmatpush.msra.mxu0 0.0
    %464 = vmatpush.msra.mxu0 0.0
    %465 = vmatpush.msra.mxu0 0.0
    %466 = vmatpush.msra.mxu0 0.0
    %467 = vmatpush.msra.mxu0 0.0
    %468 = vmatpush.msra.mxu0 0.0
    %469 = vmatpush.msra.mxu0 0.0
    %470 = vmatpush.msra.mxu0 %v114
    %471 = vmatpush.msra.mxu0 %v113
    %472 = vmatpush.msra.mxu0 %v112
    %473 = vmatpush.msra.mxu0 %v111
    %474 = vmatmul.f32.gmra.mxu0 %v456
    %v475 = vpop.f32.mrf.mxu0
    %v476 = vadd.f32 0.0, %v475
    %477 = vdwg.mxu0
    %v478 = vadd.f32 %v152, %v476
    %v479 = vtanh.pop %v478
    %v480 = vxor.u32 %v478, 2147483648
    %v481 = vmul.f32 %v480, 1.442695
    %v482 = vpow.pop %v481
    %v483 = vadd.f32 %v482, 1.0
    %v484 = vrcp.pop %v483
    %v485 = vmul.f32 %v483, %v484
    %v486 = vsub.f32 1.0, %v485
    %v487 = vmul.f32 %v484, %v486
    %v488 = vadd.f32 %v484, %v487
    %vm489 = vweird.f32 %v483
    %vm490 = vweird.f32 %v484
    %vm491 = vmor %vm489, %vm490
    %v492 = vsel %vm491, %v484, %v488
    %v493 = vand.u32 2147483647, %v483
    %vm494 = vcmp.eq.f32.partialorder %v493, 8.507059e+37
    %v495 = vand.u32 %v483, 2147483648
    %v496 = vor.u32 1.1754944e-38, %v495
    %v497 = vsel %vm494, %v496, %v492
    %v498 = vmul.f32 1.0, %v497
    %v499 = vsel %vm183, %v479, %v498
    %v501 = vrot.slane %v440, 6
    %v503 = vmul.f32 %v499, %v501
    %505 = vrot.lane.b32.xlu0 %v499, 64
    %v506 = vpop.permute.xlu0 %505
    %v508 = vmul.f32 %v499, %v506
    %510 = vrot.lane.b32.xlu0 %v508, 32
    %v511 = vpop.permute.xlu0 %510
    %v513 = vadd.f32 %v503, %v511
    %v514 = vtanh.pop %v513
    %516 = vrot.lane.b32.xlu0 %v514, 64
    %v517 = vpop.permute.xlu0 %516
    %v519 = vmul.f32 %v499, %v517
    %521 = vrot.lane.b32.xlu0 %v519, 32
    %v522 = vpop.permute.xlu0 %521
    %524 = vst.msk [vmem:[#allocation2 + $0x8] sm:$0x3] %vm226, %v522
    %v525 = vsel %vm154, %v522, 0
    %527 = vmatpush.msra.mxu0 0.0
    %528 = vmatpush.msra.mxu0 0.0
    %529 = vmatpush.msra.mxu0 0.0
    %530 = vmatpush.msra.mxu0 0.0
    %531 = vmatpush.msra.mxu0 0.0
    %532 = vmatpush.msra.mxu0 0.0
    %533 = vmatpush.msra.mxu0 0.0
    %534 = vmatpush.msra.mxu0 0.0
    %535 = vmatpush.msra.mxu0 0.0
    %536 = vmatpush.msra.mxu0 0.0
    %537 = vmatpush.msra.mxu0 0.0
    %538 = vmatpush.msra.mxu0 0.0
    %539 = vmatpush.msra.mxu0 %v114
    %540 = vmatpush.msra.mxu0 %v113
    %541 = vmatpush.msra.mxu0 %v112
    %542 = vmatpush.msra.mxu0 %v111
    %543 = vmatmul.f32.gmra.mxu0 %v525
    %v544 = vpop.f32.mrf.mxu0
    %v545 = vadd.f32 0.0, %v544
    %546 = vdwg.mxu0
    %v548 = vrot.slane %v545, 6
    %v550 = vadd.f32 %v152, %v548
    %v551 = vtanh.pop %v550
    %v552 = vxor.u32 %v550, 2147483648
    %v553 = vmul.f32 %v552, 1.442695
    %v554 = vpow.pop %v553
    %v555 = vadd.f32 %v554, 1.0
    %v556 = vrcp.pop %v555
    %v557 = vmul.f32 %v555, %v556
    %v558 = vsub.f32 1.0, %v557
    %v559 = vmul.f32 %v556, %v558
    %v560 = vadd.f32 %v556, %v559
    %vm561 = vweird.f32 %v555
    %vm562 = vweird.f32 %v556
    %vm563 = vmor %vm561, %vm562
    %v564 = vsel %vm563, %v556, %v560
    %v565 = vand.u32 2147483647, %v555
    %vm566 = vcmp.eq.f32.partialorder %v565, 8.507059e+37
    %v567 = vand.u32 %v555, 2147483648
    %v568 = vor.u32 1.1754944e-38, %v567
    %v569 = vsel %vm566, %v568, %v564
    %v570 = vmul.f32 1.0, %v569
    %v571 = vsel %vm183, %v551, %v570
    %v573 = vrot.slane %v513, 6
    %v575 = vmul.f32 %v571, %v573
    %577 = vrot.lane.b32.xlu0 %v571, 64
    %v578 = vpop.permute.xlu0 %577
    %v580 = vmul.f32 %v571, %v578
    %582 = vrot.lane.b32.xlu0 %v580, 32
    %v583 = vpop.permute.xlu0 %582
    %v585 = vadd.f32 %v575, %v583
    %v586 = vtanh.pop %v585
    %588 = vrot.lane.b32.xlu0 %v586, 64
    %v589 = vpop.permute.xlu0 %588
    %v591 = vmul.f32 %v571, %v589
    %593 = vrot.lane.b32.xlu0 %v591, 32
    %v594 = vpop.permute.xlu0 %593
    %596 = vst.msk [vmem:[#allocation2 + $0x8] sm:$0xc] %vm299, %v594
    %v597 = vrot.slane %v591, 2
    %598 = vrot.lane.b32.xlu0 %v597, 32
    %v599 = vpop.permute.xlu0 %598
    %v600 = vsel %vm154, %v599, 0
    %602 = vmatpush.msra.mxu0 0.0
    %603 = vmatpush.msra.mxu0 0.0
    %604 = vmatpush.msra.mxu0 0.0
    %605 = vmatpush.msra.mxu0 0.0
    %606 = vmatpush.msra.mxu0 0.0
    %607 = vmatpush.msra.mxu0 0.0
    %608 = vmatpush.msra.mxu0 0.0
    %609 = vmatpush.msra.mxu0 0.0
    %610 = vmatpush.msra.mxu0 0.0
    %611 = vmatpush.msra.mxu0 0.0
    %612 = vmatpush.msra.mxu0 0.0
    %613 = vmatpush.msra.mxu0 0.0
    %614 = vmatpush.msra.mxu0 %v114
    %615 = vmatpush.msra.mxu0 %v113
    %616 = vmatpush.msra.mxu0 %v112
    %617 = vmatpush.msra.mxu0 %v111
    %618 = vmatmul.f32.gmra.mxu0 %v600
    %v619 = vpop.f32.mrf.mxu0
    %v620 = vadd.f32 0.0, %v619
    %621 = vdwg.mxu0
    %v623 = vrot.slane %v620, 4
    %v625 = vadd.f32 %v152, %v623
    %v626 = vtanh.pop %v625
    %v627 = vxor.u32 %v625, 2147483648
    %v628 = vmul.f32 %v627, 1.442695
    %v629 = vpow.pop %v628
    %v630 = vadd.f32 %v629, 1.0
    %v631 = vrcp.pop %v630
    %v632 = vmul.f32 %v630, %v631
    %v633 = vsub.f32 1.0, %v632
    %v634 = vmul.f32 %v631, %v633
    %v635 = vadd.f32 %v631, %v634
    %vm636 = vweird.f32 %v630
    %vm637 = vweird.f32 %v631
    %vm638 = vmor %vm636, %vm637
    %v639 = vsel %vm638, %v631, %v635
    %v640 = vand.u32 2147483647, %v630
    %vm641 = vcmp.eq.f32.partialorder %v640, 8.507059e+37
    %v642 = vand.u32 %v630, 2147483648
    %v643 = vor.u32 1.1754944e-38, %v642
    %v644 = vsel %vm641, %v643, %v639
    %v645 = vmul.f32 1.0, %v644
    %v646 = vsel %vm183, %v626, %v645
    %v648 = vrot.slane %v585, 6
    %v650 = vmul.f32 %v646, %v648
    %652 = vrot.lane.b32.xlu0 %v646, 64
    %v653 = vpop.permute.xlu0 %652
    %v655 = vmul.f32 %v646, %v653
    %657 = vrot.lane.b32.xlu0 %v655, 32
    %v658 = vpop.permute.xlu0 %657
    %v660 = vadd.f32 %v650, %v658
    %v661 = vtanh.pop %v660
    %663 = vrot.lane.b32.xlu0 %v661, 64
    %v664 = vpop.permute.xlu0 %663
    %v666 = vmul.f32 %v646, %v664
    %668 = vrot.lane.b32.xlu0 %v666, 32
    %v669 = vpop.permute.xlu0 %668
    %671 = vst.msk [vmem:[#allocation2 + $0x8] sm:$0x30] %vm375, %v669
    %v672 = vrot.slane %v666, 4
    %673 = vrot.lane.b32.xlu0 %v672, 32
    %v674 = vpop.permute.xlu0 %673
    %v675 = vsel %vm154, %v674, 0
    %677 = vmatpush.msra.mxu0 0.0
    %678 = vmatpush.msra.mxu0 0.0
    %679 = vmatpush.msra.mxu0 0.0
    %680 = vmatpush.msra.mxu0 0.0
    %681 = vmatpush.msra.mxu0 0.0
    %682 = vmatpush.msra.mxu0 0.0
    %683 = vmatpush.msra.mxu0 0.0
    %684 = vmatpush.msra.mxu0 0.0
    %685 = vmatpush.msra.mxu0 0.0
    %686 = vmatpush.msra.mxu0 0.0
    %687 = vmatpush.msra.mxu0 0.0
    %688 = vmatpush.msra.mxu0 0.0
    %689 = vmatpush.msra.mxu0 %v114
    %690 = vmatpush.msra.mxu0 %v113
    %691 = vmatpush.msra.mxu0 %v112
    %692 = vmatpush.msra.mxu0 %v111
    %693 = vmatmul.f32.gmra.mxu0 %v675
    %v694 = vpop.f32.mrf.mxu0
    %v695 = vadd.f32 0.0, %v694
    %696 = vdwg.mxu0
    %v698 = vrot.slane %v695, 2
    %v700 = vadd.f32 %v152, %v698
    %v701 = vtanh.pop %v700
    %v702 = vxor.u32 %v700, 2147483648
    %v703 = vmul.f32 %v702, 1.442695
    %v704 = vpow.pop %v703
    %v705 = vadd.f32 %v704, 1.0
    %v706 = vrcp.pop %v705
    %v707 = vmul.f32 %v705, %v706
    %v708 = vsub.f32 1.0, %v707
    %v709 = vmul.f32 %v706, %v708
    %v710 = vadd.f32 %v706, %v709
    %vm711 = vweird.f32 %v705
    %vm712 = vweird.f32 %v706
    %vm713 = vmor %vm711, %vm712
    %v714 = vsel %vm713, %v706, %v710
    %v715 = vand.u32 2147483647, %v705
    %vm716 = vcmp.eq.f32.partialorder %v715, 8.507059e+37
    %v717 = vand.u32 %v705, 2147483648
    %v718 = vor.u32 1.1754944e-38, %v717
    %v719 = vsel %vm716, %v718, %v714
    %v720 = vmul.f32 1.0, %v719
    %v721 = vsel %vm183, %v701, %v720
    %v723 = vrot.slane %v660, 6
    %v725 = vmul.f32 %v721, %v723
    %727 = vrot.lane.b32.xlu0 %v721, 64
    %v728 = vpop.permute.xlu0 %727
    %v730 = vmul.f32 %v721, %v728
    %732 = vrot.lane.b32.xlu0 %v730, 32
    %v733 = vpop.permute.xlu0 %732
    %v735 = vadd.f32 %v725, %v733
    %v736 = vtanh.pop %v735
    %738 = vrot.lane.b32.xlu0 %v736, 64
    %v739 = vpop.permute.xlu0 %738
    %v741 = vmul.f32 %v721, %v739
    %743 = vrot.lane.b32.xlu0 %v741, 32
    %v744 = vpop.permute.xlu0 %743
    %746 = vst.msk [vmem:[#allocation2 + $0x8] sm:$0xc0] %vm451, %v744
    %747 = vst.msk [vmem:[#allocation11 - $0x6] sm:$0xc0] %vm451, %v744
    %749 = vrot.lane.b32.xlu0 %v735, 96
    %v750 = vpop.permute.xlu0 %749
    %752 = vst.msk [vmem:[#allocation12 - $0x6] sm:$0xc0] %vm451, %v750
    %v753 = vld [vmem:[#allocation2] sm:$0xff]
    %v754 = vld [vmem:[#allocation2 + $0x8] sm:$0xff]
    %v755 = vld [vmem:[#allocation6] sm:$0xff]
    %v756 = vld [vmem:[#allocation6 + $0x8] sm:$0xff]
    %v757 = vld [vmem:[#allocation6 + $0x10] sm:$0xff]
    %v758 = vld [vmem:[#allocation6 + $0x18] sm:$0xff]
    %v759 = vld [vmem:[#allocation3] sm:$0xff]
    %v760 = vld [vmem:[#allocation3 + $0x8] sm:$0xff]
    %v761 = vld [vmem:[#allocation3 + $0x10] sm:$0xff]
    %v762 = vld [vmem:[#allocation3 + $0x18] sm:$0xff]
    %v763 = vld [vmem:[%s6] sm:$0x1]
    %v765 = vperm.slane %v763, 0
    %v768 = vsel %vm154, %v753, 0
    %v771 = vsel %vm154, %v754, 0
    %773 = vmatpush.msra.mxu0 0.0
    %774 = vmatpush.msra.mxu0 0.0
    %775 = vmatpush.msra.mxu0 0.0
    %776 = vmatpush.msra.mxu0 0.0
    %777 = vmatpush.msra.mxu0 0.0
    %778 = vmatpush.msra.mxu0 0.0
    %779 = vmatpush.msra.mxu0 0.0
    %780 = vmatpush.msra.mxu0 0.0
    %781 = vmatpush.msra.mxu0 0.0
    %782 = vmatpush.msra.mxu0 0.0
    %783 = vmatpush.msra.mxu0 0.0
    %784 = vmatpush.msra.mxu0 0.0
    %785 = vmatpush.msra.mxu0 %v762
    %786 = vmatpush.msra.mxu0 %v761
    %787 = vmatpush.msra.mxu0 %v760
    %788 = vmatpush.msra.mxu0 %v759
    %789 = vmatmul.f32.gmra.mxu0 %v768
    %v790 = vpop.f32.mrf.mxu0
    %v791 = vadd.f32 %v765, %v790
    %792 = vmatmul.f32.gmra.mxu0 %v771
    %v793 = vpop.f32.mrf.mxu0
    %v794 = vadd.f32 %v765, %v793
    %795 = vdwg.mxu0
    %796 = vmatpush.msra.mxu0 0.0
    %797 = vmatpush.msra.mxu0 0.0
    %798 = vmatpush.msra.mxu0 0.0
    %799 = vmatpush.msra.mxu0 0.0
    %800 = vmatpush.msra.mxu0 0.0
    %801 = vmatpush.msra.mxu0 0.0
    %802 = vmatpush.msra.mxu0 0.0
    %803 = vmatpush.msra.mxu0 0.0
    %804 = vmatpush.msra.mxu0 0.0
    %805 = vmatpush.msra.mxu0 0.0
    %806 = vmatpush.msra.mxu0 0.0
    %807 = vmatpush.msra.mxu0 0.0
    %808 = vmatpush.msra.mxu0 %v758
    %809 = vmatpush.msra.mxu0 %v757
    %810 = vmatpush.msra.mxu0 %v756
    %811 = vmatpush.msra.mxu0 %v755
    %812 = vmatmul.f32.gmra.mxu0 %v156
    %v813 = vpop.f32.mrf.mxu0
    %v814 = vadd.f32 0.0, %v813
    %815 = vdwg.mxu0
    %v816 = vadd.f32 %v791, %v814
    %v817 = vtanh.pop %v816
    %v818 = vxor.u32 %v816, 2147483648
    %v819 = vmul.f32 %v818, 1.442695
    %v820 = vpow.pop %v819
    %v821 = vadd.f32 %v820, 1.0
    %v822 = vrcp.pop %v821
    %v823 = vmul.f32 %v821, %v822
    %v824 = vsub.f32 1.0, %v823
    %v825 = vmul.f32 %v822, %v824
    %v826 = vadd.f32 %v822, %v825
    %vm827 = vweird.f32 %v821
    %vm828 = vweird.f32 %v822
    %vm829 = vmor %vm827, %vm828
    %v830 = vsel %vm829, %v822, %v826
    %v831 = vand.u32 2147483647, %v821
    %vm832 = vcmp.eq.f32.partialorder %v831, 8.507059e+37
    %v833 = vand.u32 %v821, 2147483648
    %v834 = vor.u32 1.1754944e-38, %v833
    %v835 = vsel %vm832, %v834, %v830
    %v836 = vmul.f32 1.0, %v835
    %v837 = vsel %vm183, %v817, %v836
    %v838 = vmul.f32 %v837, 0.0
    %840 = vrot.lane.b32.xlu0 %v837, 64
    %v841 = vpop.permute.xlu0 %840
    %v843 = vmul.f32 %v837, %v841
    %845 = vrot.lane.b32.xlu0 %v843, 32
    %v846 = vpop.permute.xlu0 %845
    %v848 = vadd.f32 %v838, %v846
    %v849 = vtanh.pop %v848
    %851 = vrot.lane.b32.xlu0 %v849, 64
    %v852 = vpop.permute.xlu0 %851
    %v854 = vmul.f32 %v837, %v852
    %856 = vrot.lane.b32.xlu0 %v854, 32
    %v857 = vpop.permute.xlu0 %856
    %859 = vst.msk [vmem:[#allocation2] sm:$0x3] %vm226, %v857
    %v860 = vsel %vm154, %v857, 0
    %862 = vmatpush.msra.mxu0 0.0
    %863 = vmatpush.msra.mxu0 0.0
    %864 = vmatpush.msra.mxu0 0.0
    %865 = vmatpush.msra.mxu0 0.0
    %866 = vmatpush.msra.mxu0 0.0
    %867 = vmatpush.msra.mxu0 0.0
    %868 = vmatpush.msra.mxu0 0.0
    %869 = vmatpush.msra.mxu0 0.0
    %870 = vmatpush.msra.mxu0 0.0
    %871 = vmatpush.msra.mxu0 0.0
    %872 = vmatpush.msra.mxu0 0.0
    %873 = vmatpush.msra.mxu0 0.0
    %874 = vmatpush.msra.mxu0 %v758
    %875 = vmatpush.msra.mxu0 %v757
    %876 = vmatpush.msra.mxu0 %v756
    %877 = vmatpush.msra.mxu0 %v755
    %878 = vmatmul.f32.gmra.mxu0 %v860
    %v879 = vpop.f32.mrf.mxu0
    %v880 = vadd.f32 0.0, %v879
    %881 = vdwg.mxu0
    %v883 = vrot.slane %v880, 6
    %v885 = vadd.f32 %v791, %v883
    %v886 = vtanh.pop %v885
    %v887 = vxor.u32 %v885, 2147483648
    %v888 = vmul.f32 %v887, 1.442695
    %v889 = vpow.pop %v888
    %v890 = vadd.f32 %v889, 1.0
    %v891 = vrcp.pop %v890
    %v892 = vmul.f32 %v890, %v891
    %v893 = vsub.f32 1.0, %v892
    %v894 = vmul.f32 %v891, %v893
    %v895 = vadd.f32 %v891, %v894
    %vm896 = vweird.f32 %v890
    %vm897 = vweird.f32 %v891
    %vm898 = vmor %vm896, %vm897
    %v899 = vsel %vm898, %v891, %v895
    %v900 = vand.u32 2147483647, %v890
    %vm901 = vcmp.eq.f32.partialorder %v900, 8.507059e+37
    %v902 = vand.u32 %v890, 2147483648
    %v903 = vor.u32 1.1754944e-38, %v902
    %v904 = vsel %vm901, %v903, %v899
    %v905 = vmul.f32 1.0, %v904
    %v906 = vsel %vm183, %v886, %v905
    %v908 = vrot.slane %v848, 6
    %v910 = vmul.f32 %v906, %v908
    %912 = vrot.lane.b32.xlu0 %v906, 64
    %v913 = vpop.permute.xlu0 %912
    %v915 = vmul.f32 %v906, %v913
    %917 = vrot.lane.b32.xlu0 %v915, 32
    %v918 = vpop.permute.xlu0 %917
    %v920 = vadd.f32 %v910, %v918
    %v921 = vtanh.pop %v920
    %923 = vrot.lane.b32.xlu0 %v921, 64
    %v924 = vpop.permute.xlu0 %923
    %v926 = vmul.f32 %v906, %v924
    %928 = vrot.lane.b32.xlu0 %v926, 32
    %v929 = vpop.permute.xlu0 %928
    %931 = vst.msk [vmem:[#allocation2] sm:$0xc] %vm299, %v929
    %v932 = vrot.slane %v926, 2
    %933 = vrot.lane.b32.xlu0 %v932, 32
    %v934 = vpop.permute.xlu0 %933
    %v935 = vsel %vm154, %v934, 0
    %937 = vmatpush.msra.mxu0 0.0
    %938 = vmatpush.msra.mxu0 0.0
    %939 = vmatpush.msra.mxu0 0.0
    %940 = vmatpush.msra.mxu0 0.0
    %941 = vmatpush.msra.mxu0 0.0
    %942 = vmatpush.msra.mxu0 0.0
    %943 = vmatpush.msra.mxu0 0.0
    %944 = vmatpush.msra.mxu0 0.0
    %945 = vmatpush.msra.mxu0 0.0
    %946 = vmatpush.msra.mxu0 0.0
    %947 = vmatpush.msra.mxu0 0.0
    %948 = vmatpush.msra.mxu0 0.0
    %949 = vmatpush.msra.mxu0 %v758
    %950 = vmatpush.msra.mxu0 %v757
    %951 = vmatpush.msra.mxu0 %v756
    %952 = vmatpush.msra.mxu0 %v755
    %953 = vmatmul.f32.gmra.mxu0 %v935
    %v954 = vpop.f32.mrf.mxu0
    %v955 = vadd.f32 0.0, %v954
    %956 = vdwg.mxu0
    %v958 = vrot.slane %v955, 4
    %v960 = vadd.f32 %v791, %v958
    %v961 = vtanh.pop %v960
    %v962 = vxor.u32 %v960, 2147483648
    %v963 = vmul.f32 %v962, 1.442695
    %v964 = vpow.pop %v963
    %v965 = vadd.f32 %v964, 1.0
    %v966 = vrcp.pop %v965
    %v967 = vmul.f32 %v965, %v966
    %v968 = vsub.f32 1.0, %v967
    %v969 = vmul.f32 %v966, %v968
    %v970 = vadd.f32 %v966, %v969
    %vm971 = vweird.f32 %v965
    %vm972 = vweird.f32 %v966
    %vm973 = vmor %vm971, %vm972
    %v974 = vsel %vm973, %v966, %v970
    %v975 = vand.u32 2147483647, %v965
    %vm976 = vcmp.eq.f32.partialorder %v975, 8.507059e+37
    %v977 = vand.u32 %v965, 2147483648
    %v978 = vor.u32 1.1754944e-38, %v977
    %v979 = vsel %vm976, %v978, %v974
    %v980 = vmul.f32 1.0, %v979
    %v981 = vsel %vm183, %v961, %v980
    %v983 = vrot.slane %v920, 6
    %v985 = vmul.f32 %v981, %v983
    %987 = vrot.lane.b32.xlu0 %v981, 64
    %v988 = vpop.permute.xlu0 %987
    %v990 = vmul.f32 %v981, %v988
    %992 = vrot.lane.b32.xlu0 %v990, 32
    %v993 = vpop.permute.xlu0 %992
    %v995 = vadd.f32 %v985, %v993
    %v996 = vtanh.pop %v995
    %998 = vrot.lane.b32.xlu0 %v996, 64
    %v999 = vpop.permute.xlu0 %998
    %v1001 = vmul.f32 %v981, %v999
    %1003 = vrot.lane.b32.xlu0 %v1001, 32
    %v1004 = vpop.permute.xlu0 %1003
    %1006 = vst.msk [vmem:[#allocation2] sm:$0x30] %vm375, %v1004
    %v1007 = vrot.slane %v1001, 4
    %1008 = vrot.lane.b32.xlu0 %v1007, 32
    %v1009 = vpop.permute.xlu0 %1008
    %v1010 = vsel %vm154, %v1009, 0
    %1012 = vmatpush.msra.mxu0 0.0
    %1013 = vmatpush.msra.mxu0 0.0
    %1014 = vmatpush.msra.mxu0 0.0
    %1015 = vmatpush.msra.mxu0 0.0
    %1016 = vmatpush.msra.mxu0 0.0
    %1017 = vmatpush.msra.mxu0 0.0
    %1018 = vmatpush.msra.mxu0 0.0
    %1019 = vmatpush.msra.mxu0 0.0
    %1020 = vmatpush.msra.mxu0 0.0
    %1021 = vmatpush.msra.mxu0 0.0
    %1022 = vmatpush.msra.mxu0 0.0
    %1023 = vmatpush.msra.mxu0 0.0
    %1024 = vmatpush.msra.mxu0 %v758
    %1025 = vmatpush.msra.mxu0 %v757
    %1026 = vmatpush.msra.mxu0 %v756
    %1027 = vmatpush.msra.mxu0 %v755
    %1028 = vmatmul.f32.gmra.mxu0 %v1010
    %v1029 = vpop.f32.mrf.mxu0
    %v1030 = vadd.f32 0.0, %v1029
    %1031 = vdwg.mxu0
    %v1033 = vrot.slane %v1030, 2
    %v1035 = vadd.f32 %v791, %v1033
    %v1036 = vtanh.pop %v1035
    %v1037 = vxor.u32 %v1035, 2147483648
    %v1038 = vmul.f32 %v1037, 1.442695
    %v1039 = vpow.pop %v1038
    %v1040 = vadd.f32 %v1039, 1.0
    %v1041 = vrcp.pop %v1040
    %v1042 = vmul.f32 %v1040, %v1041
    %v1043 = vsub.f32 1.0, %v1042
    %v1044 = vmul.f32 %v1041, %v1043
    %v1045 = vadd.f32 %v1041, %v1044
    %vm1046 = vweird.f32 %v1040
    %vm1047 = vweird.f32 %v1041
    %vm1048 = vmor %vm1046, %vm1047
    %v1049 = vsel %vm1048, %v1041, %v1045
    %v1050 = vand.u32 2147483647, %v1040
    %vm1051 = vcmp.eq.f32.partialorder %v1050, 8.507059e+37
    %v1052 = vand.u32 %v1040, 2147483648
    %v1053 = vor.u32 1.1754944e-38, %v1052
    %v1054 = vsel %vm1051, %v1053, %v1049
    %v1055 = vmul.f32 1.0, %v1054
    %v1056 = vsel %vm183, %v1036, %v1055
    %v1058 = vrot.slane %v995, 6
    %v1060 = vmul.f32 %v1056, %v1058
    %1062 = vrot.lane.b32.xlu0 %v1056, 64
    %v1063 = vpop.permute.xlu0 %1062
    %v1065 = vmul.f32 %v1056, %v1063
    %1067 = vrot.lane.b32.xlu0 %v1065, 32
    %v1068 = vpop.permute.xlu0 %1067
    %v1070 = vadd.f32 %v1060, %v1068
    %v1071 = vtanh.pop %v1070
    %1073 = vrot.lane.b32.xlu0 %v1071, 64
    %v1074 = vpop.permute.xlu0 %1073
    %v1076 = vmul.f32 %v1056, %v1074
    %1078 = vrot.lane.b32.xlu0 %v1076, 32
    %v1079 = vpop.permute.xlu0 %1078
    %1081 = vst.msk [vmem:[#allocation2] sm:$0xc0] %vm451, %v1079
    %v1082 = vrot.slane %v1076, 6
    %1083 = vrot.lane.b32.xlu0 %v1082, 32
    %v1084 = vpop.permute.xlu0 %1083
    %v1085 = vsel %vm154, %v1084, 0
    %1087 = vmatpush.msra.mxu0 0.0
    %1088 = vmatpush.msra.mxu0 0.0
    %1089 = vmatpush.msra.mxu0 0.0
    %1090 = vmatpush.msra.mxu0 0.0
    %1091 = vmatpush.msra.mxu0 0.0
    %1092 = vmatpush.msra.mxu0 0.0
    %1093 = vmatpush.msra.mxu0 0.0
    %1094 = vmatpush.msra.mxu0 0.0
    %1095 = vmatpush.msra.mxu0 0.0
    %1096 = vmatpush.msra.mxu0 0.0
    %1097 = vmatpush.msra.mxu0 0.0
    %1098 = vmatpush.msra.mxu0 0.0
    %1099 = vmatpush.msra.mxu0 %v758
    %1100 = vmatpush.msra.mxu0 %v757
    %1101 = vmatpush.msra.mxu0 %v756
    %1102 = vmatpush.msra.mxu0 %v755
    %1103 = vmatmul.f32.gmra.mxu0 %v1085
    %v1104 = vpop.f32.mrf.mxu0
    %v1105 = vadd.f32 0.0, %v1104
    %1106 = vdwg.mxu0
    %v1107 = vadd.f32 %v794, %v1105
    %v1108 = vtanh.pop %v1107
    %v1109 = vxor.u32 %v1107, 2147483648
    %v1110 = vmul.f32 %v1109, 1.442695
    %v1111 = vpow.pop %v1110
    %v1112 = vadd.f32 %v1111, 1.0
    %v1113 = vrcp.pop %v1112
    %v1114 = vmul.f32 %v1112, %v1113
    %v1115 = vsub.f32 1.0, %v1114
    %v1116 = vmul.f32 %v1113, %v1115
    %v1117 = vadd.f32 %v1113, %v1116
    %vm1118 = vweird.f32 %v1112
    %vm1119 = vweird.f32 %v1113
    %vm1120 = vmor %vm1118, %vm1119
    %v1121 = vsel %vm1120, %v1113, %v1117
    %v1122 = vand.u32 2147483647, %v1112
    %vm1123 = vcmp.eq.f32.partialorder %v1122, 8.507059e+37
    %v1124 = vand.u32 %v1112, 2147483648
    %v1125 = vor.u32 1.1754944e-38, %v1124
    %v1126 = vsel %vm1123, %v1125, %v1121
    %v1127 = vmul.f32 1.0, %v1126
    %v1128 = vsel %vm183, %v1108, %v1127
    %v1130 = vrot.slane %v1070, 6
    %v1132 = vmul.f32 %v1128, %v1130
    %1134 = vrot.lane.b32.xlu0 %v1128, 64
    %v1135 = vpop.permute.xlu0 %1134
    %v1137 = vmul.f32 %v1128, %v1135
    %1139 = vrot.lane.b32.xlu0 %v1137, 32
    %v1140 = vpop.permute.xlu0 %1139
    %v1142 = vadd.f32 %v1132, %v1140
    %v1143 = vtanh.pop %v1142
    %1145 = vrot.lane.b32.xlu0 %v1143, 64
    %v1146 = vpop.permute.xlu0 %1145
    %v1148 = vmul.f32 %v1128, %v1146
    %1150 = vrot.lane.b32.xlu0 %v1148, 32
    %v1151 = vpop.permute.xlu0 %1150
    %1153 = vst.msk [vmem:[#allocation2 + $0x8] sm:$0x3] %vm226, %v1151
    %v1154 = vsel %vm154, %v1151, 0
    %1156 = vmatpush.msra.mxu0 0.0
    %1157 = vmatpush.msra.mxu0 0.0
    %1158 = vmatpush.msra.mxu0 0.0
    %1159 = vmatpush.msra.mxu0 0.0
    %1160 = vmatpush.msra.mxu0 0.0
    %1161 = vmatpush.msra.mxu0 0.0
    %1162 = vmatpush.msra.mxu0 0.0
    %1163 = vmatpush.msra.mxu0 0.0
    %1164 = vmatpush.msra.mxu0 0.0
    %1165 = vmatpush.msra.mxu0 0.0
    %1166 = vmatpush.msra.mxu0 0.0
    %1167 = vmatpush.msra.mxu0 0.0
    %1168 = vmatpush.msra.mxu0 %v758
    %1169 = vmatpush.msra.mxu0 %v757
    %1170 = vmatpush.msra.mxu0 %v756
    %1171 = vmatpush.msra.mxu0 %v755
    %1172 = vmatmul.f32.gmra.mxu0 %v1154
    %v1173 = vpop.f32.mrf.mxu0
    %v1174 = vadd.f32 0.0, %v1173
    %1175 = vdwg.mxu0
    %v1177 = vrot.slane %v1174, 6
    %v1179 = vadd.f32 %v794, %v1177
    %v1180 = vtanh.pop %v1179
    %v1181 = vxor.u32 %v1179, 2147483648
    %v1182 = vmul.f32 %v1181, 1.442695
    %v1183 = vpow.pop %v1182
    %v1184 = vadd.f32 %v1183, 1.0
    %v1185 = vrcp.pop %v1184
    %v1186 = vmul.f32 %v1184, %v1185
    %v1187 = vsub.f32 1.0, %v1186
    %v1188 = vmul.f32 %v1185, %v1187
    %v1189 = vadd.f32 %v1185, %v1188
    %vm1190 = vweird.f32 %v1184
    %vm1191 = vweird.f32 %v1185
    %vm1192 = vmor %vm1190, %vm1191
    %v1193 = vsel %vm1192, %v1185, %v1189
    %v1194 = vand.u32 2147483647, %v1184
    %vm1195 = vcmp.eq.f32.partialorder %v1194, 8.507059e+37
    %v1196 = vand.u32 %v1184, 2147483648
    %v1197 = vor.u32 1.1754944e-38, %v1196
    %v1198 = vsel %vm1195, %v1197, %v1193
    %v1199 = vmul.f32 1.0, %v1198
    %v1200 = vsel %vm183, %v1180, %v1199
    %v1202 = vrot.slane %v1142, 6
    %v1204 = vmul.f32 %v1200, %v1202
    %1206 = vrot.lane.b32.xlu0 %v1200, 64
    %v1207 = vpop.permute.xlu0 %1206
    %v1209 = vmul.f32 %v1200, %v1207
    %1211 = vrot.lane.b32.xlu0 %v1209, 32
    %v1212 = vpop.permute.xlu0 %1211
    %v1214 = vadd.f32 %v1204, %v1212
    %v1215 = vtanh.pop %v1214
    %1217 = vrot.lane.b32.xlu0 %v1215, 64
    %v1218 = vpop.permute.xlu0 %1217
    %v1220 = vmul.f32 %v1200, %v1218
    %1222 = vrot.lane.b32.xlu0 %v1220, 32
    %v1223 = vpop.permute.xlu0 %1222
    %1225 = vst.msk [vmem:[#allocation2 + $0x8] sm:$0xc] %vm299, %v1223
    %v1226 = vrot.slane %v1220, 2
    %1227 = vrot.lane.b32.xlu0 %v1226, 32
    %v1228 = vpop.permute.xlu0 %1227
    %v1229 = vsel %vm154, %v1228, 0
    %1231 = vmatpush.msra.mxu0 0.0
    %1232 = vmatpush.msra.mxu0 0.0
    %1233 = vmatpush.msra.mxu0 0.0
    %1234 = vmatpush.msra.mxu0 0.0
    %1235 = vmatpush.msra.mxu0 0.0
    %1236 = vmatpush.msra.mxu0 0.0
    %1237 = vmatpush.msra.mxu0 0.0
    %1238 = vmatpush.msra.mxu0 0.0
    %1239 = vmatpush.msra.mxu0 0.0
    %1240 = vmatpush.msra.mxu0 0.0
    %1241 = vmatpush.msra.mxu0 0.0
    %1242 = vmatpush.msra.mxu0 0.0
    %1243 = vmatpush.msra.mxu0 %v758
    %1244 = vmatpush.msra.mxu0 %v757
    %1245 = vmatpush.msra.mxu0 %v756
    %1246 = vmatpush.msra.mxu0 %v755
    %1247 = vmatmul.f32.gmra.mxu0 %v1229
    %v1248 = vpop.f32.mrf.mxu0
    %v1249 = vadd.f32 0.0, %v1248
    %1250 = vdwg.mxu0
    %v1252 = vrot.slane %v1249, 4
    %v1254 = vadd.f32 %v794, %v1252
    %v1255 = vtanh.pop %v1254
    %v1256 = vxor.u32 %v1254, 2147483648
    %v1257 = vmul.f32 %v1256, 1.442695
    %v1258 = vpow.pop %v1257
    %v1259 = vadd.f32 %v1258, 1.0
    %v1260 = vrcp.pop %v1259
    %v1261 = vmul.f32 %v1259, %v1260
    %v1262 = vsub.f32 1.0, %v1261
    %v1263 = vmul.f32 %v1260, %v1262
    %v1264 = vadd.f32 %v1260, %v1263
    %vm1265 = vweird.f32 %v1259
    %vm1266 = vweird.f32 %v1260
    %vm1267 = vmor %vm1265, %vm1266
    %v1268 = vsel %vm1267, %v1260, %v1264
    %v1269 = vand.u32 2147483647, %v1259
    %vm1270 = vcmp.eq.f32.partialorder %v1269, 8.507059e+37
    %v1271 = vand.u32 %v1259, 2147483648
    %v1272 = vor.u32 1.1754944e-38, %v1271
    %v1273 = vsel %vm1270, %v1272, %v1268
    %v1274 = vmul.f32 1.0, %v1273
    %v1275 = vsel %vm183, %v1255, %v1274
    %v1277 = vrot.slane %v1214, 6
    %v1279 = vmul.f32 %v1275, %v1277
    %1281 = vrot.lane.b32.xlu0 %v1275, 64
    %v1282 = vpop.permute.xlu0 %1281
    %v1284 = vmul.f32 %v1275, %v1282
    %1286 = vrot.lane.b32.xlu0 %v1284, 32
    %v1287 = vpop.permute.xlu0 %1286
    %v1289 = vadd.f32 %v1279, %v1287
    %v1290 = vtanh.pop %v1289
    %1292 = vrot.lane.b32.xlu0 %v1290, 64
    %v1293 = vpop.permute.xlu0 %1292
    %v1295 = vmul.f32 %v1275, %v1293
    %1297 = vrot.lane.b32.xlu0 %v1295, 32
    %v1298 = vpop.permute.xlu0 %1297
    %1300 = vst.msk [vmem:[#allocation2 + $0x8] sm:$0x30] %vm375, %v1298
    %v1301 = vrot.slane %v1295, 4
    %1302 = vrot.lane.b32.xlu0 %v1301, 32
    %v1303 = vpop.permute.xlu0 %1302
    %v1304 = vsel %vm154, %v1303, 0
    %1306 = vmatpush.msra.mxu0 0.0
    %1307 = vmatpush.msra.mxu0 0.0
    %1308 = vmatpush.msra.mxu0 0.0
    %1309 = vmatpush.msra.mxu0 0.0
    %1310 = vmatpush.msra.mxu0 0.0
    %1311 = vmatpush.msra.mxu0 0.0
    %1312 = vmatpush.msra.mxu0 0.0
    %1313 = vmatpush.msra.mxu0 0.0
    %1314 = vmatpush.msra.mxu0 0.0
    %1315 = vmatpush.msra.mxu0 0.0
    %1316 = vmatpush.msra.mxu0 0.0
    %1317 = vmatpush.msra.mxu0 0.0
    %1318 = vmatpush.msra.mxu0 %v758
    %1319 = vmatpush.msra.mxu0 %v757
    %1320 = vmatpush.msra.mxu0 %v756
    %1321 = vmatpush.msra.mxu0 %v755
    %1322 = vmatmul.f32.gmra.mxu0 %v1304
    %v1323 = vpop.f32.mrf.mxu0
    %v1324 = vadd.f32 0.0, %v1323
    %1325 = vdwg.mxu0
    %v1327 = vrot.slane %v1324, 2
    %v1329 = vadd.f32 %v794, %v1327
    %v1330 = vtanh.pop %v1329
    %v1331 = vxor.u32 %v1329, 2147483648
    %v1332 = vmul.f32 %v1331, 1.442695
    %v1333 = vpow.pop %v1332
    %v1334 = vadd.f32 %v1333, 1.0
    %v1335 = vrcp.pop %v1334
    %v1336 = vmul.f32 %v1334, %v1335
    %v1337 = vsub.f32 1.0, %v1336
    %v1338 = vmul.f32 %v1335, %v1337
    %v1339 = vadd.f32 %v1335, %v1338
    %vm1340 = vweird.f32 %v1334
    %vm1341 = vweird.f32 %v1335
    %vm1342 = vmor %vm1340, %vm1341
    %v1343 = vsel %vm1342, %v1335, %v1339
    %v1344 = vand.u32 2147483647, %v1334
    %vm1345 = vcmp.eq.f32.partialorder %v1344, 8.507059e+37
    %v1346 = vand.u32 %v1334, 2147483648
    %v1347 = vor.u32 1.1754944e-38, %v1346
    %v1348 = vsel %vm1345, %v1347, %v1343
    %v1349 = vmul.f32 1.0, %v1348
    %v1350 = vsel %vm183, %v1330, %v1349
    %v1352 = vrot.slane %v1289, 6
    %v1354 = vmul.f32 %v1350, %v1352
    %1356 = vrot.lane.b32.xlu0 %v1350, 64
    %v1357 = vpop.permute.xlu0 %1356
    %v1359 = vmul.f32 %v1350, %v1357
    %1361 = vrot.lane.b32.xlu0 %v1359, 32
    %v1362 = vpop.permute.xlu0 %1361
    %v1364 = vadd.f32 %v1354, %v1362
    %v1365 = vtanh.pop %v1364
    %1367 = vrot.lane.b32.xlu0 %v1365, 64
    %v1368 = vpop.permute.xlu0 %1367
    %v1370 = vmul.f32 %v1350, %v1368
    %1372 = vrot.lane.b32.xlu0 %v1370, 32
    %v1373 = vpop.permute.xlu0 %1372
    %1375 = vst.msk [vmem:[#allocation2 + $0x8] sm:$0xc0] %vm451, %v1373
    %s1376 = scalar_lea.vmem [#allocation11], 2
    %1377 = vst.msk [vmem:[%s1376 - $0x6] sm:$0xc0] %vm451, %v1373
    %1379 = vrot.lane.b32.xlu0 %v1364, 96
    %v1380 = vpop.permute.xlu0 %1379
    %s1382 = scalar_lea.vmem [#allocation12], 2
    %1383 = vst.msk [vmem:[%s1382 - $0x6] sm:$0xc0] %vm451, %v1380
    %v1384 = vld [vmem:[#allocation2] sm:$0xff]
    %v1385 = vld [vmem:[#allocation2 + $0x8] sm:$0xff]
    %v1386 = vld [vmem:[#allocation9] sm:$0xff]
    %v1387 = vld [vmem:[#allocation9 + $0x8] sm:$0xff]
    %v1388 = vld [vmem:[#allocation9 + $0x10] sm:$0xff]
    %v1389 = vld [vmem:[#allocation9 + $0x18] sm:$0xff]
    %v1390 = vld [vmem:[#allocation8] sm:$0xff]
    %v1391 = vld [vmem:[#allocation8 + $0x8] sm:$0xff]
    %v1392 = vld [vmem:[#allocation8 + $0x10] sm:$0xff]
    %v1393 = vld [vmem:[#allocation8 + $0x18] sm:$0xff]
    %v1394 = vld [vmem:[%s9] sm:$0x1]
    %v1396 = vperm.slane %v1394, 0
    %v1399 = vsel %vm154, %v1384, 0
    %v1402 = vsel %vm154, %v1385, 0
    %1404 = vmatpush.msra.mxu0 0.0
    %1405 = vmatpush.msra.mxu0 0.0
    %1406 = vmatpush.msra.mxu0 0.0
    %1407 = vmatpush.msra.mxu0 0.0
    %1408 = vmatpush.msra.mxu0 0.0
    %1409 = vmatpush.msra.mxu0 0.0
    %1410 = vmatpush.msra.mxu0 0.0
    %1411 = vmatpush.msra.mxu0 0.0
    %1412 = vmatpush.msra.mxu0 0.0
    %1413 = vmatpush.msra.mxu0 0.0
    %1414 = vmatpush.msra.mxu0 0.0
    %1415 = vmatpush.msra.mxu0 0.0
    %1416 = vmatpush.msra.mxu0 %v1393
    %1417 = vmatpush.msra.mxu0 %v1392
    %1418 = vmatpush.msra.mxu0 %v1391
    %1419 = vmatpush.msra.mxu0 %v1390
    %1420 = vmatmul.f32.gmra.mxu0 %v1399
    %v1421 = vpop.f32.mrf.mxu0
    %v1422 = vadd.f32 %v1396, %v1421
    %1423 = vmatmul.f32.gmra.mxu0 %v1402
    %v1424 = vpop.f32.mrf.mxu0
    %v1425 = vadd.f32 %v1396, %v1424
    %1426 = vdwg.mxu0
    %1427 = vmatpush.msra.mxu0 0.0
    %1428 = vmatpush.msra.mxu0 0.0
    %1429 = vmatpush.msra.mxu0 0.0
    %1430 = vmatpush.msra.mxu0 0.0
    %1431 = vmatpush.msra.mxu0 0.0
    %1432 = vmatpush.msra.mxu0 0.0
    %1433 = vmatpush.msra.mxu0 0.0
    %1434 = vmatpush.msra.mxu0 0.0
    %1435 = vmatpush.msra.mxu0 0.0
    %1436 = vmatpush.msra.mxu0 0.0
    %1437 = vmatpush.msra.mxu0 0.0
    %1438 = vmatpush.msra.mxu0 0.0
    %1439 = vmatpush.msra.mxu0 %v1389
    %1440 = vmatpush.msra.mxu0 %v1388
    %1441 = vmatpush.msra.mxu0 %v1387
    %1442 = vmatpush.msra.mxu0 %v1386
    %1443 = vmatmul.f32.gmra.mxu0 %v156
    %v1444 = vpop.f32.mrf.mxu0
    %v1445 = vadd.f32 0.0, %v1444
    %1446 = vdwg.mxu0
    %v1447 = vadd.f32 %v1422, %v1445
    %v1448 = vtanh.pop %v1447
    %v1449 = vxor.u32 %v1447, 2147483648
    %v1450 = vmul.f32 %v1449, 1.442695
    %v1451 = vpow.pop %v1450
    %v1452 = vadd.f32 %v1451, 1.0
    %v1453 = vrcp.pop %v1452
    %v1454 = vmul.f32 %v1452, %v1453
    %v1455 = vsub.f32 1.0, %v1454
    %v1456 = vmul.f32 %v1453, %v1455
    %v1457 = vadd.f32 %v1453, %v1456
    %vm1458 = vweird.f32 %v1452
    %vm1459 = vweird.f32 %v1453
    %vm1460 = vmor %vm1458, %vm1459
    %v1461 = vsel %vm1460, %v1453, %v1457
    %v1462 = vand.u32 2147483647, %v1452
    %vm1463 = vcmp.eq.f32.partialorder %v1462, 8.507059e+37
    %v1464 = vand.u32 %v1452, 2147483648
    %v1465 = vor.u32 1.1754944e-38, %v1464
    %v1466 = vsel %vm1463, %v1465, %v1461
    %v1467 = vmul.f32 1.0, %v1466
    %v1468 = vsel %vm183, %v1448, %v1467
    %v1469 = vmul.f32 %v1468, 0.0
    %1471 = vrot.lane.b32.xlu0 %v1468, 64
    %v1472 = vpop.permute.xlu0 %1471
    %v1474 = vmul.f32 %v1468, %v1472
    %1476 = vrot.lane.b32.xlu0 %v1474, 32
    %v1477 = vpop.permute.xlu0 %1476
    %v1479 = vadd.f32 %v1469, %v1477
    %v1480 = vtanh.pop %v1479
    %1482 = vrot.lane.b32.xlu0 %v1480, 64
    %v1483 = vpop.permute.xlu0 %1482
    %v1485 = vmul.f32 %v1468, %v1483
    %1487 = vrot.lane.b32.xlu0 %v1485, 32
    %v1488 = vpop.permute.xlu0 %1487
    %1490 = vst.msk [vmem:[#allocation2] sm:$0x3] %vm226, %v1488
    %v1491 = vsel %vm154, %v1488, 0
    %1493 = vmatpush.msra.mxu0 0.0
    %1494 = vmatpush.msra.mxu0 0.0
    %1495 = vmatpush.msra.mxu0 0.0
    %1496 = vmatpush.msra.mxu0 0.0
    %1497 = vmatpush.msra.mxu0 0.0
    %1498 = vmatpush.msra.mxu0 0.0
    %1499 = vmatpush.msra.mxu0 0.0
    %1500 = vmatpush.msra.mxu0 0.0
    %1501 = vmatpush.msra.mxu0 0.0
    %1502 = vmatpush.msra.mxu0 0.0
    %1503 = vmatpush.msra.mxu0 0.0
    %1504 = vmatpush.msra.mxu0 0.0
    %1505 = vmatpush.msra.mxu0 %v1389
    %1506 = vmatpush.msra.mxu0 %v1388
    %1507 = vmatpush.msra.mxu0 %v1387
    %1508 = vmatpush.msra.mxu0 %v1386
    %1509 = vmatmul.f32.gmra.mxu0 %v1491
    %v1510 = vpop.f32.mrf.mxu0
    %v1511 = vadd.f32 0.0, %v1510
    %1512 = vdwg.mxu0
    %v1514 = vrot.slane %v1511, 6
    %v1516 = vadd.f32 %v1422, %v1514
    %v1517 = vtanh.pop %v1516
    %v1518 = vxor.u32 %v1516, 2147483648
    %v1519 = vmul.f32 %v1518, 1.442695
    %v1520 = vpow.pop %v1519
    %v1521 = vadd.f32 %v1520, 1.0
    %v1522 = vrcp.pop %v1521
    %v1523 = vmul.f32 %v1521, %v1522
    %v1524 = vsub.f32 1.0, %v1523
    %v1525 = vmul.f32 %v1522, %v1524
    %v1526 = vadd.f32 %v1522, %v1525
    %vm1527 = vweird.f32 %v1521
    %vm1528 = vweird.f32 %v1522
    %vm1529 = vmor %vm1527, %vm1528
    %v1530 = vsel %vm1529, %v1522, %v1526
    %v1531 = vand.u32 2147483647, %v1521
    %vm1532 = vcmp.eq.f32.partialorder %v1531, 8.507059e+37
    %v1533 = vand.u32 %v1521, 2147483648
    %v1534 = vor.u32 1.1754944e-38, %v1533
    %v1535 = vsel %vm1532, %v1534, %v1530
    %v1536 = vmul.f32 1.0, %v1535
    %v1537 = vsel %vm183, %v1517, %v1536
    %v1539 = vrot.slane %v1479, 6
    %v1541 = vmul.f32 %v1537, %v1539
    %1543 = vrot.lane.b32.xlu0 %v1537, 64
    %v1544 = vpop.permute.xlu0 %1543
    %v1546 = vmul.f32 %v1537, %v1544
    %1548 = vrot.lane.b32.xlu0 %v1546, 32
    %v1549 = vpop.permute.xlu0 %1548
    %v1551 = vadd.f32 %v1541, %v1549
    %v1552 = vtanh.pop %v1551
    %1554 = vrot.lane.b32.xlu0 %v1552, 64
    %v1555 = vpop.permute.xlu0 %1554
    %v1557 = vmul.f32 %v1537, %v1555
    %1559 = vrot.lane.b32.xlu0 %v1557, 32
    %v1560 = vpop.permute.xlu0 %1559
    %1562 = vst.msk [vmem:[#allocation2] sm:$0xc] %vm299, %v1560
    %v1563 = vrot.slane %v1557, 2
    %1564 = vrot.lane.b32.xlu0 %v1563, 32
    %v1565 = vpop.permute.xlu0 %1564
    %v1566 = vsel %vm154, %v1565, 0
    %1568 = vmatpush.msra.mxu0 0.0
    %1569 = vmatpush.msra.mxu0 0.0
    %1570 = vmatpush.msra.mxu0 0.0
    %1571 = vmatpush.msra.mxu0 0.0
    %1572 = vmatpush.msra.mxu0 0.0
    %1573 = vmatpush.msra.mxu0 0.0
    %1574 = vmatpush.msra.mxu0 0.0
    %1575 = vmatpush.msra.mxu0 0.0
    %1576 = vmatpush.msra.mxu0 0.0
    %1577 = vmatpush.msra.mxu0 0.0
    %1578 = vmatpush.msra.mxu0 0.0
    %1579 = vmatpush.msra.mxu0 0.0
    %1580 = vmatpush.msra.mxu0 %v1389
    %1581 = vmatpush.msra.mxu0 %v1388
    %1582 = vmatpush.msra.mxu0 %v1387
    %1583 = vmatpush.msra.mxu0 %v1386
    %1584 = vmatmul.f32.gmra.mxu0 %v1566
    %v1585 = vpop.f32.mrf.mxu0
    %v1586 = vadd.f32 0.0, %v1585
    %1587 = vdwg.mxu0
    %v1589 = vrot.slane %v1586, 4
    %v1591 = vadd.f32 %v1422, %v1589
    %v1592 = vtanh.pop %v1591
    %v1593 = vxor.u32 %v1591, 2147483648
    %v1594 = vmul.f32 %v1593, 1.442695
    %v1595 = vpow.pop %v1594
    %v1596 = vadd.f32 %v1595, 1.0
    %v1597 = vrcp.pop %v1596
    %v1598 = vmul.f32 %v1596, %v1597
    %v1599 = vsub.f32 1.0, %v1598
    %v1600 = vmul.f32 %v1597, %v1599
    %v1601 = vadd.f32 %v1597, %v1600
    %vm1602 = vweird.f32 %v1596
    %vm1603 = vweird.f32 %v1597
    %vm1604 = vmor %vm1602, %vm1603
    %v1605 = vsel %vm1604, %v1597, %v1601
    %v1606 = vand.u32 2147483647, %v1596
    %vm1607 = vcmp.eq.f32.partialorder %v1606, 8.507059e+37
    %v1608 = vand.u32 %v1596, 2147483648
    %v1609 = vor.u32 1.1754944e-38, %v1608
    %v1610 = vsel %vm1607, %v1609, %v1605
    %v1611 = vmul.f32 1.0, %v1610
    %v1612 = vsel %vm183, %v1592, %v1611
    %v1614 = vrot.slane %v1551, 6
    %v1616 = vmul.f32 %v1612, %v1614
    %1618 = vrot.lane.b32.xlu0 %v1612, 64
    %v1619 = vpop.permute.xlu0 %1618
    %v1621 = vmul.f32 %v1612, %v1619
    %1623 = vrot.lane.b32.xlu0 %v1621, 32
    %v1624 = vpop.permute.xlu0 %1623
    %v1626 = vadd.f32 %v1616, %v1624
    %v1627 = vtanh.pop %v1626
    %1629 = vrot.lane.b32.xlu0 %v1627, 64
    %v1630 = vpop.permute.xlu0 %1629
    %v1632 = vmul.f32 %v1612, %v1630
    %1634 = vrot.lane.b32.xlu0 %v1632, 32
    %v1635 = vpop.permute.xlu0 %1634
    %1637 = vst.msk [vmem:[#allocation2] sm:$0x30] %vm375, %v1635
    %v1638 = vrot.slane %v1632, 4
    %1639 = vrot.lane.b32.xlu0 %v1638, 32
    %v1640 = vpop.permute.xlu0 %1639
    %v1641 = vsel %vm154, %v1640, 0
    %1643 = vmatpush.msra.mxu0 0.0
    %1644 = vmatpush.msra.mxu0 0.0
    %1645 = vmatpush.msra.mxu0 0.0
    %1646 = vmatpush.msra.mxu0 0.0
    %1647 = vmatpush.msra.mxu0 0.0
    %1648 = vmatpush.msra.mxu0 0.0
    %1649 = vmatpush.msra.mxu0 0.0
    %1650 = vmatpush.msra.mxu0 0.0
    %1651 = vmatpush.msra.mxu0 0.0
    %1652 = vmatpush.msra.mxu0 0.0
    %1653 = vmatpush.msra.mxu0 0.0
    %1654 = vmatpush.msra.mxu0 0.0
    %1655 = vmatpush.msra.mxu0 %v1389
    %1656 = vmatpush.msra.mxu0 %v1388
    %1657 = vmatpush.msra.mxu0 %v1387
    %1658 = vmatpush.msra.mxu0 %v1386
    %1659 = vmatmul.f32.gmra.mxu0 %v1641
    %v1660 = vpop.f32.mrf.mxu0
    %v1661 = vadd.f32 0.0, %v1660
    %1662 = vdwg.mxu0
    %v1664 = vrot.slane %v1661, 2
    %v1666 = vadd.f32 %v1422, %v1664
    %v1667 = vtanh.pop %v1666
    %v1668 = vxor.u32 %v1666, 2147483648
    %v1669 = vmul.f32 %v1668, 1.442695
    %v1670 = vpow.pop %v1669
    %v1671 = vadd.f32 %v1670, 1.0
    %v1672 = vrcp.pop %v1671
    %v1673 = vmul.f32 %v1671, %v1672
    %v1674 = vsub.f32 1.0, %v1673
    %v1675 = vmul.f32 %v1672, %v1674
    %v1676 = vadd.f32 %v1672, %v1675
    %vm1677 = vweird.f32 %v1671
    %vm1678 = vweird.f32 %v1672
    %vm1679 = vmor %vm1677, %vm1678
    %v1680 = vsel %vm1679, %v1672, %v1676
    %v1681 = vand.u32 2147483647, %v1671
    %vm1682 = vcmp.eq.f32.partialorder %v1681, 8.507059e+37
    %v1683 = vand.u32 %v1671, 2147483648
    %v1684 = vor.u32 1.1754944e-38, %v1683
    %v1685 = vsel %vm1682, %v1684, %v1680
    %v1686 = vmul.f32 1.0, %v1685
    %v1687 = vsel %vm183, %v1667, %v1686
    %v1689 = vrot.slane %v1626, 6
    %v1691 = vmul.f32 %v1687, %v1689
    %1693 = vrot.lane.b32.xlu0 %v1687, 64
    %v1694 = vpop.permute.xlu0 %1693
    %v1696 = vmul.f32 %v1687, %v1694
    %1698 = vrot.lane.b32.xlu0 %v1696, 32
    %v1699 = vpop.permute.xlu0 %1698
    %v1701 = vadd.f32 %v1691, %v1699
    %v1702 = vtanh.pop %v1701
    %1704 = vrot.lane.b32.xlu0 %v1702, 64
    %v1705 = vpop.permute.xlu0 %1704
    %v1707 = vmul.f32 %v1687, %v1705
    %1709 = vrot.lane.b32.xlu0 %v1707, 32
    %v1710 = vpop.permute.xlu0 %1709
    %1712 = vst.msk [vmem:[#allocation2] sm:$0xc0] %vm451, %v1710
    %v1713 = vrot.slane %v1707, 6
    %1714 = vrot.lane.b32.xlu0 %v1713, 32
    %v1715 = vpop.permute.xlu0 %1714
    %v1716 = vsel %vm154, %v1715, 0
    %1718 = vmatpush.msra.mxu0 0.0
    %1719 = vmatpush.msra.mxu0 0.0
    %1720 = vmatpush.msra.mxu0 0.0
    %1721 = vmatpush.msra.mxu0 0.0
    %1722 = vmatpush.msra.mxu0 0.0
    %1723 = vmatpush.msra.mxu0 0.0
    %1724 = vmatpush.msra.mxu0 0.0
    %1725 = vmatpush.msra.mxu0 0.0
    %1726 = vmatpush.msra.mxu0 0.0
    %1727 = vmatpush.msra.mxu0 0.0
    %1728 = vmatpush.msra.mxu0 0.0
    %1729 = vmatpush.msra.mxu0 0.0
    %1730 = vmatpush.msra.mxu0 %v1389
    %1731 = vmatpush.msra.mxu0 %v1388
    %1732 = vmatpush.msra.mxu0 %v1387
    %1733 = vmatpush.msra.mxu0 %v1386
    %1734 = vmatmul.f32.gmra.mxu0 %v1716
    %v1735 = vpop.f32.mrf.mxu0
    %v1736 = vadd.f32 0.0, %v1735
    %1737 = vdwg.mxu0
    %v1738 = vadd.f32 %v1425, %v1736
    %v1739 = vtanh.pop %v1738
    %v1740 = vxor.u32 %v1738, 2147483648
    %v1741 = vmul.f32 %v1740, 1.442695
    %v1742 = vpow.pop %v1741
    %v1743 = vadd.f32 %v1742, 1.0
    %v1744 = vrcp.pop %v1743
    %v1745 = vmul.f32 %v1743, %v1744
    %v1746 = vsub.f32 1.0, %v1745
    %v1747 = vmul.f32 %v1744, %v1746
    %v1748 = vadd.f32 %v1744, %v1747
    %vm1749 = vweird.f32 %v1743
    %vm1750 = vweird.f32 %v1744
    %vm1751 = vmor %vm1749, %vm1750
    %v1752 = vsel %vm1751, %v1744, %v1748
    %v1753 = vand.u32 2147483647, %v1743
    %vm1754 = vcmp.eq.f32.partialorder %v1753, 8.507059e+37
    %v1755 = vand.u32 %v1743, 2147483648
    %v1756 = vor.u32 1.1754944e-38, %v1755
    %v1757 = vsel %vm1754, %v1756, %v1752
    %v1758 = vmul.f32 1.0, %v1757
    %v1759 = vsel %vm183, %v1739, %v1758
    %v1761 = vrot.slane %v1701, 6
    %v1763 = vmul.f32 %v1759, %v1761
    %1765 = vrot.lane.b32.xlu0 %v1759, 64
    %v1766 = vpop.permute.xlu0 %1765
    %v1768 = vmul.f32 %v1759, %v1766
    %1770 = vrot.lane.b32.xlu0 %v1768, 32
    %v1771 = vpop.permute.xlu0 %1770
    %v1773 = vadd.f32 %v1763, %v1771
    %v1774 = vtanh.pop %v1773
    %1776 = vrot.lane.b32.xlu0 %v1774, 64
    %v1777 = vpop.permute.xlu0 %1776
    %v1779 = vmul.f32 %v1759, %v1777
    %1781 = vrot.lane.b32.xlu0 %v1779, 32
    %v1782 = vpop.permute.xlu0 %1781
    %1784 = vst.msk [vmem:[#allocation2 + $0x8] sm:$0x3] %vm226, %v1782
    %v1785 = vsel %vm154, %v1782, 0
    %1787 = vmatpush.msra.mxu0 0.0
    %1788 = vmatpush.msra.mxu0 0.0
    %1789 = vmatpush.msra.mxu0 0.0
    %1790 = vmatpush.msra.mxu0 0.0
    %1791 = vmatpush.msra.mxu0 0.0
    %1792 = vmatpush.msra.mxu0 0.0
    %1793 = vmatpush.msra.mxu0 0.0
    %1794 = vmatpush.msra.mxu0 0.0
    %1795 = vmatpush.msra.mxu0 0.0
    %1796 = vmatpush.msra.mxu0 0.0
    %1797 = vmatpush.msra.mxu0 0.0
    %1798 = vmatpush.msra.mxu0 0.0
    %1799 = vmatpush.msra.mxu0 %v1389
    %1800 = vmatpush.msra.mxu0 %v1388
    %1801 = vmatpush.msra.mxu0 %v1387
    %1802 = vmatpush.msra.mxu0 %v1386
    %1803 = vmatmul.f32.gmra.mxu0 %v1785
    %v1804 = vpop.f32.mrf.mxu0
    %v1805 = vadd.f32 0.0, %v1804
    %1806 = vdwg.mxu0
    %v1808 = vrot.slane %v1805, 6
    %v1810 = vadd.f32 %v1425, %v1808
    %v1811 = vtanh.pop %v1810
    %v1812 = vxor.u32 %v1810, 2147483648
    %v1813 = vmul.f32 %v1812, 1.442695
    %v1814 = vpow.pop %v1813
    %v1815 = vadd.f32 %v1814, 1.0
    %v1816 = vrcp.pop %v1815
    %v1817 = vmul.f32 %v1815, %v1816
    %v1818 = vsub.f32 1.0, %v1817
    %v1819 = vmul.f32 %v1816, %v1818
    %v1820 = vadd.f32 %v1816, %v1819
    %vm1821 = vweird.f32 %v1815
    %vm1822 = vweird.f32 %v1816
    %vm1823 = vmor %vm1821, %vm1822
    %v1824 = vsel %vm1823, %v1816, %v1820
    %v1825 = vand.u32 2147483647, %v1815
    %vm1826 = vcmp.eq.f32.partialorder %v1825, 8.507059e+37
    %v1827 = vand.u32 %v1815, 2147483648
    %v1828 = vor.u32 1.1754944e-38, %v1827
    %v1829 = vsel %vm1826, %v1828, %v1824
    %v1830 = vmul.f32 1.0, %v1829
    %v1831 = vsel %vm183, %v1811, %v1830
    %v1833 = vrot.slane %v1773, 6
    %v1835 = vmul.f32 %v1831, %v1833
    %1837 = vrot.lane.b32.xlu0 %v1831, 64
    %v1838 = vpop.permute.xlu0 %1837
    %v1840 = vmul.f32 %v1831, %v1838
    %1842 = vrot.lane.b32.xlu0 %v1840, 32
    %v1843 = vpop.permute.xlu0 %1842
    %v1845 = vadd.f32 %v1835, %v1843
    %v1846 = vtanh.pop %v1845
    %1848 = vrot.lane.b32.xlu0 %v1846, 64
    %v1849 = vpop.permute.xlu0 %1848
    %v1851 = vmul.f32 %v1831, %v1849
    %1853 = vrot.lane.b32.xlu0 %v1851, 32
    %v1854 = vpop.permute.xlu0 %1853
    %1856 = vst.msk [vmem:[#allocation2 + $0x8] sm:$0xc] %vm299, %v1854
    %v1857 = vrot.slane %v1851, 2
    %1858 = vrot.lane.b32.xlu0 %v1857, 32
    %v1859 = vpop.permute.xlu0 %1858
    %v1860 = vsel %vm154, %v1859, 0
    %1862 = vmatpush.msra.mxu0 0.0
    %1863 = vmatpush.msra.mxu0 0.0
    %1864 = vmatpush.msra.mxu0 0.0
    %1865 = vmatpush.msra.mxu0 0.0
    %1866 = vmatpush.msra.mxu0 0.0
    %1867 = vmatpush.msra.mxu0 0.0
    %1868 = vmatpush.msra.mxu0 0.0
    %1869 = vmatpush.msra.mxu0 0.0
    %1870 = vmatpush.msra.mxu0 0.0
    %1871 = vmatpush.msra.mxu0 0.0
    %1872 = vmatpush.msra.mxu0 0.0
    %1873 = vmatpush.msra.mxu0 0.0
    %1874 = vmatpush.msra.mxu0 %v1389
    %1875 = vmatpush.msra.mxu0 %v1388
    %1876 = vmatpush.msra.mxu0 %v1387
    %1877 = vmatpush.msra.mxu0 %v1386
    %1878 = vmatmul.f32.gmra.mxu0 %v1860
    %v1879 = vpop.f32.mrf.mxu0
    %v1880 = vadd.f32 0.0, %v1879
    %1881 = vdwg.mxu0
    %v1883 = vrot.slane %v1880, 4
    %v1885 = vadd.f32 %v1425, %v1883
    %v1886 = vtanh.pop %v1885
    %v1887 = vxor.u32 %v1885, 2147483648
    %v1888 = vmul.f32 %v1887, 1.442695
    %v1889 = vpow.pop %v1888
    %v1890 = vadd.f32 %v1889, 1.0
    %v1891 = vrcp.pop %v1890
    %v1892 = vmul.f32 %v1890, %v1891
    %v1893 = vsub.f32 1.0, %v1892
    %v1894 = vmul.f32 %v1891, %v1893
    %v1895 = vadd.f32 %v1891, %v1894
    %vm1896 = vweird.f32 %v1890
    %vm1897 = vweird.f32 %v1891
    %vm1898 = vmor %vm1896, %vm1897
    %v1899 = vsel %vm1898, %v1891, %v1895
    %v1900 = vand.u32 2147483647, %v1890
    %vm1901 = vcmp.eq.f32.partialorder %v1900, 8.507059e+37
    %v1902 = vand.u32 %v1890, 2147483648
    %v1903 = vor.u32 1.1754944e-38, %v1902
    %v1904 = vsel %vm1901, %v1903, %v1899
    %v1905 = vmul.f32 1.0, %v1904
    %v1906 = vsel %vm183, %v1886, %v1905
    %v1908 = vrot.slane %v1845, 6
    %v1910 = vmul.f32 %v1906, %v1908
    %1912 = vrot.lane.b32.xlu0 %v1906, 64
    %v1913 = vpop.permute.xlu0 %1912
    %v1915 = vmul.f32 %v1906, %v1913
    %1917 = vrot.lane.b32.xlu0 %v1915, 32
    %v1918 = vpop.permute.xlu0 %1917
    %v1920 = vadd.f32 %v1910, %v1918
    %v1921 = vtanh.pop %v1920
    %1923 = vrot.lane.b32.xlu0 %v1921, 64
    %v1924 = vpop.permute.xlu0 %1923
    %v1926 = vmul.f32 %v1906, %v1924
    %1928 = vrot.lane.b32.xlu0 %v1926, 32
    %v1929 = vpop.permute.xlu0 %1928
    %1931 = vst.msk [vmem:[#allocation2 + $0x8] sm:$0x30] %vm375, %v1929
    %v1932 = vrot.slane %v1926, 4
    %1933 = vrot.lane.b32.xlu0 %v1932, 32
    %v1934 = vpop.permute.xlu0 %1933
    %v1935 = vsel %vm154, %v1934, 0
    %1937 = vmatpush.msra.mxu0 0.0
    %1938 = vmatpush.msra.mxu0 0.0
    %1939 = vmatpush.msra.mxu0 0.0
    %1940 = vmatpush.msra.mxu0 0.0
    %1941 = vmatpush.msra.mxu0 0.0
    %1942 = vmatpush.msra.mxu0 0.0
    %1943 = vmatpush.msra.mxu0 0.0
    %1944 = vmatpush.msra.mxu0 0.0
    %1945 = vmatpush.msra.mxu0 0.0
    %1946 = vmatpush.msra.mxu0 0.0
    %1947 = vmatpush.msra.mxu0 0.0
    %1948 = vmatpush.msra.mxu0 0.0
    %1949 = vmatpush.msra.mxu0 %v1389
    %1950 = vmatpush.msra.mxu0 %v1388
    %1951 = vmatpush.msra.mxu0 %v1387
    %1952 = vmatpush.msra.mxu0 %v1386
    %1953 = vmatmul.f32.gmra.mxu0 %v1935
    %v1954 = vpop.f32.mrf.mxu0
    %v1955 = vadd.f32 0.0, %v1954
    %1956 = vdwg.mxu0
    %v1958 = vrot.slane %v1955, 2
    %v1960 = vadd.f32 %v1425, %v1958
    %v1961 = vtanh.pop %v1960
    %v1962 = vxor.u32 %v1960, 2147483648
    %v1963 = vmul.f32 %v1962, 1.442695
    %v1964 = vpow.pop %v1963
    %v1965 = vadd.f32 %v1964, 1.0
    %v1966 = vrcp.pop %v1965
    %v1967 = vmul.f32 %v1965, %v1966
    %v1968 = vsub.f32 1.0, %v1967
    %v1969 = vmul.f32 %v1966, %v1968
    %v1970 = vadd.f32 %v1966, %v1969
    %vm1971 = vweird.f32 %v1965
    %vm1972 = vweird.f32 %v1966
    %vm1973 = vmor %vm1971, %vm1972
    %v1974 = vsel %vm1973, %v1966, %v1970
    %v1975 = vand.u32 2147483647, %v1965
    %vm1976 = vcmp.eq.f32.partialorder %v1975, 8.507059e+37
    %v1977 = vand.u32 %v1965, 2147483648
    %v1978 = vor.u32 1.1754944e-38, %v1977
    %v1979 = vsel %vm1976, %v1978, %v1974
    %v1980 = vmul.f32 1.0, %v1979
    %v1981 = vsel %vm183, %v1961, %v1980
    %v1983 = vrot.slane %v1920, 6
    %v1985 = vmul.f32 %v1981, %v1983
    %1987 = vrot.lane.b32.xlu0 %v1981, 64
    %v1988 = vpop.permute.xlu0 %1987
    %v1990 = vmul.f32 %v1981, %v1988
    %1992 = vrot.lane.b32.xlu0 %v1990, 32
    %v1993 = vpop.permute.xlu0 %1992
    %v1995 = vadd.f32 %v1985, %v1993
    %v1996 = vtanh.pop %v1995
    %1998 = vrot.lane.b32.xlu0 %v1996, 64
    %v1999 = vpop.permute.xlu0 %1998
    %v2001 = vmul.f32 %v1981, %v1999
    %2003 = vrot.lane.b32.xlu0 %v2001, 32
    %v2004 = vpop.permute.xlu0 %2003
    %2006 = vst.msk [vmem:[#allocation2 + $0x8] sm:$0xc0] %vm451, %v2004
    %s2007 = scalar_lea.vmem [#allocation11], 4
    %2008 = vst.msk [vmem:[%s2007 - $0x6] sm:$0xc0] %vm451, %v2004
    %2010 = vrot.lane.b32.xlu0 %v1995, 96
    %v2011 = vpop.permute.xlu0 %2010
    %s2013 = scalar_lea.vmem [#allocation12], 4
    %2014 = vst.msk [vmem:[%s2013 - $0x6] sm:$0xc0] %vm451, %v2011
    %v2015 = vld [vmem:[#allocation2] sm:$0xff]
    %v2016 = vld [vmem:[#allocation2 + $0x8] sm:$0xff]
    %v2017 = vld [vmem:[%s10] sm:$0xff]
    %v2018 = vld [vmem:[%s10 + $0x8] sm:$0xff]
    %v2019 = vld [vmem:[%s10 + $0x10] sm:$0xff]
    %v2020 = vld [vmem:[%s10 + $0x18] sm:$0xff]
    %v2021 = vld [vmem:[%s11] sm:$0x1]
    %v2023 = vperm.slane %v2021, 0
    %v2026 = vsel %vm154, %v2015, 0
    %v2029 = vsel %vm154, %v2016, 0
    %2031 = vmatpush.msra.mxu0 0.0
    %2032 = vmatpush.msra.mxu0 0.0
    %2033 = vmatpush.msra.mxu0 0.0
    %2034 = vmatpush.msra.mxu0 0.0
    %2035 = vmatpush.msra.mxu0 0.0
    %2036 = vmatpush.msra.mxu0 0.0
    %2037 = vmatpush.msra.mxu0 0.0
    %2038 = vmatpush.msra.mxu0 0.0
    %2039 = vmatpush.msra.mxu0 0.0
    %2040 = vmatpush.msra.mxu0 0.0
    %2041 = vmatpush.msra.mxu0 0.0
    %2042 = vmatpush.msra.mxu0 0.0
    %2043 = vmatpush.msra.mxu0 %v2020
    %2044 = vmatpush.msra.mxu0 %v2019
    %2045 = vmatpush.msra.mxu0 %v2018
    %2046 = vmatpush.msra.mxu0 %v2017
    %2047 = vmatmul.f32.gmra.mxu0 %v2026
    %v2048 = vpop.f32.mrf.mxu0
    %v2049 = vadd.f32 %v2023, %v2048
    %2050 = vmatmul.f32.gmra.mxu0 %v2029
    %v2051 = vpop.f32.mrf.mxu0
    %v2052 = vadd.f32 %v2023, %v2051
    %2053 = vdwg.mxu0
    %2054 = vst.msk [vmem:[%s12] sm:$0xff] %vm120, %v2049
    %2055 = vst.msk [vmem:[%s12 + $0x8] sm:$0xff] %vm120, %v2052
    // Predicated region
    $region66: #{tpu_custom_call.1} parent=1 // pred_check
      _
    $region67: #{tpu_custom_call.1} parent=1 // pred_check_branch
      %2057 = sbr.rel (0) target = $region69
    $region68: #{tpu_custom_call.1} parent=1 // pred_region
      _
    $region69: #{tpu_custom_call.1} parent=1 // pred_fallthru
      _
    // Predicated region
    $region70: #{tpu_custom_call.1} parent=1 // pred_check
      _
    $region71: #{tpu_custom_call.1} parent=1 // pred_check_branch
      %2059 = sbr.rel (0) target = $region73
    $region72: #{tpu_custom_call.1} parent=1 // pred_region
      %2061 = vsyncadd [#allocation5], 0
      %s2062 = sshll.u32 [#allocation11], 4
      %s2063 = int_to_ptr.vmem [resolvable:$true] %s2062
      %s2064 = sshll.u32 %s13, 4
      %s2065 = int_to_ptr.hbm [resolvable:$true] %s2064
      %2070 = dma.vmem_to_hbm [thread:$0]  %s2063, 96, %s2065, [#allocation5], 32, 32, 2
    $region73: #{tpu_custom_call.1} parent=1 // pred_fallthru
      _
    // Predicated region
    $region74: #{tpu_custom_call.1} parent=1 // pred_check
      _
    $region75: #{tpu_custom_call.1} parent=1 // pred_check_branch
      %2072 = sbr.rel (0) target = $region77
    $region76: #{tpu_custom_call.1} parent=1 // pred_region
      %2074 = vsyncadd [#allocation13], 0
      %s2075 = sshll.u32 [#allocation12], 4
      %s2076 = int_to_ptr.vmem [resolvable:$true] %s2075
      %s2077 = sshll.u32 %s14, 4
      %s2078 = int_to_ptr.hbm [resolvable:$true] %s2077
      %2083 = dma.vmem_to_hbm [thread:$0]  %s2076, 96, %s2078, [#allocation13], 32, 32, 2
    $region77: #{tpu_custom_call.1} parent=1 // pred_fallthru
      _
    // Predicated region
    $region78: #{tpu_custom_call.1} parent=1 // pred_check
      _
    $region79: #{tpu_custom_call.1} parent=1 // pred_check_branch
      %2085 = sbr.rel (0) target = $region81
    $region80: #{tpu_custom_call.1} parent=1 // pred_region
      _
    $region81: #{tpu_custom_call.1} parent=1 // pred_fallthru
      _
    // Predicated region
    $region82: #{tpu_custom_call.1} parent=1 // pred_check
      _
    $region83: #{tpu_custom_call.1} parent=1 // pred_check_branch
      %2087 = sbr.rel (0) target = $region85
    $region84: #{tpu_custom_call.1} parent=1 // pred_region
      %2089 = dma.done [#allocation5], 96
    $region85: #{tpu_custom_call.1} parent=1 // pred_fallthru
      _
    // Predicated region
    $region86: #{tpu_custom_call.1} parent=1 // pred_check
      _
    $region87: #{tpu_custom_call.1} parent=1 // pred_check_branch
      %2091 = sbr.rel (0) target = $region89
    $region88: #{tpu_custom_call.1} parent=1 // pred_region
      %2093 = dma.done [#allocation13], 96
    $region89: #{tpu_custom_call.1} parent=1 // pred_fallthru
      _
    %2094 = vsyncpa [#allocation4], 1
    %2095 = vsyncpa [#allocation7], 1
    %2096 = vsyncpa [#allocation10], 1
    %2097 = vsyncpa [#allocation5], 1
    %2098 = vsyncpa [#allocation13], 1

</llo_original>
